<compile_context>
chip_gen: v6e
topology: v6e:2x2x1
jax: 0.10.0
libtpu: 0.0.40
codegen_flags: <defaults>
</compile_context>

<pallas_src>
import functools

import jax
import jax.numpy as jnp
from jax import lax
from jax.experimental import pallas as pl
from jax.experimental.pallas import tpu as pltpu

NEG_INF = -1e30


# ----------------------------------------------------------------------------
# Fused kernel: dual RNN encoder + classifier + weighted CE + softmax + argmax.
# One grid step = one chunk of G minibatches stacked along the row dimension.
# ----------------------------------------------------------------------------
def fused_forward_kernel(x_ref, lens_ref, labels_ref, lam_ref,
                         w_ih_ref, w_hh_ref, b_rnn_ref,
                         w1u_ref, w1v_ref, w1d_ref, w1p_ref, b1_ref,
                         w2_ref, b2_ref,
                         out_ref, *, n_classes):
    TWOR = lens_ref.shape[1]          # stacked rows per chunk (s1 rows, s2 rows)
    R = TWOR // 2                     # samples per chunk (= G minibatches * B)
    T = x_ref.shape[1] // TWOR
    Hp = w_hh_ref.shape[0]            # padded encoder dim (multiple of 128)
    Cp = b2_ref.shape[1]              # padded class dim  (multiple of 128)
    C = n_classes
    bf = jnp.bfloat16

    # ---- recurrence weights only (classifier weights loaded after the loop) ----
    w_ih = w_ih_ref[...]              # (D, Hp)  bf16 (pre-cast on host)
    w_hh = w_hh_ref[...]              # (Hp, Hp) bf16
    b_rnn = b_rnn_ref[...]            # (1, Hp)  f32

    # ---- hoisted input projection: one (T*2R, D) x (D, Hp) MXU matmul ----
    x = x_ref[0]                                                  # (T*2R, D) bf16
    xp = jnp.dot(x, w_ih, preferred_element_type=jnp.float32) + b_rnn

    # ---- all T length masks in one vectorized compare (hoisted) ----
    lens = lens_ref[0]                                            # (2R, 1) i32
    valid_all = lax.broadcasted_iota(jnp.int32, (T, TWOR, 1), 0) < lens

    # ---- tanh recurrence + length-masked max pool, fully unrolled over T ----
    h = jnp.zeros((TWOR, Hp), jnp.float32)
    pooled = jnp.full((TWOR, Hp), NEG_INF, jnp.float32)
    for t in range(T):                                            # static unroll
        x_t = xp[t * TWOR:(t + 1) * TWOR]                         # static slice
        h_new = jnp.tanh(
            x_t + jnp.dot(h.astype(bf), w_hh,
                          preferred_element_type=jnp.float32))
        valid = valid_all[t]                                      # (2R, 1) bool
        pooled = jnp.where(valid, jnp.maximum(pooled, h_new), pooled)
        h = jnp.where(valid, h_new, h)

    u = pooled[:R]                                                # (R, Hp)
    v = pooled[R:]                                                # (R, Hp)

    # ---- classifier weights loaded at first use (after the recurrence) ----
    w1u, w1v = w1u_ref[...], w1v_ref[...]                         # (Hp, Fp) bf16
    w1d, w1p = w1d_ref[...], w1p_ref[...]                         # (Hp, Fp) bf16
    b1 = b1_ref[...]                                              # (1, Fp)  f32
    w2, b2 = w2_ref[...], b2_ref[...]                             # bf16, f32

    # ---- InferSent features + MLP; w1 pre-split -> no lane-axis concat ----
    d = jnp.abs(u - v)
    p = u * v
    hidden = jnp.tanh(
        jnp.dot(u.astype(bf), w1u, preferred_element_type=jnp.float32)
        + jnp.dot(v.astype(bf), w1v, preferred_element_type=jnp.float32)
        + jnp.dot(d.astype(bf), w1d, preferred_element_type=jnp.float32)
        + jnp.dot(p.astype(bf), w1p, preferred_element_type=jnp.float32)
        + b1)                                                     # (R, Fp)
    logits = jnp.dot(hidden.astype(bf), w2,
                     preferred_element_type=jnp.float32) + b2     # (R, Cp)

    col = lax.broadcasted_iota(jnp.int32, (R, Cp), 1)
    valid_c = col < C
    logits = jnp.where(valid_c, logits, NEG_INF)                  # mask pad cols

    # ---- softmax / per-sample CE / argmax ----
    labels = labels_ref[0]                                        # (R, 1) i32
    m = jnp.max(logits, axis=-1, keepdims=True)
    ex = jnp.where(valid_c, jnp.exp(logits - m), 0.0)
    denom = jnp.sum(ex, axis=-1, keepdims=True)
    probs = ex * pl.reciprocal(denom, approx=True)                # (R, Cp)
    lse = m + jnp.log(denom)
    onehot = (col == labels).astype(jnp.float32)
    logit_y = jnp.sum(logits * onehot, axis=-1, keepdims=True)
    ce = lse - logit_y                                            # (R, 1)

    is_max = logits == m
    preds = jnp.min(jnp.where(is_max, col, Cp),
                    axis=-1, keepdims=True)                       # (R, 1) i32

    # ---- per-sample weighted CE + correctness (means + L2 reg done in XLA) ----
    w_lam = jax.nn.sigmoid(lam_ref[0])                            # (R, 1)
    wce = w_lam * ce
    correct = (preds == labels).astype(jnp.float32)

    # ---- pack results into one lane-dense (R, Cp) output slab ----
    #   cols [0:C] probs, col C preds, col C+1 weighted CE, col C+2 correct flag
    out = probs
    out = jnp.where(col == C, preds.astype(jnp.float32), out)
    out = jnp.where(col == C + 1, wce, out)
    out = jnp.where(col == C + 2, correct, out)
    out_ref[0] = out


# ----------------------------------------------------------------------------
# Wrapper: one pallas_call over ALL minibatch steps (grid over chunks, weights
# resident in VMEM via constant index_maps, per-step blocks streamed).
# ----------------------------------------------------------------------------
@functools.partial(jax.jit, static_argnames=("n_classes", "group"))
def learner_forward(params, s1, s1_lens, s2, s2_lens, labels, lambda_x,
                    data_indx, *, n_classes, group):
    S, T, B, D = s1.shape
    G = group
    assert S % G == 0, "number of minibatch steps must be a multiple of group"
    N = S // G                        # grid length (chunks)
    R = G * B                         # samples per chunk
    Hp = params["w_hh"].shape[0]
    Fp = params["b1"].shape[1]
    Cp = params["b2"].shape[1]

    # --- stack G minibatches along rows so recurrence/classifier matmuls see
    #     2R (=128 here) rows per grid step (MXU occupancy) ---
    def rows(s):                                      # (S,T,B,D) -> (N,T,R,D)
        return jnp.transpose(s.reshape(N, G, T, B, D),
                             (0, 2, 1, 3, 4)).reshape(N, T, R, D)

    x = jnp.concatenate([rows(s1), rows(s2)], axis=2)             # (N,T,2R,D)
    x = x.reshape(N, T * 2 * R, D).astype(jnp.bfloat16)           # bf16 stream

    def vec(a):                                       # (S,B) -> (N,R)
        return a.reshape(N, R)

    lens = jnp.concatenate([vec(s1_lens), vec(s2_lens)], axis=1)
    lens = jnp.maximum(lens, 1).astype(jnp.int32).reshape(N, 2 * R, 1)
    labels3 = vec(labels).astype(jnp.int32).reshape(N, R, 1)

    # lambda_x[data_indx] gather done in XLA (hoisted out of the kernel)
    lam_sel = lambda_x.astype(jnp.float32)[vec(data_indx)].reshape(N, R, 1)

    kernel = functools.partial(fused_forward_kernel, n_classes=n_classes)
    out = pl.pallas_call(
        kernel,
        out_shape=jax.ShapeDtypeStruct((N, R, Cp), jnp.float32),
        grid=(N,),
        in_specs=[
            # per-chunk streamed blocks
            pl.BlockSpec((1, T * 2 * R, D), lambda n: (n, 0, 0)),   # x
            pl.BlockSpec((1, 2 * R, 1), lambda n: (n, 0, 0)),       # lens
            pl.BlockSpec((1, R, 1), lambda n: (n, 0, 0)),           # labels
            pl.BlockSpec((1, R, 1), lambda n: (n, 0, 0)),           # lambda sel
            # weights: constant index_map -> resident in VMEM across the grid
            pl.BlockSpec((D, Hp), lambda n: (0, 0)),                # w_ih  bf16
            pl.BlockSpec((Hp, Hp), lambda n: (0, 0)),               # w_hh  bf16
            pl.BlockSpec((1, Hp), lambda n: (0, 0)),                # b_rnn f32
            pl.BlockSpec((Hp, Fp), lambda n: (0, 0)),               # w1u   bf16
            pl.BlockSpec((Hp, Fp), lambda n: (0, 0)),               # w1v   bf16
            pl.BlockSpec((Hp, Fp), lambda n: (0, 0)),               # w1d   bf16
            pl.BlockSpec((Hp, Fp), lambda n: (0, 0)),               # w1p   bf16
            pl.BlockSpec((1, Fp), lambda n: (0, 0)),                # b1    f32
            pl.BlockSpec((Fp, Cp), lambda n: (0, 0)),               # w2    bf16
            pl.BlockSpec((1, Cp), lambda n: (0, 0)),                # b2    f32
        ],
        out_specs=pl.BlockSpec((1, R, Cp), lambda n: (n, 0, 0)),
        compiler_params=pltpu.CompilerParams(
            dimension_semantics=("parallel",),        # v7x: split chunks over TCs
            vmem_limit_bytes=32 << 20),
    )(x, lens, labels3, lam_sel,
      params["w_ih"], params["w_hh"], params["b_rnn"],
      params["w1u"], params["w1v"], params["w1d"], params["w1p"], params["b1"],
      params["w2"], params["b2"])

    # --- batch-invariant L2 regularizer in XLA (hoisted out of the kernel) ---
    reg = 1e-4 * jnp.sqrt(
        sum(jnp.sum(p * p) for p in params["f32"].values()))

    out = out.reshape(S, B, Cp)
    probs = out[:, :, :n_classes]                                  # (S, B, C)
    preds = out[:, :, n_classes].astype(jnp.int32)                 # (S, B)
    loss = jnp.mean(out[:, :, n_classes + 1], axis=1) + reg        # (S,)
    acc = jnp.mean(out[:, :, n_classes + 2], axis=1)               # (S,)
    return loss, probs, preds, acc


# ----------------------------------------------------------------------------
# Parameter construction: logical sizes, zero-pad to lane-dense (128), pre-split
# w1 into its [u, v, |u-v|, u*v] row blocks, and pre-cast MXU weights to bf16
# ONCE on the host.  f32 masters are kept only for the XLA-side L2 regularizer.
# ----------------------------------------------------------------------------
def init_params(key, D, H, F, C):
    ks = jax.random.split(key, 4)
    scale = 0.1
    return {
        "w_ih": scale * jax.random.normal(ks[0], (D, H), jnp.float32),
        "w_hh": scale * jax.random.normal(ks[1], (H, H), jnp.float32),
        "b_rnn": jnp.zeros((1, H), jnp.float32),
        "w1": scale * jax.random.normal(ks[2], (4 * H, F), jnp.float32),
        "b1": jnp.zeros((1, F), jnp.float32),
        "w2": scale * jax.random.normal(ks[3], (F, C), jnp.float32),
        "b2": jnp.zeros((1, C), jnp.float32),
    }


def pad_and_split_params(p, Hp=128, Fp=128, Cp=128):
    D, H = p["w_ih"].shape

    def pad2(a, rows, cols):
        z = jnp.zeros((rows, cols), jnp.float32)
        return z.at[:a.shape[0], :a.shape[1]].set(a)

    w1 = p["w1"]  # (4H, F): row blocks multiply [u, v, |u-v|, u*v]
    f32 = {
        "w_ih": pad2(p["w_ih"], D, Hp),
        "w_hh": pad2(p["w_hh"], Hp, Hp),
        "b_rnn": pad2(p["b_rnn"], 1, Hp),
        "w1u": pad2(w1[0 * H:1 * H], Hp, Fp),
        "w1v": pad2(w1[1 * H:2 * H], Hp, Fp),
        "w1d": pad2(w1[2 * H:3 * H], Hp, Fp),
        "w1p": pad2(w1[3 * H:4 * H], Hp, Fp),
        "b1": pad2(p["b1"], 1, Fp),
        "w2": pad2(p["w2"], Fp, Cp),
        "b2": pad2(p["b2"], 1, Cp),
    }
    bf = jnp.bfloat16
    return {
        # bf16 MXU operands (halved DMA + VMEM footprint, no in-kernel cast)
        "w_ih": f32["w_ih"].astype(bf), "w_hh": f32["w_hh"].astype(bf),
        "w1u": f32["w1u"].astype(bf), "w1v": f32["w1v"].astype(bf),
        "w1d": f32["w1d"].astype(bf), "w1p": f32["w1p"].astype(bf),
        "w2": f32["w2"].astype(bf),
        # f32 biases (added to f32 accumulators inside the kernel)
        "b_rnn": f32["b_rnn"], "b1": f32["b1"], "b2": f32["b2"],
        # f32 masters, used only by the XLA-side L2 regularizer
        "f32": f32,
    }


# ----------------------------------------------------------------------------
# Driver
# ----------------------------------------------------------------------------
if __name__ == "__main__":
    # small, module-consistent shapes:
    #   word_embed_dim=32, encoder_dim=64, fc_dim=32, n_classes=3 (SNLI)
    B, T, D = 8, 8, 32
    H, F, C = 64, 32, 3
    G = 8                 # minibatches stacked per grid step -> 2*G*B = 128 rows
    N_CHUNKS = 4          # grid length
    S = G * N_CHUNKS      # total minibatch steps fused into one pallas_call
    TRAINING_SIZE = 64

    key = jax.random.PRNGKey(0)
    k_par, k_s1, k_s2, k_l1, k_l2, k_lab, k_idx = jax.random.split(key, 7)

    params = pad_and_split_params(init_params(k_par, D, H, F, C))

    # layout: (S, T, B, D) time-major sentence embeddings (PyTorch collate_pad_)
    s1 = jax.random.normal(k_s1, (S, T, B, D), jnp.float32)
    s2 = jax.random.normal(k_s2, (S, T, B, D), jnp.float32)
    s1_lens = jax.random.randint(k_l1, (S, B), 1, T + 1, jnp.int32)
    s2_lens = jax.random.randint(k_l2, (S, B), 1, T + 1, jnp.int32)
    labels = jax.random.randint(k_lab, (S, B), 0, C, jnp.int32)
    data_indx = jax.random.randint(k_idx, (S, B), 0, TRAINING_SIZE, jnp.int32)
    lambda_x = jnp.ones((TRAINING_SIZE,), jnp.float32)  # Learner init: torch.ones

    loss, probs, preds, acc = learner_forward(
        params, s1, s1_lens, s2, s2_lens, labels, lambda_x, data_indx,
        n_classes=C, group=G)
    jax.block_until_ready((loss, probs, preds, acc))
    print("KERNEL_OK")
</pallas_src>

<mosaic_0001>
module attributes {stable_mosaic.version = 11 : i64} {
  func.func @fused_forward_kernel(%arg0: i32, %arg1: memref<1x1024x32xbf16, #tpu.memory_space<vmem>>, %arg2: memref<1x128x1xi32, #tpu.memory_space<vmem>>, %arg3: memref<1x64x1xi32, #tpu.memory_space<vmem>>, %arg4: memref<1x64x1xf32, #tpu.memory_space<vmem>>, %arg5: memref<32x128xbf16, #tpu.memory_space<vmem>>, %arg6: memref<128x128xbf16, #tpu.memory_space<vmem>>, %arg7: memref<1x128xf32, #tpu.memory_space<vmem>>, %arg8: memref<128x128xbf16, #tpu.memory_space<vmem>>, %arg9: memref<128x128xbf16, #tpu.memory_space<vmem>>, %arg10: memref<128x128xbf16, #tpu.memory_space<vmem>>, %arg11: memref<128x128xbf16, #tpu.memory_space<vmem>>, %arg12: memref<1x128xf32, #tpu.memory_space<vmem>>, %arg13: memref<128x128xbf16, #tpu.memory_space<vmem>>, %arg14: memref<1x128xf32, #tpu.memory_space<vmem>>, %arg15: memref<1x64x128xf32, #tpu.memory_space<vmem>>) attributes {dimension_semantics = [#tpu.dimension_semantics<parallel>], iteration_bounds = array<i64: 4>, scalar_prefetch = 0 : i64, scratch_operands = 0 : i64, tpu.core_type = #tpu.core_type<tc>, window_params = [{transform_indices = @transform_0, window_bounds = array<i64: 1, 1024, 32>}, {transform_indices = @transform_1, window_bounds = array<i64: 1, 128, 1>}, {transform_indices = @transform_2, window_bounds = array<i64: 1, 64, 1>}, {transform_indices = @transform_3, window_bounds = array<i64: 1, 64, 1>}, {pipeline_mode = #tpu.pipeline_mode<synchronous>, transform_indices = @transform_4, window_bounds = array<i64: 32, 128>}, {pipeline_mode = #tpu.pipeline_mode<synchronous>, transform_indices = @transform_5, window_bounds = array<i64: 128, 128>}, {pipeline_mode = #tpu.pipeline_mode<synchronous>, transform_indices = @transform_6, window_bounds = array<i64: 1, 128>}, {pipeline_mode = #tpu.pipeline_mode<synchronous>, transform_indices = @transform_7, window_bounds = array<i64: 128, 128>}, {pipeline_mode = #tpu.pipeline_mode<synchronous>, transform_indices = @transform_8, window_bounds = array<i64: 128, 128>}, {pipeline_mode = #tpu.pipeline_mode<synchronous>, transform_indices = @transform_9, window_bounds = array<i64: 128, 128>}, {pipeline_mode = #tpu.pipeline_mode<synchronous>, transform_indices = @transform_10, window_bounds = array<i64: 128, 128>}, {pipeline_mode = #tpu.pipeline_mode<synchronous>, transform_indices = @transform_11, window_bounds = array<i64: 1, 128>}, {pipeline_mode = #tpu.pipeline_mode<synchronous>, transform_indices = @transform_12, window_bounds = array<i64: 128, 128>}, {pipeline_mode = #tpu.pipeline_mode<synchronous>, transform_indices = @transform_13, window_bounds = array<i64: 1, 128>}, {transform_indices = @transform_14, window_bounds = array<i64: 1, 64, 128>}]} {
    %c0 = arith.constant 0 : index
    %c0_0 = arith.constant 0 : index
    %0 = vector.load %arg5[%c0, %c0_0] : memref<32x128xbf16, #tpu.memory_space<vmem>>, vector<32x128xbf16>
    %c0_1 = arith.constant 0 : index
    %c0_2 = arith.constant 0 : index
    %1 = vector.load %arg6[%c0_1, %c0_2] : memref<128x128xbf16, #tpu.memory_space<vmem>>, vector<128x128xbf16>
    %c0_3 = arith.constant 0 : index
    %c0_4 = arith.constant 0 : index
    %2 = vector.load %arg7[%c0_3, %c0_4] : memref<1x128xf32, #tpu.memory_space<vmem>>, vector<1x128xf32>
    %c0_5 = arith.constant 0 : index
    %c0_6 = arith.constant 0 : index
    %c0_7 = arith.constant 0 : index
    %3 = vector.load %arg1[%c0_5, %c0_6, %c0_7] : memref<1x1024x32xbf16, #tpu.memory_space<vmem>>, vector<1x1024x32xbf16>
    %4 = vector.shape_cast %3 : vector<1x1024x32xbf16> to vector<1024x32xbf16>
    %cst = arith.constant dense<0.000000e+00> : vector<1024x128xf32>
    %5 = tpu.matmul %4, %0, %cst {dimension_numbers = #tpu.dot_dimension_numbers<[1], [0], [0], [1], [0, 0, 1, 1], [], []>} : vector<1024x32xbf16>, vector<32x128xbf16>, vector<1024x128xf32> -> vector<1024x128xf32>
    %6 = vector.broadcast %2 : vector<1x128xf32> to vector<1024x128xf32>
    %7 = arith.addf %5, %6 : vector<1024x128xf32>
    %c0_8 = arith.constant 0 : index
    %c0_9 = arith.constant 0 : index
    %c0_10 = arith.constant 0 : index
    %8 = vector.load %arg2[%c0_8, %c0_9, %c0_10] : memref<1x128x1xi32, #tpu.memory_space<vmem>>, vector<1x128x1xi32>
    %9 = vector.shape_cast %8 : vector<1x128x1xi32> to vector<128x1xi32>
    %10 = tpu.iota {dimensions = array<i32: 0>} : vector<8x128x1xi32>
    %11 = vector.shape_cast %9 : vector<128x1xi32> to vector<1x128x1xi32>
    %12 = vector.broadcast %11 : vector<1x128x1xi32> to vector<8x128x1xi32>
    %13 = arith.cmpi slt, %10, %12 : vector<8x128x1xi32>
    %cst_11 = arith.constant 0.000000e+00 : f32
    %14 = vector.broadcast %cst_11 : f32 to vector<128x128xf32>
    %cst_12 = arith.constant -1.000000e+30 : f32
    %15 = vector.broadcast %cst_12 : f32 to vector<128x128xf32>
    %16 = vector.extract_strided_slice %7 {offsets = [0, 0], sizes = [128, 128], strides = [1, 1]} : vector<1024x128xf32> to vector<128x128xf32>
    %17 = arith.truncf %14 : vector<128x128xf32> to vector<128x128xbf16>
    %cst_13 = arith.constant dense<0.000000e+00> : vector<128x128xf32>
    %18 = tpu.matmul %17, %1, %cst_13 {dimension_numbers = #tpu.dot_dimension_numbers<[1], [0], [0], [1], [0, 0, 1, 1], [], []>} : vector<128x128xbf16>, vector<128x128xbf16>, vector<128x128xf32> -> vector<128x128xf32>
    %19 = arith.addf %16, %18 : vector<128x128xf32>
    %20 = math.tanh %19 : vector<128x128xf32>
    %21 = vector.extract_strided_slice %13 {offsets = [0, 0, 0], sizes = [1, 128, 1], strides = [1, 1, 1]} : vector<8x128x1xi1> to vector<1x128x1xi1>
    %22 = vector.shape_cast %21 : vector<1x128x1xi1> to vector<128x1xi1>
    %23 = arith.maximumf %15, %20 : vector<128x128xf32>
    %24 = vector.shape_cast %22 : vector<128x1xi1> to vector<128x1xi1>
    %25 = vector.broadcast %24 : vector<128x1xi1> to vector<128x128xi1>
    %26 = arith.select %25, %23, %15 : vector<128x128xi1>, vector<128x128xf32>
    %27 = vector.shape_cast %22 : vector<128x1xi1> to vector<128x1xi1>
    %28 = vector.broadcast %27 : vector<128x1xi1> to vector<128x128xi1>
    %29 = arith.select %28, %20, %14 : vector<128x128xi1>, vector<128x128xf32>
    %30 = vector.extract_strided_slice %7 {offsets = [128, 0], sizes = [128, 128], strides = [1, 1]} : vector<1024x128xf32> to vector<128x128xf32>
    %31 = arith.truncf %29 : vector<128x128xf32> to vector<128x128xbf16>
    %cst_14 = arith.constant dense<0.000000e+00> : vector<128x128xf32>
    %32 = tpu.matmul %31, %1, %cst_14 {dimension_numbers = #tpu.dot_dimension_numbers<[1], [0], [0], [1], [0, 0, 1, 1], [], []>} : vector<128x128xbf16>, vector<128x128xbf16>, vector<128x128xf32> -> vector<128x128xf32>
    %33 = arith.addf %30, %32 : vector<128x128xf32>
    %34 = math.tanh %33 : vector<128x128xf32>
    %35 = vector.extract_strided_slice %13 {offsets = [1, 0, 0], sizes = [1, 128, 1], strides = [1, 1, 1]} : vector<8x128x1xi1> to vector<1x128x1xi1>
    %36 = vector.shape_cast %35 : vector<1x128x1xi1> to vector<128x1xi1>
    %37 = arith.maximumf %26, %34 : vector<128x128xf32>
    %38 = vector.shape_cast %36 : vector<128x1xi1> to vector<128x1xi1>
    %39 = vector.broadcast %38 : vector<128x1xi1> to vector<128x128xi1>
    %40 = arith.select %39, %37, %26 : vector<128x128xi1>, vector<128x128xf32>
    %41 = vector.shape_cast %36 : vector<128x1xi1> to vector<128x1xi1>
    %42 = vector.broadcast %41 : vector<128x1xi1> to vector<128x128xi1>
    %43 = arith.select %42, %34, %29 : vector<128x128xi1>, vector<128x128xf32>
    %44 = vector.extract_strided_slice %7 {offsets = [256, 0], sizes = [128, 128], strides = [1, 1]} : vector<1024x128xf32> to vector<128x128xf32>
    %45 = arith.truncf %43 : vector<128x128xf32> to vector<128x128xbf16>
    %cst_15 = arith.constant dense<0.000000e+00> : vector<128x128xf32>
    %46 = tpu.matmul %45, %1, %cst_15 {dimension_numbers = #tpu.dot_dimension_numbers<[1], [0], [0], [1], [0, 0, 1, 1], [], []>} : vector<128x128xbf16>, vector<128x128xbf16>, vector<128x128xf32> -> vector<128x128xf32>
    %47 = arith.addf %44, %46 : vector<128x128xf32>
    %48 = math.tanh %47 : vector<128x128xf32>
    %49 = vector.extract_strided_slice %13 {offsets = [2, 0, 0], sizes = [1, 128, 1], strides = [1, 1, 1]} : vector<8x128x1xi1> to vector<1x128x1xi1>
    %50 = vector.shape_cast %49 : vector<1x128x1xi1> to vector<128x1xi1>
    %51 = arith.maximumf %40, %48 : vector<128x128xf32>
    %52 = vector.shape_cast %50 : vector<128x1xi1> to vector<128x1xi1>
    %53 = vector.broadcast %52 : vector<128x1xi1> to vector<128x128xi1>
    %54 = arith.select %53, %51, %40 : vector<128x128xi1>, vector<128x128xf32>
    %55 = vector.shape_cast %50 : vector<128x1xi1> to vector<128x1xi1>
    %56 = vector.broadcast %55 : vector<128x1xi1> to vector<128x128xi1>
    %57 = arith.select %56, %48, %43 : vector<128x128xi1>, vector<128x128xf32>
    %58 = vector.extract_strided_slice %7 {offsets = [384, 0], sizes = [128, 128], strides = [1, 1]} : vector<1024x128xf32> to vector<128x128xf32>
    %59 = arith.truncf %57 : vector<128x128xf32> to vector<128x128xbf16>
    %cst_16 = arith.constant dense<0.000000e+00> : vector<128x128xf32>
    %60 = tpu.matmul %59, %1, %cst_16 {dimension_numbers = #tpu.dot_dimension_numbers<[1], [0], [0], [1], [0, 0, 1, 1], [], []>} : vector<128x128xbf16>, vector<128x128xbf16>, vector<128x128xf32> -> vector<128x128xf32>
    %61 = arith.addf %58, %60 : vector<128x128xf32>
    %62 = math.tanh %61 : vector<128x128xf32>
    %63 = vector.extract_strided_slice %13 {offsets = [3, 0, 0], sizes = [1, 128, 1], strides = [1, 1, 1]} : vector<8x128x1xi1> to vector<1x128x1xi1>
    %64 = vector.shape_cast %63 : vector<1x128x1xi1> to vector<128x1xi1>
    %65 = arith.maximumf %54, %62 : vector<128x128xf32>
    %66 = vector.shape_cast %64 : vector<128x1xi1> to vector<128x1xi1>
    %67 = vector.broadcast %66 : vector<128x1xi1> to vector<128x128xi1>
    %68 = arith.select %67, %65, %54 : vector<128x128xi1>, vector<128x128xf32>
    %69 = vector.shape_cast %64 : vector<128x1xi1> to vector<128x1xi1>
    %70 = vector.broadcast %69 : vector<128x1xi1> to vector<128x128xi1>
    %71 = arith.select %70, %62, %57 : vector<128x128xi1>, vector<128x128xf32>
    %72 = vector.extract_strided_slice %7 {offsets = [512, 0], sizes = [128, 128], strides = [1, 1]} : vector<1024x128xf32> to vector<128x128xf32>
    %73 = arith.truncf %71 : vector<128x128xf32> to vector<128x128xbf16>
    %cst_17 = arith.constant dense<0.000000e+00> : vector<128x128xf32>
    %74 = tpu.matmul %73, %1, %cst_17 {dimension_numbers = #tpu.dot_dimension_numbers<[1], [0], [0], [1], [0, 0, 1, 1], [], []>} : vector<128x128xbf16>, vector<128x128xbf16>, vector<128x128xf32> -> vector<128x128xf32>
    %75 = arith.addf %72, %74 : vector<128x128xf32>
    %76 = math.tanh %75 : vector<128x128xf32>
    %77 = vector.extract_strided_slice %13 {offsets = [4, 0, 0], sizes = [1, 128, 1], strides = [1, 1, 1]} : vector<8x128x1xi1> to vector<1x128x1xi1>
    %78 = vector.shape_cast %77 : vector<1x128x1xi1> to vector<128x1xi1>
    %79 = arith.maximumf %68, %76 : vector<128x128xf32>
    %80 = vector.shape_cast %78 : vector<128x1xi1> to vector<128x1xi1>
    %81 = vector.broadcast %80 : vector<128x1xi1> to vector<128x128xi1>
    %82 = arith.select %81, %79, %68 : vector<128x128xi1>, vector<128x128xf32>
    %83 = vector.shape_cast %78 : vector<128x1xi1> to vector<128x1xi1>
    %84 = vector.broadcast %83 : vector<128x1xi1> to vector<128x128xi1>
    %85 = arith.select %84, %76, %71 : vector<128x128xi1>, vector<128x128xf32>
    %86 = vector.extract_strided_slice %7 {offsets = [640, 0], sizes = [128, 128], strides = [1, 1]} : vector<1024x128xf32> to vector<128x128xf32>
    %87 = arith.truncf %85 : vector<128x128xf32> to vector<128x128xbf16>
    %cst_18 = arith.constant dense<0.000000e+00> : vector<128x128xf32>
    %88 = tpu.matmul %87, %1, %cst_18 {dimension_numbers = #tpu.dot_dimension_numbers<[1], [0], [0], [1], [0, 0, 1, 1], [], []>} : vector<128x128xbf16>, vector<128x128xbf16>, vector<128x128xf32> -> vector<128x128xf32>
    %89 = arith.addf %86, %88 : vector<128x128xf32>
    %90 = math.tanh %89 : vector<128x128xf32>
    %91 = vector.extract_strided_slice %13 {offsets = [5, 0, 0], sizes = [1, 128, 1], strides = [1, 1, 1]} : vector<8x128x1xi1> to vector<1x128x1xi1>
    %92 = vector.shape_cast %91 : vector<1x128x1xi1> to vector<128x1xi1>
    %93 = arith.maximumf %82, %90 : vector<128x128xf32>
    %94 = vector.shape_cast %92 : vector<128x1xi1> to vector<128x1xi1>
    %95 = vector.broadcast %94 : vector<128x1xi1> to vector<128x128xi1>
    %96 = arith.select %95, %93, %82 : vector<128x128xi1>, vector<128x128xf32>
    %97 = vector.shape_cast %92 : vector<128x1xi1> to vector<128x1xi1>
    %98 = vector.broadcast %97 : vector<128x1xi1> to vector<128x128xi1>
    %99 = arith.select %98, %90, %85 : vector<128x128xi1>, vector<128x128xf32>
    %100 = vector.extract_strided_slice %7 {offsets = [768, 0], sizes = [128, 128], strides = [1, 1]} : vector<1024x128xf32> to vector<128x128xf32>
    %101 = arith.truncf %99 : vector<128x128xf32> to vector<128x128xbf16>
    %cst_19 = arith.constant dense<0.000000e+00> : vector<128x128xf32>
    %102 = tpu.matmul %101, %1, %cst_19 {dimension_numbers = #tpu.dot_dimension_numbers<[1], [0], [0], [1], [0, 0, 1, 1], [], []>} : vector<128x128xbf16>, vector<128x128xbf16>, vector<128x128xf32> -> vector<128x128xf32>
    %103 = arith.addf %100, %102 : vector<128x128xf32>
    %104 = math.tanh %103 : vector<128x128xf32>
    %105 = vector.extract_strided_slice %13 {offsets = [6, 0, 0], sizes = [1, 128, 1], strides = [1, 1, 1]} : vector<8x128x1xi1> to vector<1x128x1xi1>
    %106 = vector.shape_cast %105 : vector<1x128x1xi1> to vector<128x1xi1>
    %107 = arith.maximumf %96, %104 : vector<128x128xf32>
    %108 = vector.shape_cast %106 : vector<128x1xi1> to vector<128x1xi1>
    %109 = vector.broadcast %108 : vector<128x1xi1> to vector<128x128xi1>
    %110 = arith.select %109, %107, %96 : vector<128x128xi1>, vector<128x128xf32>
    %111 = vector.shape_cast %106 : vector<128x1xi1> to vector<128x1xi1>
    %112 = vector.broadcast %111 : vector<128x1xi1> to vector<128x128xi1>
    %113 = arith.select %112, %104, %99 : vector<128x128xi1>, vector<128x128xf32>
    %114 = vector.extract_strided_slice %7 {offsets = [896, 0], sizes = [128, 128], strides = [1, 1]} : vector<1024x128xf32> to vector<128x128xf32>
    %115 = arith.truncf %113 : vector<128x128xf32> to vector<128x128xbf16>
    %cst_20 = arith.constant dense<0.000000e+00> : vector<128x128xf32>
    %116 = tpu.matmul %115, %1, %cst_20 {dimension_numbers = #tpu.dot_dimension_numbers<[1], [0], [0], [1], [0, 0, 1, 1], [], []>} : vector<128x128xbf16>, vector<128x128xbf16>, vector<128x128xf32> -> vector<128x128xf32>
    %117 = arith.addf %114, %116 : vector<128x128xf32>
    %118 = math.tanh %117 : vector<128x128xf32>
    %119 = vector.extract_strided_slice %13 {offsets = [7, 0, 0], sizes = [1, 128, 1], strides = [1, 1, 1]} : vector<8x128x1xi1> to vector<1x128x1xi1>
    %120 = vector.shape_cast %119 : vector<1x128x1xi1> to vector<128x1xi1>
    %121 = arith.maximumf %110, %118 : vector<128x128xf32>
    %122 = vector.shape_cast %120 : vector<128x1xi1> to vector<128x1xi1>
    %123 = vector.broadcast %122 : vector<128x1xi1> to vector<128x128xi1>
    %124 = arith.select %123, %121, %110 : vector<128x128xi1>, vector<128x128xf32>
    %125 = vector.extract_strided_slice %124 {offsets = [0, 0], sizes = [64, 128], strides = [1, 1]} : vector<128x128xf32> to vector<64x128xf32>
    %126 = vector.extract_strided_slice %124 {offsets = [64, 0], sizes = [64, 128], strides = [1, 1]} : vector<128x128xf32> to vector<64x128xf32>
    %c0_21 = arith.constant 0 : index
    %c0_22 = arith.constant 0 : index
    %127 = vector.load %arg8[%c0_21, %c0_22] : memref<128x128xbf16, #tpu.memory_space<vmem>>, vector<128x128xbf16>
    %c0_23 = arith.constant 0 : index
    %c0_24 = arith.constant 0 : index
    %128 = vector.load %arg9[%c0_23, %c0_24] : memref<128x128xbf16, #tpu.memory_space<vmem>>, vector<128x128xbf16>
    %c0_25 = arith.constant 0 : index
    %c0_26 = arith.constant 0 : index
    %129 = vector.load %arg10[%c0_25, %c0_26] : memref<128x128xbf16, #tpu.memory_space<vmem>>, vector<128x128xbf16>
    %c0_27 = arith.constant 0 : index
    %c0_28 = arith.constant 0 : index
    %130 = vector.load %arg11[%c0_27, %c0_28] : memref<128x128xbf16, #tpu.memory_space<vmem>>, vector<128x128xbf16>
    %c0_29 = arith.constant 0 : index
    %c0_30 = arith.constant 0 : index
    %131 = vector.load %arg12[%c0_29, %c0_30] : memref<1x128xf32, #tpu.memory_space<vmem>>, vector<1x128xf32>
    %c0_31 = arith.constant 0 : index
    %c0_32 = arith.constant 0 : index
    %132 = vector.load %arg13[%c0_31, %c0_32] : memref<128x128xbf16, #tpu.memory_space<vmem>>, vector<128x128xbf16>
    %c0_33 = arith.constant 0 : index
    %c0_34 = arith.constant 0 : index
    %133 = vector.load %arg14[%c0_33, %c0_34] : memref<1x128xf32, #tpu.memory_space<vmem>>, vector<1x128xf32>
    %134 = arith.subf %125, %126 : vector<64x128xf32>
    %135 = math.absf %134 : vector<64x128xf32>
    %136 = arith.mulf %125, %126 : vector<64x128xf32>
    %137 = arith.truncf %125 : vector<64x128xf32> to vector<64x128xbf16>
    %cst_35 = arith.constant dense<0.000000e+00> : vector<64x128xf32>
    %138 = tpu.matmul %137, %127, %cst_35 {dimension_numbers = #tpu.dot_dimension_numbers<[1], [0], [0], [1], [0, 0, 1, 1], [], []>} : vector<64x128xbf16>, vector<128x128xbf16>, vector<64x128xf32> -> vector<64x128xf32>
    %139 = arith.truncf %126 : vector<64x128xf32> to vector<64x128xbf16>
    %cst_36 = arith.constant dense<0.000000e+00> : vector<64x128xf32>
    %140 = tpu.matmul %139, %128, %cst_36 {dimension_numbers = #tpu.dot_dimension_numbers<[1], [0], [0], [1], [0, 0, 1, 1], [], []>} : vector<64x128xbf16>, vector<128x128xbf16>, vector<64x128xf32> -> vector<64x128xf32>
    %141 = arith.addf %138, %140 : vector<64x128xf32>
    %142 = arith.truncf %135 : vector<64x128xf32> to vector<64x128xbf16>
    %cst_37 = arith.constant dense<0.000000e+00> : vector<64x128xf32>
    %143 = tpu.matmul %142, %129, %cst_37 {dimension_numbers = #tpu.dot_dimension_numbers<[1], [0], [0], [1], [0, 0, 1, 1], [], []>} : vector<64x128xbf16>, vector<128x128xbf16>, vector<64x128xf32> -> vector<64x128xf32>
    %144 = arith.addf %141, %143 : vector<64x128xf32>
    %145 = arith.truncf %136 : vector<64x128xf32> to vector<64x128xbf16>
    %cst_38 = arith.constant dense<0.000000e+00> : vector<64x128xf32>
    %146 = tpu.matmul %145, %130, %cst_38 {dimension_numbers = #tpu.dot_dimension_numbers<[1], [0], [0], [1], [0, 0, 1, 1], [], []>} : vector<64x128xbf16>, vector<128x128xbf16>, vector<64x128xf32> -> vector<64x128xf32>
    %147 = arith.addf %144, %146 : vector<64x128xf32>
    %148 = vector.broadcast %131 : vector<1x128xf32> to vector<64x128xf32>
    %149 = arith.addf %147, %148 : vector<64x128xf32>
    %150 = math.tanh %149 : vector<64x128xf32>
    %151 = arith.truncf %150 : vector<64x128xf32> to vector<64x128xbf16>
    %cst_39 = arith.constant dense<0.000000e+00> : vector<64x128xf32>
    %152 = tpu.matmul %151, %132, %cst_39 {dimension_numbers = #tpu.dot_dimension_numbers<[1], [0], [0], [1], [0, 0, 1, 1], [], []>} : vector<64x128xbf16>, vector<128x128xbf16>, vector<64x128xf32> -> vector<64x128xf32>
    %153 = vector.broadcast %133 : vector<1x128xf32> to vector<64x128xf32>
    %154 = arith.addf %152, %153 : vector<64x128xf32>
    %155 = tpu.iota {dimensions = array<i32: 1>} : vector<64x128xi32>
    %c3_i32 = arith.constant 3 : i32
    %156 = vector.broadcast %c3_i32 : i32 to vector<64x128xi32>
    %157 = arith.cmpi slt, %155, %156 : vector<64x128xi32>
    %cst_40 = arith.constant -1.000000e+30 : f32
    %158 = vector.broadcast %cst_40 : f32 to vector<64x128xf32>
    %159 = arith.select %157, %154, %158 : vector<64x128xi1>, vector<64x128xf32>
    %c0_41 = arith.constant 0 : index
    %c0_42 = arith.constant 0 : index
    %c0_43 = arith.constant 0 : index
    %160 = vector.load %arg3[%c0_41, %c0_42, %c0_43] : memref<1x64x1xi32, #tpu.memory_space<vmem>>, vector<1x64x1xi32>
    %161 = vector.shape_cast %160 : vector<1x64x1xi32> to vector<64x1xi32>
    %cst_44 = arith.constant dense<0xFF800000> : vector<64xf32>
    %162 = vector.multi_reduction <maximumf>, %159, %cst_44 [1] : vector<64x128xf32> to vector<64xf32>
    %163 = vector.shape_cast %162 : vector<64xf32> to vector<64x1xf32>
    %164 = vector.broadcast %163 : vector<64x1xf32> to vector<64x128xf32>
    %165 = arith.subf %159, %164 : vector<64x128xf32>
    %166 = math.exp %165 : vector<64x128xf32>
    %cst_45 = arith.constant 0.000000e+00 : f32
    %167 = vector.broadcast %cst_45 : f32 to vector<64x128xf32>
    %168 = arith.select %157, %166, %167 : vector<64x128xi1>, vector<64x128xf32>
    %cst_46 = arith.constant dense<0.000000e+00> : vector<64xf32>
    %169 = vector.multi_reduction <add>, %168, %cst_46 [1] : vector<64x128xf32> to vector<64xf32>
    %170 = vector.shape_cast %169 : vector<64xf32> to vector<64x1xf32>
    %171 = tpu.reciprocal %170 {approx = true} : vector<64x1xf32> -> vector<64x1xf32>
    %172 = vector.broadcast %171 : vector<64x1xf32> to vector<64x128xf32>
    %173 = arith.mulf %168, %172 : vector<64x128xf32>
    %174 = math.log %170 : vector<64x1xf32>
    %175 = arith.addf %163, %174 : vector<64x1xf32>
    %176 = vector.broadcast %161 : vector<64x1xi32> to vector<64x128xi32>
    %177 = arith.cmpi eq, %155, %176 : vector<64x128xi32>
    %178 = arith.extui %177 : vector<64x128xi1> to vector<64x128xi32>
    %179 = arith.sitofp %178 : vector<64x128xi32> to vector<64x128xf32>
    %180 = arith.mulf %159, %179 : vector<64x128xf32>
    %cst_47 = arith.constant dense<0.000000e+00> : vector<64xf32>
    %181 = vector.multi_reduction <add>, %180, %cst_47 [1] : vector<64x128xf32> to vector<64xf32>
    %182 = vector.shape_cast %181 : vector<64xf32> to vector<64x1xf32>
    %183 = arith.subf %175, %182 : vector<64x1xf32>
    %184 = vector.broadcast %163 : vector<64x1xf32> to vector<64x128xf32>
    %185 = arith.cmpf oeq, %159, %184 : vector<64x128xf32>
    %c128_i32 = arith.constant 128 : i32
    %186 = vector.broadcast %c128_i32 : i32 to vector<64x128xi32>
    %187 = arith.select %185, %155, %186 : vector<64x128xi1>, vector<64x128xi32>
    %cst_48 = arith.constant dense<2147483647> : vector<64xi32>
    %188 = vector.multi_reduction <minsi>, %187, %cst_48 [1] : vector<64x128xi32> to vector<64xi32>
    %189 = vector.shape_cast %188 : vector<64xi32> to vector<64x1xi32>
    %c0_49 = arith.constant 0 : index
    %c0_50 = arith.constant 0 : index
    %c0_51 = arith.constant 0 : index
    %190 = vector.load %arg4[%c0_49, %c0_50, %c0_51] : memref<1x64x1xf32, #tpu.memory_space<vmem>>, vector<1x64x1xf32>
    %191 = vector.shape_cast %190 : vector<1x64x1xf32> to vector<64x1xf32>
    %192 = arith.negf %191 : vector<64x1xf32>
    %193 = math.exp %192 : vector<64x1xf32>
    %cst_52 = arith.constant 1.000000e+00 : f32
    %194 = vector.broadcast %cst_52 : f32 to vector<64x1xf32>
    %195 = arith.addf %194, %193 : vector<64x1xf32>
    %196 = arith.divf %194, %195 : vector<64x1xf32>
    %197 = arith.mulf %196, %183 : vector<64x1xf32>
    %198 = arith.cmpi eq, %189, %161 : vector<64x1xi32>
    %199 = arith.extui %198 : vector<64x1xi1> to vector<64x1xi32>
    %200 = arith.sitofp %199 : vector<64x1xi32> to vector<64x1xf32>
    %c3_i32_53 = arith.constant 3 : i32
    %201 = vector.broadcast %c3_i32_53 : i32 to vector<64x128xi32>
    %202 = arith.cmpi eq, %155, %201 : vector<64x128xi32>
    %203 = arith.sitofp %189 : vector<64x1xi32> to vector<64x1xf32>
    %204 = vector.shape_cast %203 : vector<64x1xf32> to vector<64x1xf32>
    %205 = vector.broadcast %204 : vector<64x1xf32> to vector<64x128xf32>
    %206 = arith.select %202, %205, %173 : vector<64x128xi1>, vector<64x128xf32>
    %c4_i32 = arith.constant 4 : i32
    %207 = vector.broadcast %c4_i32 : i32 to vector<64x128xi32>
    %208 = arith.cmpi eq, %155, %207 : vector<64x128xi32>
    %209 = vector.shape_cast %197 : vector<64x1xf32> to vector<64x1xf32>
    %210 = vector.broadcast %209 : vector<64x1xf32> to vector<64x128xf32>
    %211 = arith.select %208, %210, %206 : vector<64x128xi1>, vector<64x128xf32>
    %c5_i32 = arith.constant 5 : i32
    %212 = vector.broadcast %c5_i32 : i32 to vector<64x128xi32>
    %213 = arith.cmpi eq, %155, %212 : vector<64x128xi32>
    %214 = vector.shape_cast %200 : vector<64x1xf32> to vector<64x1xf32>
    %215 = vector.broadcast %214 : vector<64x1xf32> to vector<64x128xf32>
    %216 = arith.select %213, %215, %211 : vector<64x128xi1>, vector<64x128xf32>
    %c0_54 = arith.constant 0 : index
    %c0_55 = arith.constant 0 : index
    %c0_56 = arith.constant 0 : index
    %217 = vector.load %arg15[%c0_54, %c0_55, %c0_56] : memref<1x64x128xf32, #tpu.memory_space<vmem>>, vector<1x64x128xf32>
    %218 = vector.shape_cast %217 : vector<1x64x128xf32> to vector<64x128xf32>
    %219 = vector.shape_cast %216 : vector<64x128xf32> to vector<1x64x128xf32>
    tpu.vector_store %arg15[%c0_54, %c0_55, %c0_56], %219 {strides = array<i32>} : memref<1x64x128xf32, #tpu.memory_space<vmem>>, vector<1x64x128xf32>,
    return
  }
  func.func @transform_0(%arg0: i32) -> (i32, i32, i32) {
    %c0_i32 = arith.constant 0 : i32
    %c0_i32_0 = arith.constant 0 : i32
    %c0_i32_1 = arith.constant 0 : i32
    return %arg0, %c0_i32, %c0_i32_0 : i32, i32, i32
  }
  func.func @transform_1(%arg0: i32) -> (i32, i32, i32) {
    %c0_i32 = arith.constant 0 : i32
    %c0_i32_0 = arith.constant 0 : i32
    %c0_i32_1 = arith.constant 0 : i32
    return %arg0, %c0_i32, %c0_i32_0 : i32, i32, i32
  }
  func.func @transform_2(%arg0: i32) -> (i32, i32, i32) {
    %c0_i32 = arith.constant 0 : i32
    %c0_i32_0 = arith.constant 0 : i32
    %c0_i32_1 = arith.constant 0 : i32
    return %arg0, %c0_i32, %c0_i32_0 : i32, i32, i32
  }
  func.func @transform_3(%arg0: i32) -> (i32, i32, i32) {
    %c0_i32 = arith.constant 0 : i32
    %c0_i32_0 = arith.constant 0 : i32
    %c0_i32_1 = arith.constant 0 : i32
    return %arg0, %c0_i32, %c0_i32_0 : i32, i32, i32
  }
  func.func @transform_4(%arg0: i32) -> (i32, i32) {
    %c0_i32 = arith.constant 0 : i32
    %c0_i32_0 = arith.constant 0 : i32
    %c0_i32_1 = arith.constant 0 : i32
    return %c0_i32, %c0_i32_0 : i32, i32
  }
  func.func @transform_5(%arg0: i32) -> (i32, i32) {
    %c0_i32 = arith.constant 0 : i32
    %c0_i32_0 = arith.constant 0 : i32
    %c0_i32_1 = arith.constant 0 : i32
    return %c0_i32, %c0_i32_0 : i32, i32
  }
  func.func @transform_6(%arg0: i32) -> (i32, i32) {
    %c0_i32 = arith.constant 0 : i32
    %c0_i32_0 = arith.constant 0 : i32
    %c0_i32_1 = arith.constant 0 : i32
    return %c0_i32, %c0_i32_0 : i32, i32
  }
  func.func @transform_7(%arg0: i32) -> (i32, i32) {
    %c0_i32 = arith.constant 0 : i32
    %c0_i32_0 = arith.constant 0 : i32
    %c0_i32_1 = arith.constant 0 : i32
    return %c0_i32, %c0_i32_0 : i32, i32
  }
  func.func @transform_8(%arg0: i32) -> (i32, i32) {
    %c0_i32 = arith.constant 0 : i32
    %c0_i32_0 = arith.constant 0 : i32
    %c0_i32_1 = arith.constant 0 : i32
    return %c0_i32, %c0_i32_0 : i32, i32
  }
  func.func @transform_9(%arg0: i32) -> (i32, i32) {
    %c0_i32 = arith.constant 0 : i32
    %c0_i32_0 = arith.constant 0 : i32
    %c0_i32_1 = arith.constant 0 : i32
    return %c0_i32, %c0_i32_0 : i32, i32
  }
  func.func @transform_10(%arg0: i32) -> (i32, i32) {
    %c0_i32 = arith.constant 0 : i32
    %c0_i32_0 = arith.constant 0 : i32
    %c0_i32_1 = arith.constant 0 : i32
    return %c0_i32, %c0_i32_0 : i32, i32
  }
  func.func @transform_11(%arg0: i32) -> (i32, i32) {
    %c0_i32 = arith.constant 0 : i32
    %c0_i32_0 = arith.constant 0 : i32
    %c0_i32_1 = arith.constant 0 : i32
    return %c0_i32, %c0_i32_0 : i32, i32
  }
  func.func @transform_12(%arg0: i32) -> (i32, i32) {
    %c0_i32 = arith.constant 0 : i32
    %c0_i32_0 = arith.constant 0 : i32
    %c0_i32_1 = arith.constant 0 : i32
    return %c0_i32, %c0_i32_0 : i32, i32
  }
  func.func @transform_13(%arg0: i32) -> (i32, i32) {
    %c0_i32 = arith.constant 0 : i32
    %c0_i32_0 = arith.constant 0 : i32
    %c0_i32_1 = arith.constant 0 : i32
    return %c0_i32, %c0_i32_0 : i32, i32
  }
  func.func @transform_14(%arg0: i32) -> (i32, i32, i32) {
    %c0_i32 = arith.constant 0 : i32
    %c0_i32_0 = arith.constant 0 : i32
    %c0_i32_1 = arith.constant 0 : i32
    return %arg0, %c0_i32, %c0_i32_0 : i32, i32, i32
  }
}

</mosaic_0001>

<llo_original>
// kernel: learner_forward.1
$region0: #{learner_forward.1}
  #allocation0 [shape = 'u32[]', space=smem, size = 0x4, offset = 0x4, fixed_abs, tag = 'smem constant byte address 0x4 - core index']
  #allocation1 [shape = 'u32[144,128]{1,0:T(1,128)}', space=vmem, size = 0x12000, scoped, tag = 'internal scratch']
  %s0 = inlined_call_operand.vmem [shape: bf16[4,1024,32], index: 0, kind: input, shape index: {}]
  %s1 = inlined_call_operand.vmem [shape: s32[4,128,1], index: 1, kind: input, shape index: {}]
  %s2 = inlined_call_operand.vmem [shape: s32[4,64,1], index: 2, kind: input, shape index: {}]
  %s3 = inlined_call_operand.vmem [shape: f32[4,64,1], index: 3, kind: input, shape index: {}]
  %s4 = inlined_call_operand.vmem [shape: bf16[32,128], index: 4, kind: input, shape index: {}]
  %s5 = inlined_call_operand.vmem [shape: bf16[128,128], index: 5, kind: input, shape index: {}]
  %s6 = inlined_call_operand.vmem [shape: f32[1,128], index: 6, kind: input, shape index: {}]
  %s7 = inlined_call_operand.vmem [shape: bf16[128,128], index: 7, kind: input, shape index: {}]
  %s8 = inlined_call_operand.vmem [shape: bf16[128,128], index: 8, kind: input, shape index: {}]
  %s9 = inlined_call_operand.vmem [shape: bf16[128,128], index: 9, kind: input, shape index: {}]
  %s10 = inlined_call_operand.vmem [shape: bf16[128,128], index: 10, kind: input, shape index: {}]
  %s11 = inlined_call_operand.vmem [shape: f32[1,128], index: 11, kind: input, shape index: {}]
  %s12 = inlined_call_operand.vmem [shape: bf16[128,128], index: 12, kind: input, shape index: {}]
  %s13 = inlined_call_operand.vmem [shape: f32[1,128], index: 13, kind: input, shape index: {}]
  %s14 = inlined_call_operand.vmem [shape: f32[4,64,128], index: 14, kind: output, shape index: {}]
  %s15 = sld [smem:[#allocation0]]
  $region89: #{learner_forward.1} parent=0
    _
  %s17 = ssub.s32 1, %s15
  %s18 = scalar_select 0, %s17, %s15
  loop: start=0, step=1, limit=6
  $region2: #{learner_forward.1} parent=0 // loop_pre_header
    _
  $region3: #{learner_forward.1} parent=0 // loop_header
    %s20 = sphi 0, %s24
    %p21 = scmp.ge.s32.totalorder %s20, 6
    %s30 = sphi 0, %s32
    %s33 = sphi 0, %s30
    %s34 = sphi 0, %s33
    %s50 = sphi 0, %s34
    %s56 = sphi 0, %s58
    %s59 = sphi 0, %s56
    %s60 = sphi 0, %s59
    %s76 = sphi 0, %s60
    %s82 = sphi 0, %s84
    %s85 = sphi 0, %s82
    %s86 = sphi 0, %s85
    %s102 = sphi 0, %s86
    %s108 = sphi 0, %s110
    %s111 = sphi 0, %s108
    %s112 = sphi 0, %s111
    %s128 = sphi 0, %s112
    %s132 = sphi 0, %s132
    %s134 = sphi 0, %s132
    %s135 = sphi 0, %s134
    %s149 = sphi 0, %s135
    %s153 = sphi 0, %s153
    %s155 = sphi 0, %s153
    %s156 = sphi 0, %s155
    %s170 = sphi 0, %s156
    %s174 = sphi 0, %s174
    %s176 = sphi 0, %s174
    %s177 = sphi 0, %s176
    %s191 = sphi 0, %s177
    %s195 = sphi 0, %s195
    %s197 = sphi 0, %s195
    %s198 = sphi 0, %s197
    %s212 = sphi 0, %s198
    %s216 = sphi 0, %s216
    %s218 = sphi 0, %s216
    %s219 = sphi 0, %s218
    %s233 = sphi 0, %s219
    %s237 = sphi 0, %s237
    %s239 = sphi 0, %s237
    %s240 = sphi 0, %s239
    %s254 = sphi 0, %s240
    %s258 = sphi 0, %s258
    %s260 = sphi 0, %s258
    %s261 = sphi 0, %s260
    %s275 = sphi 0, %s261
    %s279 = sphi 0, %s279
    %s281 = sphi 0, %s279
    %s282 = sphi 0, %s281
    %s296 = sphi 0, %s282
    %s300 = sphi 0, %s300
    %s302 = sphi 0, %s300
    %s303 = sphi 0, %s302
    %s317 = sphi 0, %s303
    %s321 = sphi 0, %s321
    %s323 = sphi 0, %s321
    %s324 = sphi 0, %s323
    %s338 = sphi 0, %s324
    %s344 = sphi 0, %s346
    %s347 = sphi 0, %s344
    %s348 = sphi 0, %s347
    %s364 = sphi 0, %s348
  $region4: #{learner_forward.1} parent=0 // loop_header_branch
    %23 = sbr.rel (%p21) target = $region8
  $region5: #{learner_forward.1} parent=0 // loop_body
    %s25 = ssub.s32 %s20, 1
    %s26 = ssub.s32 %s20, 2
    %s27 = sadd.s32 %s20, 1
    %s28 = ssub.s32 %s20, %s27
    %p29 = scmp.eq.s32.totalorder %s28, 0
    %s31 = sadd.s32 %s30, 1
    %s32 = scalar_select %p29, %s30, %s31
    %p35 = pneg %p29
    %p36 = scmp.eq.s32.totalorder %s20, 3
    %p37 = por %p35, %p36
    %p38 = scmp.ne.s32.totalorder %s30, %s33
    %p39 = scmp.eq.s32.totalorder %s20, 0
    %p40 = por %p38, %p39
    %p41 = scmp.ne.s32.totalorder %s30, %s33
    %p42 = scmp.eq.s32.totalorder %s25, 3
    %p43 = por %p41, %p42
    %p44 = scmp.ne.s32.totalorder %s33, %s34
    %p45 = scmp.eq.s32.totalorder %s25, 0
    %p46 = por %p44, %p45
    %p47 = scmp.ne.s32.totalorder %s33, %s34
    %p48 = scmp.eq.s32.totalorder %s26, 3
    %p49 = por %p47, %p48
    %p51 = scmp.ne.s32.totalorder %s34, %s50
    %p52 = scmp.eq.s32.totalorder %s26, 0
    %p53 = por %p51, %p52
    %s54 = ssub.s32 %s20, %s27
    %p55 = scmp.eq.s32.totalorder %s54, 0
    %s57 = sadd.s32 %s56, 1
    %s58 = scalar_select %p55, %s56, %s57
    %p61 = pneg %p55
    %p62 = scmp.eq.s32.totalorder %s20, 3
    %p63 = por %p61, %p62
    %p64 = scmp.ne.s32.totalorder %s56, %s59
    %p65 = scmp.eq.s32.totalorder %s20, 0
    %p66 = por %p64, %p65
    %p67 = scmp.ne.s32.totalorder %s56, %s59
    %p68 = scmp.eq.s32.totalorder %s25, 3
    %p69 = por %p67, %p68
    %p70 = scmp.ne.s32.totalorder %s59, %s60
    %p71 = scmp.eq.s32.totalorder %s25, 0
    %p72 = por %p70, %p71
    %p73 = scmp.ne.s32.totalorder %s59, %s60
    %p74 = scmp.eq.s32.totalorder %s26, 3
    %p75 = por %p73, %p74
    %p77 = scmp.ne.s32.totalorder %s60, %s76
    %p78 = scmp.eq.s32.totalorder %s26, 0
    %p79 = por %p77, %p78
    %s80 = ssub.s32 %s20, %s27
    %p81 = scmp.eq.s32.totalorder %s80, 0
    %s83 = sadd.s32 %s82, 1
    %s84 = scalar_select %p81, %s82, %s83
    %p87 = pneg %p81
    %p88 = scmp.eq.s32.totalorder %s20, 3
    %p89 = por %p87, %p88
    %p90 = scmp.ne.s32.totalorder %s82, %s85
    %p91 = scmp.eq.s32.totalorder %s20, 0
    %p92 = por %p90, %p91
    %p93 = scmp.ne.s32.totalorder %s82, %s85
    %p94 = scmp.eq.s32.totalorder %s25, 3
    %p95 = por %p93, %p94
    %p96 = scmp.ne.s32.totalorder %s85, %s86
    %p97 = scmp.eq.s32.totalorder %s25, 0
    %p98 = por %p96, %p97
    %p99 = scmp.ne.s32.totalorder %s85, %s86
    %p100 = scmp.eq.s32.totalorder %s26, 3
    %p101 = por %p99, %p100
    %p103 = scmp.ne.s32.totalorder %s86, %s102
    %p104 = scmp.eq.s32.totalorder %s26, 0
    %p105 = por %p103, %p104
    %s106 = ssub.s32 %s20, %s27
    %p107 = scmp.eq.s32.totalorder %s106, 0
    %s109 = sadd.s32 %s108, 1
    %s110 = scalar_select %p107, %s108, %s109
    %p113 = pneg %p107
    %p114 = scmp.eq.s32.totalorder %s20, 3
    %p115 = por %p113, %p114
    %p116 = scmp.ne.s32.totalorder %s108, %s111
    %p117 = scmp.eq.s32.totalorder %s20, 0
    %p118 = por %p116, %p117
    %p119 = scmp.ne.s32.totalorder %s108, %s111
    %p120 = scmp.eq.s32.totalorder %s25, 3
    %p121 = por %p119, %p120
    %p122 = scmp.ne.s32.totalorder %s111, %s112
    %p123 = scmp.eq.s32.totalorder %s25, 0
    %p124 = por %p122, %p123
    %p125 = scmp.ne.s32.totalorder %s111, %s112
    %p126 = scmp.eq.s32.totalorder %s26, 3
    %p127 = por %p125, %p126
    %p129 = scmp.ne.s32.totalorder %s112, %s128
    %p130 = scmp.eq.s32.totalorder %s26, 0
    %p131 = por %p129, %p130
    %s133 = sadd.s32 %s132, 1
    %p136 = scmp.eq.s32.totalorder %s20, 3
    %p137 = scmp.ne.s32.totalorder %s132, %s134
    %p138 = scmp.eq.s32.totalorder %s20, 0
    %p139 = por %p137, %p138
    %p140 = scmp.ne.s32.totalorder %s132, %s134
    %p141 = scmp.eq.s32.totalorder %s25, 3
    %p142 = por %p140, %p141
    %p143 = scmp.ne.s32.totalorder %s134, %s135
    %p144 = scmp.eq.s32.totalorder %s25, 0
    %p145 = por %p143, %p144
    %p146 = scmp.ne.s32.totalorder %s134, %s135
    %p147 = scmp.eq.s32.totalorder %s26, 3
    %p148 = por %p146, %p147
    %p150 = scmp.ne.s32.totalorder %s135, %s149
    %p151 = scmp.eq.s32.totalorder %s26, 0
    %p152 = por %p150, %p151
    %s154 = sadd.s32 %s153, 1
    %p157 = scmp.eq.s32.totalorder %s20, 3
    %p158 = scmp.ne.s32.totalorder %s153, %s155
    %p159 = scmp.eq.s32.totalorder %s20, 0
    %p160 = por %p158, %p159
    %p161 = scmp.ne.s32.totalorder %s153, %s155
    %p162 = scmp.eq.s32.totalorder %s25, 3
    %p163 = por %p161, %p162
    %p164 = scmp.ne.s32.totalorder %s155, %s156
    %p165 = scmp.eq.s32.totalorder %s25, 0
    %p166 = por %p164, %p165
    %p167 = scmp.ne.s32.totalorder %s155, %s156
    %p168 = scmp.eq.s32.totalorder %s26, 3
    %p169 = por %p167, %p168
    %p171 = scmp.ne.s32.totalorder %s156, %s170
    %p172 = scmp.eq.s32.totalorder %s26, 0
    %p173 = por %p171, %p172
    %s175 = sadd.s32 %s174, 1
    %p178 = scmp.eq.s32.totalorder %s20, 3
    %p179 = scmp.ne.s32.totalorder %s174, %s176
    %p180 = scmp.eq.s32.totalorder %s20, 0
    %p181 = por %p179, %p180
    %p182 = scmp.ne.s32.totalorder %s174, %s176
    %p183 = scmp.eq.s32.totalorder %s25, 3
    %p184 = por %p182, %p183
    %p185 = scmp.ne.s32.totalorder %s176, %s177
    %p186 = scmp.eq.s32.totalorder %s25, 0
    %p187 = por %p185, %p186
    %p188 = scmp.ne.s32.totalorder %s176, %s177
    %p189 = scmp.eq.s32.totalorder %s26, 3
    %p190 = por %p188, %p189
    %p192 = scmp.ne.s32.totalorder %s177, %s191
    %p193 = scmp.eq.s32.totalorder %s26, 0
    %p194 = por %p192, %p193
    %s196 = sadd.s32 %s195, 1
    %p199 = scmp.eq.s32.totalorder %s20, 3
    %p200 = scmp.ne.s32.totalorder %s195, %s197
    %p201 = scmp.eq.s32.totalorder %s20, 0
    %p202 = por %p200, %p201
    %p203 = scmp.ne.s32.totalorder %s195, %s197
    %p204 = scmp.eq.s32.totalorder %s25, 3
    %p205 = por %p203, %p204
    %p206 = scmp.ne.s32.totalorder %s197, %s198
    %p207 = scmp.eq.s32.totalorder %s25, 0
    %p208 = por %p206, %p207
    %p209 = scmp.ne.s32.totalorder %s197, %s198
    %p210 = scmp.eq.s32.totalorder %s26, 3
    %p211 = por %p209, %p210
    %p213 = scmp.ne.s32.totalorder %s198, %s212
    %p214 = scmp.eq.s32.totalorder %s26, 0
    %p215 = por %p213, %p214
    %s217 = sadd.s32 %s216, 1
    %p220 = scmp.eq.s32.totalorder %s20, 3
    %p221 = scmp.ne.s32.totalorder %s216, %s218
    %p222 = scmp.eq.s32.totalorder %s20, 0
    %p223 = por %p221, %p222
    %p224 = scmp.ne.s32.totalorder %s216, %s218
    %p225 = scmp.eq.s32.totalorder %s25, 3
    %p226 = por %p224, %p225
    %p227 = scmp.ne.s32.totalorder %s218, %s219
    %p228 = scmp.eq.s32.totalorder %s25, 0
    %p229 = por %p227, %p228
    %p230 = scmp.ne.s32.totalorder %s218, %s219
    %p231 = scmp.eq.s32.totalorder %s26, 3
    %p232 = por %p230, %p231
    %p234 = scmp.ne.s32.totalorder %s219, %s233
    %p235 = scmp.eq.s32.totalorder %s26, 0
    %p236 = por %p234, %p235
    %s238 = sadd.s32 %s237, 1
    %p241 = scmp.eq.s32.totalorder %s20, 3
    %p242 = scmp.ne.s32.totalorder %s237, %s239
    %p243 = scmp.eq.s32.totalorder %s20, 0
    %p244 = por %p242, %p243
    %p245 = scmp.ne.s32.totalorder %s237, %s239
    %p246 = scmp.eq.s32.totalorder %s25, 3
    %p247 = por %p245, %p246
    %p248 = scmp.ne.s32.totalorder %s239, %s240
    %p249 = scmp.eq.s32.totalorder %s25, 0
    %p250 = por %p248, %p249
    %p251 = scmp.ne.s32.totalorder %s239, %s240
    %p252 = scmp.eq.s32.totalorder %s26, 3
    %p253 = por %p251, %p252
    %p255 = scmp.ne.s32.totalorder %s240, %s254
    %p256 = scmp.eq.s32.totalorder %s26, 0
    %p257 = por %p255, %p256
    %s259 = sadd.s32 %s258, 1
    %p262 = scmp.eq.s32.totalorder %s20, 3
    %p263 = scmp.ne.s32.totalorder %s258, %s260
    %p264 = scmp.eq.s32.totalorder %s20, 0
    %p265 = por %p263, %p264
    %p266 = scmp.ne.s32.totalorder %s258, %s260
    %p267 = scmp.eq.s32.totalorder %s25, 3
    %p268 = por %p266, %p267
    %p269 = scmp.ne.s32.totalorder %s260, %s261
    %p270 = scmp.eq.s32.totalorder %s25, 0
    %p271 = por %p269, %p270
    %p272 = scmp.ne.s32.totalorder %s260, %s261
    %p273 = scmp.eq.s32.totalorder %s26, 3
    %p274 = por %p272, %p273
    %p276 = scmp.ne.s32.totalorder %s261, %s275
    %p277 = scmp.eq.s32.totalorder %s26, 0
    %p278 = por %p276, %p277
    %s280 = sadd.s32 %s279, 1
    %p283 = scmp.eq.s32.totalorder %s20, 3
    %p284 = scmp.ne.s32.totalorder %s279, %s281
    %p285 = scmp.eq.s32.totalorder %s20, 0
    %p286 = por %p284, %p285
    %p287 = scmp.ne.s32.totalorder %s279, %s281
    %p288 = scmp.eq.s32.totalorder %s25, 3
    %p289 = por %p287, %p288
    %p290 = scmp.ne.s32.totalorder %s281, %s282
    %p291 = scmp.eq.s32.totalorder %s25, 0
    %p292 = por %p290, %p291
    %p293 = scmp.ne.s32.totalorder %s281, %s282
    %p294 = scmp.eq.s32.totalorder %s26, 3
    %p295 = por %p293, %p294
    %p297 = scmp.ne.s32.totalorder %s282, %s296
    %p298 = scmp.eq.s32.totalorder %s26, 0
    %p299 = por %p297, %p298
    %s301 = sadd.s32 %s300, 1
    %p304 = scmp.eq.s32.totalorder %s20, 3
    %p305 = scmp.ne.s32.totalorder %s300, %s302
    %p306 = scmp.eq.s32.totalorder %s20, 0
    %p307 = por %p305, %p306
    %p308 = scmp.ne.s32.totalorder %s300, %s302
    %p309 = scmp.eq.s32.totalorder %s25, 3
    %p310 = por %p308, %p309
    %p311 = scmp.ne.s32.totalorder %s302, %s303
    %p312 = scmp.eq.s32.totalorder %s25, 0
    %p313 = por %p311, %p312
    %p314 = scmp.ne.s32.totalorder %s302, %s303
    %p315 = scmp.eq.s32.totalorder %s26, 3
    %p316 = por %p314, %p315
    %p318 = scmp.ne.s32.totalorder %s303, %s317
    %p319 = scmp.eq.s32.totalorder %s26, 0
    %p320 = por %p318, %p319
    %s322 = sadd.s32 %s321, 1
    %p325 = scmp.eq.s32.totalorder %s20, 3
    %p326 = scmp.ne.s32.totalorder %s321, %s323
    %p327 = scmp.eq.s32.totalorder %s20, 0
    %p328 = por %p326, %p327
    %p329 = scmp.ne.s32.totalorder %s321, %s323
    %p330 = scmp.eq.s32.totalorder %s25, 3
    %p331 = por %p329, %p330
    %p332 = scmp.ne.s32.totalorder %s323, %s324
    %p333 = scmp.eq.s32.totalorder %s25, 0
    %p334 = por %p332, %p333
    %p335 = scmp.ne.s32.totalorder %s323, %s324
    %p336 = scmp.eq.s32.totalorder %s26, 3
    %p337 = por %p335, %p336
    %p339 = scmp.ne.s32.totalorder %s324, %s338
    %p340 = scmp.eq.s32.totalorder %s26, 0
    %p341 = por %p339, %p340
    %s342 = ssub.s32 %s20, %s27
    %p343 = scmp.eq.s32.totalorder %s342, 0
    %s345 = sadd.s32 %s344, 1
    %s346 = scalar_select %p343, %s344, %s345
    %p349 = pneg %p343
    %p350 = scmp.eq.s32.totalorder %s20, 3
    %p351 = por %p349, %p350
    %p352 = scmp.ne.s32.totalorder %s344, %s347
    %p353 = scmp.eq.s32.totalorder %s20, 0
    %p354 = por %p352, %p353
    %p355 = scmp.ne.s32.totalorder %s344, %s347
    %p356 = scmp.eq.s32.totalorder %s25, 3
    %p357 = por %p355, %p356
    %p358 = scmp.ne.s32.totalorder %s347, %s348
    %p359 = scmp.eq.s32.totalorder %s25, 0
    %p360 = por %p358, %p359
    %p361 = scmp.ne.s32.totalorder %s347, %s348
    %p362 = scmp.eq.s32.totalorder %s26, 3
    %p363 = por %p361, %p362
    %p365 = scmp.ne.s32.totalorder %s348, %s364
    %p366 = scmp.eq.s32.totalorder %s26, 0
    %p367 = por %p365, %p366
    %p368 = scmp.le.s32.totalorder 1, %s20
    %p369 = scmp.lt.s32.totalorder %s20, 5
    %p370 = pnand %p368, %p369
    %p371 = pneg %p370
    // Predicated region
    $region9: #{learner_forward.1} parent=5 // pred_check
      _
    $region10: #{learner_forward.1} parent=5 // pred_check_branch
      %373 = sbr.rel (%p370) target = $region12
    $region11: #{learner_forward.1} parent=5 // pred_region
      %s374 = ssub.s32 %s20, 1
      // Predicated region
      $region13: #{learner_forward.1} parent=11 // pred_check
        %p375 = pneg %p145
      $region14: #{learner_forward.1} parent=11 // pred_check_branch
        %377 = sbr.rel (%p375) target = $region16
      $region15: #{learner_forward.1} parent=11 // pred_region
        _
      $region16: #{learner_forward.1} parent=11 // pred_fallthru
        _
      // Predicated region
      $region17: #{learner_forward.1} parent=11 // pred_check
        %p378 = pneg %p166
      $region18: #{learner_forward.1} parent=11 // pred_check_branch
        %380 = sbr.rel (%p378) target = $region20
      $region19: #{learner_forward.1} parent=11 // pred_region
        _
      $region20: #{learner_forward.1} parent=11 // pred_fallthru
        _
      // Predicated region
      $region21: #{learner_forward.1} parent=11 // pred_check
        %p381 = pneg %p187
      $region22: #{learner_forward.1} parent=11 // pred_check_branch
        %383 = sbr.rel (%p381) target = $region24
      $region23: #{learner_forward.1} parent=11 // pred_region
        _
      $region24: #{learner_forward.1} parent=11 // pred_fallthru
        _
      // Predicated region
      $region25: #{learner_forward.1} parent=11 // pred_check
        %p384 = pneg %p208
      $region26: #{learner_forward.1} parent=11 // pred_check_branch
        %386 = sbr.rel (%p384) target = $region28
      $region27: #{learner_forward.1} parent=11 // pred_region
        _
      $region28: #{learner_forward.1} parent=11 // pred_fallthru
        _
      // Predicated region
      $region29: #{learner_forward.1} parent=11 // pred_check
        %p387 = pneg %p229
      $region30: #{learner_forward.1} parent=11 // pred_check_branch
        %389 = sbr.rel (%p387) target = $region32
      $region31: #{learner_forward.1} parent=11 // pred_region
        _
      $region32: #{learner_forward.1} parent=11 // pred_fallthru
        _
      // Predicated region
      $region33: #{learner_forward.1} parent=11 // pred_check
        %p390 = pneg %p250
      $region34: #{learner_forward.1} parent=11 // pred_check_branch
        %392 = sbr.rel (%p390) target = $region36
      $region35: #{learner_forward.1} parent=11 // pred_region
        _
      $region36: #{learner_forward.1} parent=11 // pred_fallthru
        _
      // Predicated region
      $region37: #{learner_forward.1} parent=11 // pred_check
        %p393 = pneg %p271
      $region38: #{learner_forward.1} parent=11 // pred_check_branch
        %395 = sbr.rel (%p393) target = $region40
      $region39: #{learner_forward.1} parent=11 // pred_region
        _
      $region40: #{learner_forward.1} parent=11 // pred_fallthru
        _
      // Predicated region
      $region41: #{learner_forward.1} parent=11 // pred_check
        %p396 = pneg %p292
      $region42: #{learner_forward.1} parent=11 // pred_check_branch
        %398 = sbr.rel (%p396) target = $region44
      $region43: #{learner_forward.1} parent=11 // pred_region
        _
      $region44: #{learner_forward.1} parent=11 // pred_fallthru
        _
      // Predicated region
      $region45: #{learner_forward.1} parent=11 // pred_check
        %p399 = pneg %p313
      $region46: #{learner_forward.1} parent=11 // pred_check_branch
        %401 = sbr.rel (%p399) target = $region48
      $region47: #{learner_forward.1} parent=11 // pred_region
        _
      $region48: #{learner_forward.1} parent=11 // pred_fallthru
        _
      // Predicated region
      $region49: #{learner_forward.1} parent=11 // pred_check
        %p402 = pneg %p334
      $region50: #{learner_forward.1} parent=11 // pred_check_branch
        %404 = sbr.rel (%p402) target = $region52
      $region51: #{learner_forward.1} parent=11 // pred_region
        _
      $region52: #{learner_forward.1} parent=11 // pred_fallthru
        _
    $region12: #{learner_forward.1} parent=5 // pred_fallthru
      _
    %p405 = scmp.lt.s32.totalorder %s20, 4
    // Predicated region
    $region53: #{learner_forward.1} parent=5 // pred_check
      %p406 = pneg %p405
    $region54: #{learner_forward.1} parent=5 // pred_check_branch
      %408 = sbr.rel (%p406) target = $region56
    $region55: #{learner_forward.1} parent=5 // pred_region
      // Predicated region
      $region57: #{learner_forward.1} parent=55 // pred_check
        %p409 = pneg %p40
      $region58: #{learner_forward.1} parent=55 // pred_check_branch
        %411 = sbr.rel (%p409) target = $region60
      $region59: #{learner_forward.1} parent=55 // pred_region
        %p412 = scmp.lt.s32.totalorder %s20, 3
        %s413 = scalar_select %p412, %s20, 3
        %s414 = smul.addr %s413, 128
        %s415 = smul.addr %s414, 4
        %s416 = scalar_lea.vmem %s0, %s415
      $region60: #{learner_forward.1} parent=55 // pred_fallthru
        _
      // Predicated region
      $region61: #{learner_forward.1} parent=55 // pred_check
        %p417 = pneg %p66
      $region62: #{learner_forward.1} parent=55 // pred_check_branch
        %419 = sbr.rel (%p417) target = $region64
      $region63: #{learner_forward.1} parent=55 // pred_region
        %p420 = scmp.lt.s32.totalorder %s20, 3
        %s421 = scalar_select %p420, %s20, 3
        %s422 = smul.addr %s421, 16
        %s423 = smul.addr %s422, 8
        %s424 = scalar_lea.vmem %s1, %s423
      $region64: #{learner_forward.1} parent=55 // pred_fallthru
        _
      // Predicated region
      $region65: #{learner_forward.1} parent=55 // pred_check
        %p425 = pneg %p92
      $region66: #{learner_forward.1} parent=55 // pred_check_branch
        %427 = sbr.rel (%p425) target = $region68
      $region67: #{learner_forward.1} parent=55 // pred_region
        %p428 = scmp.lt.s32.totalorder %s20, 3
        %s429 = scalar_select %p428, %s20, 3
        %s430 = smul.addr %s429, 8
        %s431 = smul.addr %s430, 8
        %s432 = scalar_lea.vmem %s2, %s431
      $region68: #{learner_forward.1} parent=55 // pred_fallthru
        _
      // Predicated region
      $region69: #{learner_forward.1} parent=55 // pred_check
        %p433 = pneg %p118
      $region70: #{learner_forward.1} parent=55 // pred_check_branch
        %435 = sbr.rel (%p433) target = $region72
      $region71: #{learner_forward.1} parent=55 // pred_region
        %p436 = scmp.lt.s32.totalorder %s20, 3
        %s437 = scalar_select %p436, %s20, 3
        %s438 = smul.addr %s437, 8
        %s439 = smul.addr %s438, 8
        %s440 = scalar_lea.vmem %s3, %s439
      $region72: #{learner_forward.1} parent=55 // pred_fallthru
        _
    $region56: #{learner_forward.1} parent=5 // pred_fallthru
      _
    %p441 = scmp.le.s32.totalorder 1, %s20
    %p442 = scmp.lt.s32.totalorder %s20, 5
    %p443 = pnand %p441, %p442
    %p444 = pneg %p443
    // Predicated region
    $region73: #{learner_forward.1} parent=5 // pred_check
      _
    $region74: #{learner_forward.1} parent=5 // pred_check_branch
      %446 = sbr.rel (%p443) target = $region76
    $region75: #{learner_forward.1} parent=5 // pred_region
      %s447 = ssub.s32 %s20, 1
      %p448 = scmp.lt.s32.totalorder %s25, 3
      %s449 = scalar_select %p448, %s25, 3
      %s450 = smul.addr %s449, 128
      %s451 = smul.addr %s450, 4
      %s452 = scalar_lea.vmem %s0, %s451
      %p453 = pneg %p46
      %p454 = pneg %p43
      %p455 = scmp.lt.s32.totalorder %s25, 3
      %s456 = scalar_select %p455, %s25, 3
      %s457 = smul.addr %s456, 16
      %s458 = smul.addr %s457, 8
      %s459 = scalar_lea.vmem %s1, %s458
      %p460 = pneg %p72
      %p461 = pneg %p69
      %p462 = scmp.lt.s32.totalorder %s25, 3
      %s463 = scalar_select %p462, %s25, 3
      %s464 = smul.addr %s463, 8
      %s465 = smul.addr %s464, 8
      %s466 = scalar_lea.vmem %s2, %s465
      %p467 = pneg %p98
      %p468 = pneg %p95
      %p469 = scmp.lt.s32.totalorder %s25, 3
      %s470 = scalar_select %p469, %s25, 3
      %s471 = smul.addr %s470, 8
      %s472 = smul.addr %s471, 8
      %s473 = scalar_lea.vmem %s3, %s472
      %p474 = pneg %p124
      %p475 = pneg %p121
      %p476 = pneg %p145
      %p477 = pneg %p142
      %p478 = pneg %p166
      %p479 = pneg %p163
      %p480 = pneg %p187
      %p481 = pneg %p184
      %p482 = pneg %p208
      %p483 = pneg %p205
      %p484 = pneg %p229
      %p485 = pneg %p226
      %p486 = pneg %p250
      %p487 = pneg %p247
      %p488 = pneg %p271
      %p489 = pneg %p268
      %p490 = pneg %p292
      %p491 = pneg %p289
      %p492 = pneg %p313
      %p493 = pneg %p310
      %p494 = pneg %p334
      %p495 = pneg %p331
      %p496 = pneg %p360
      %p497 = pneg %p357
      %p498 = scmp.lt.s32.totalorder %s25, 3
      %s499 = scalar_select %p498, %s25, 3
      %s500 = smul.addr %s499, 8
      %s501 = smul.addr %s500, 8
      %s502 = scalar_lea.vmem %s14, %s501
      %p503 = scmp.lt.s32.totalorder %s25, 3
      %s504 = scalar_select %p503, %s25, 3
      %s505 = smul.addr %s504, 128
      %s506 = smul.addr %s505, 4
      %s507 = scalar_lea.vmem %s0, %s506
      %p508 = scmp.lt.s32.totalorder %s25, 3
      %s509 = scalar_select %p508, %s25, 3
      %s510 = smul.addr %s509, 16
      %s511 = smul.addr %s510, 8
      %s512 = scalar_lea.vmem %s1, %s511
      %p513 = scmp.lt.s32.totalorder %s25, 3
      %s514 = scalar_select %p513, %s25, 3
      %s515 = smul.addr %s514, 8
      %s516 = smul.addr %s515, 8
      %s517 = scalar_lea.vmem %s2, %s516
      %p518 = scmp.lt.s32.totalorder %s25, 3
      %s519 = scalar_select %p518, %s25, 3
      %s520 = smul.addr %s519, 8
      %s521 = smul.addr %s520, 8
      %s522 = scalar_lea.vmem %s3, %s521
      %p523 = scmp.lt.s32.totalorder %s25, 3
      %s524 = scalar_select %p523, %s25, 3
      %s525 = smul.addr %s524, 8
      %s526 = smul.addr %s525, 8
      %s527 = scalar_lea.vmem %s14, %s526
      %v529 = vld [vmem:[%s4] sm:$0xf]
      %v530 = vld [vmem:[%s4 + $0x4] sm:$0xf]
      %v531 = vld [vmem:[%s4 + $0x8] sm:$0xf]
      %v532 = vld [vmem:[%s4 + $0xc] sm:$0xf]
      %v533 = vld [vmem:[%s5] sm:$0xf]
      %v534 = vld [vmem:[%s5 + $0x4] sm:$0xf]
      %v535 = vld [vmem:[%s5 + $0x8] sm:$0xf]
      %v536 = vld [vmem:[%s5 + $0xc] sm:$0xf]
      %v537 = vld [vmem:[%s5 + $0x10] sm:$0xf]
      %v538 = vld [vmem:[%s5 + $0x14] sm:$0xf]
      %v539 = vld [vmem:[%s5 + $0x18] sm:$0xf]
      %v540 = vld [vmem:[%s5 + $0x1c] sm:$0xf]
      %v541 = vld [vmem:[%s5 + $0x20] sm:$0xf]
      %v542 = vld [vmem:[%s5 + $0x24] sm:$0xf]
      %v543 = vld [vmem:[%s5 + $0x28] sm:$0xf]
      %v544 = vld [vmem:[%s5 + $0x2c] sm:$0xf]
      %v545 = vld [vmem:[%s5 + $0x30] sm:$0xf]
      %v546 = vld [vmem:[%s5 + $0x34] sm:$0xf]
      %v547 = vld [vmem:[%s5 + $0x38] sm:$0xf]
      %v548 = vld [vmem:[%s5 + $0x3c] sm:$0xf]
      %v549 = vld [vmem:[%s6] sm:$0x1]
      %v550 = vld [vmem:[%s507] sm:$0xf]
      %v551 = vld [vmem:[%s507 + $0x4] sm:$0xf]
      %v552 = vld [vmem:[%s507 + $0x8] sm:$0xf]
      %v553 = vld [vmem:[%s507 + $0xc] sm:$0xf]
      %v554 = vld [vmem:[%s507 + $0x10] sm:$0xf]
      %v555 = vld [vmem:[%s507 + $0x14] sm:$0xf]
      %v556 = vld [vmem:[%s507 + $0x18] sm:$0xf]
      %v557 = vld [vmem:[%s507 + $0x1c] sm:$0xf]
      %v558 = vld [vmem:[%s507 + $0x20] sm:$0xf]
      %v559 = vld [vmem:[%s507 + $0x24] sm:$0xf]
      %v560 = vld [vmem:[%s507 + $0x28] sm:$0xf]
      %v561 = vld [vmem:[%s507 + $0x2c] sm:$0xf]
      %v562 = vld [vmem:[%s507 + $0x30] sm:$0xf]
      %v563 = vld [vmem:[%s507 + $0x34] sm:$0xf]
      %v564 = vld [vmem:[%s507 + $0x38] sm:$0xf]
      %v565 = vld [vmem:[%s507 + $0x3c] sm:$0xf]
      %v566 = vld [vmem:[%s507 + $0x40] sm:$0xf]
      %v567 = vld [vmem:[%s507 + $0x44] sm:$0xf]
      %v568 = vld [vmem:[%s507 + $0x48] sm:$0xf]
      %v569 = vld [vmem:[%s507 + $0x4c] sm:$0xf]
      %v570 = vld [vmem:[%s507 + $0x50] sm:$0xf]
      %v571 = vld [vmem:[%s507 + $0x54] sm:$0xf]
      %v572 = vld [vmem:[%s507 + $0x58] sm:$0xf]
      %v573 = vld [vmem:[%s507 + $0x5c] sm:$0xf]
      %v574 = vld [vmem:[%s507 + $0x60] sm:$0xf]
      %v575 = vld [vmem:[%s507 + $0x64] sm:$0xf]
      %v576 = vld [vmem:[%s507 + $0x68] sm:$0xf]
      %v577 = vld [vmem:[%s507 + $0x6c] sm:$0xf]
      %v578 = vld [vmem:[%s507 + $0x70] sm:$0xf]
      %v579 = vld [vmem:[%s507 + $0x74] sm:$0xf]
      %v580 = vld [vmem:[%s507 + $0x78] sm:$0xf]
      %v581 = vld [vmem:[%s507 + $0x7c] sm:$0xf]
      %v582 = vld [vmem:[%s507 + $0x80] sm:$0xf]
      %v583 = vld [vmem:[%s507 + $0x84] sm:$0xf]
      %v584 = vld [vmem:[%s507 + $0x88] sm:$0xf]
      %v585 = vld [vmem:[%s507 + $0x8c] sm:$0xf]
      %v586 = vld [vmem:[%s507 + $0x90] sm:$0xf]
      %v587 = vld [vmem:[%s507 + $0x94] sm:$0xf]
      %v588 = vld [vmem:[%s507 + $0x98] sm:$0xf]
      %v589 = vld [vmem:[%s507 + $0x9c] sm:$0xf]
      %v590 = vld [vmem:[%s507 + $0xa0] sm:$0xf]
      %v591 = vld [vmem:[%s507 + $0xa4] sm:$0xf]
      %v592 = vld [vmem:[%s507 + $0xa8] sm:$0xf]
      %v593 = vld [vmem:[%s507 + $0xac] sm:$0xf]
      %v594 = vld [vmem:[%s507 + $0xb0] sm:$0xf]
      %v595 = vld [vmem:[%s507 + $0xb4] sm:$0xf]
      %v596 = vld [vmem:[%s507 + $0xb8] sm:$0xf]
      %v597 = vld [vmem:[%s507 + $0xbc] sm:$0xf]
      %v598 = vld [vmem:[%s507 + $0xc0] sm:$0xf]
      %v599 = vld [vmem:[%s507 + $0xc4] sm:$0xf]
      %v600 = vld [vmem:[%s507 + $0xc8] sm:$0xf]
      %v601 = vld [vmem:[%s507 + $0xcc] sm:$0xf]
      %v602 = vld [vmem:[%s507 + $0xd0] sm:$0xf]
      %v603 = vld [vmem:[%s507 + $0xd4] sm:$0xf]
      %v604 = vld [vmem:[%s507 + $0xd8] sm:$0xf]
      %v605 = vld [vmem:[%s507 + $0xdc] sm:$0xf]
      %v606 = vld [vmem:[%s507 + $0xe0] sm:$0xf]
      %v607 = vld [vmem:[%s507 + $0xe4] sm:$0xf]
      %v608 = vld [vmem:[%s507 + $0xe8] sm:$0xf]
      %v609 = vld [vmem:[%s507 + $0xec] sm:$0xf]
      %v610 = vld [vmem:[%s507 + $0xf0] sm:$0xf]
      %v611 = vld [vmem:[%s507 + $0xf4] sm:$0xf]
      %v612 = vld [vmem:[%s507 + $0xf8] sm:$0xf]
      %v613 = vld [vmem:[%s507 + $0xfc] sm:$0xf]
      %v614 = vld [vmem:[%s507 + $0x100] sm:$0xf]
      %v615 = vld [vmem:[%s507 + $0x104] sm:$0xf]
      %v616 = vld [vmem:[%s507 + $0x108] sm:$0xf]
      %v617 = vld [vmem:[%s507 + $0x10c] sm:$0xf]
      %v618 = vld [vmem:[%s507 + $0x110] sm:$0xf]
      %v619 = vld [vmem:[%s507 + $0x114] sm:$0xf]
      %v620 = vld [vmem:[%s507 + $0x118] sm:$0xf]
      %v621 = vld [vmem:[%s507 + $0x11c] sm:$0xf]
      %v622 = vld [vmem:[%s507 + $0x120] sm:$0xf]
      %v623 = vld [vmem:[%s507 + $0x124] sm:$0xf]
      %v624 = vld [vmem:[%s507 + $0x128] sm:$0xf]
      %v625 = vld [vmem:[%s507 + $0x12c] sm:$0xf]
      %v626 = vld [vmem:[%s507 + $0x130] sm:$0xf]
      %v627 = vld [vmem:[%s507 + $0x134] sm:$0xf]
      %v628 = vld [vmem:[%s507 + $0x138] sm:$0xf]
      %v629 = vld [vmem:[%s507 + $0x13c] sm:$0xf]
      %v630 = vld [vmem:[%s507 + $0x140] sm:$0xf]
      %v631 = vld [vmem:[%s507 + $0x144] sm:$0xf]
      %v632 = vld [vmem:[%s507 + $0x148] sm:$0xf]
      %v633 = vld [vmem:[%s507 + $0x14c] sm:$0xf]
      %v634 = vld [vmem:[%s507 + $0x150] sm:$0xf]
      %v635 = vld [vmem:[%s507 + $0x154] sm:$0xf]
      %v636 = vld [vmem:[%s507 + $0x158] sm:$0xf]
      %v637 = vld [vmem:[%s507 + $0x15c] sm:$0xf]
      %v638 = vld [vmem:[%s507 + $0x160] sm:$0xf]
      %v639 = vld [vmem:[%s507 + $0x164] sm:$0xf]
      %v640 = vld [vmem:[%s507 + $0x168] sm:$0xf]
      %v641 = vld [vmem:[%s507 + $0x16c] sm:$0xf]
      %v642 = vld [vmem:[%s507 + $0x170] sm:$0xf]
      %v643 = vld [vmem:[%s507 + $0x174] sm:$0xf]
      %v644 = vld [vmem:[%s507 + $0x178] sm:$0xf]
      %v645 = vld [vmem:[%s507 + $0x17c] sm:$0xf]
      %v646 = vld [vmem:[%s507 + $0x180] sm:$0xf]
      %v647 = vld [vmem:[%s507 + $0x184] sm:$0xf]
      %v648 = vld [vmem:[%s507 + $0x188] sm:$0xf]
      %v649 = vld [vmem:[%s507 + $0x18c] sm:$0xf]
      %v650 = vld [vmem:[%s507 + $0x190] sm:$0xf]
      %v651 = vld [vmem:[%s507 + $0x194] sm:$0xf]
      %v652 = vld [vmem:[%s507 + $0x198] sm:$0xf]
      %v653 = vld [vmem:[%s507 + $0x19c] sm:$0xf]
      %v654 = vld [vmem:[%s507 + $0x1a0] sm:$0xf]
      %v655 = vld [vmem:[%s507 + $0x1a4] sm:$0xf]
      %v656 = vld [vmem:[%s507 + $0x1a8] sm:$0xf]
      %v657 = vld [vmem:[%s507 + $0x1ac] sm:$0xf]
      %v658 = vld [vmem:[%s507 + $0x1b0] sm:$0xf]
      %v659 = vld [vmem:[%s507 + $0x1b4] sm:$0xf]
      %v660 = vld [vmem:[%s507 + $0x1b8] sm:$0xf]
      %v661 = vld [vmem:[%s507 + $0x1bc] sm:$0xf]
      %v662 = vld [vmem:[%s507 + $0x1c0] sm:$0xf]
      %v663 = vld [vmem:[%s507 + $0x1c4] sm:$0xf]
      %v664 = vld [vmem:[%s507 + $0x1c8] sm:$0xf]
      %v665 = vld [vmem:[%s507 + $0x1cc] sm:$0xf]
      %v666 = vld [vmem:[%s507 + $0x1d0] sm:$0xf]
      %v667 = vld [vmem:[%s507 + $0x1d4] sm:$0xf]
      %v668 = vld [vmem:[%s507 + $0x1d8] sm:$0xf]
      %v669 = vld [vmem:[%s507 + $0x1dc] sm:$0xf]
      %v670 = vld [vmem:[%s507 + $0x1e0] sm:$0xf]
      %v671 = vld [vmem:[%s507 + $0x1e4] sm:$0xf]
      %v672 = vld [vmem:[%s507 + $0x1e8] sm:$0xf]
      %v673 = vld [vmem:[%s507 + $0x1ec] sm:$0xf]
      %v674 = vld [vmem:[%s507 + $0x1f0] sm:$0xf]
      %v675 = vld [vmem:[%s507 + $0x1f4] sm:$0xf]
      %v676 = vld [vmem:[%s507 + $0x1f8] sm:$0xf]
      %v677 = vld [vmem:[%s507 + $0x1fc] sm:$0xf]
      %v679 = vlaneseq
      %v680 = vshrl.u32 %v679, 7
      %v681 = vsub.s32 0, %v680
      %v682 = vrot.slane %v549, %v681
      %v812 = vunpack.c.l.b16 %v550
      %v813 = vunpack.c.l.b16 %v551
      %v814 = vunpack.c.l.b16 %v552
      %v815 = vunpack.c.l.b16 %v553
      %v816 = vunpack.c.l.b16 %v554
      %v817 = vunpack.c.l.b16 %v555
      %v818 = vunpack.c.l.b16 %v556
      %v819 = vunpack.c.l.b16 %v557
      %v820 = vunpack.c.l.b16 %v558
      %v821 = vunpack.c.l.b16 %v559
      %v822 = vunpack.c.l.b16 %v560
      %v823 = vunpack.c.l.b16 %v561
      %v824 = vunpack.c.l.b16 %v562
      %v825 = vunpack.c.l.b16 %v563
      %v826 = vunpack.c.l.b16 %v564
      %v827 = vunpack.c.l.b16 %v565
      %v828 = vunpack.c.l.b16 %v566
      %v829 = vunpack.c.l.b16 %v567
      %v830 = vunpack.c.l.b16 %v568
      %v831 = vunpack.c.l.b16 %v569
      %v832 = vunpack.c.l.b16 %v570
      %v833 = vunpack.c.l.b16 %v571
      %v834 = vunpack.c.l.b16 %v572
      %v835 = vunpack.c.l.b16 %v573
      %v836 = vunpack.c.l.b16 %v574
      %v837 = vunpack.c.l.b16 %v575
      %v838 = vunpack.c.l.b16 %v576
      %v839 = vunpack.c.l.b16 %v577
      %v840 = vunpack.c.l.b16 %v578
      %v841 = vunpack.c.l.b16 %v579
      %v842 = vunpack.c.l.b16 %v580
      %v843 = vunpack.c.l.b16 %v581
      %v844 = vunpack.c.l.b16 %v582
      %v845 = vunpack.c.l.b16 %v583
      %v846 = vunpack.c.l.b16 %v584
      %v847 = vunpack.c.l.b16 %v585
      %v848 = vunpack.c.l.b16 %v586
      %v849 = vunpack.c.l.b16 %v587
      %v850 = vunpack.c.l.b16 %v588
      %v851 = vunpack.c.l.b16 %v589
      %v852 = vunpack.c.l.b16 %v590
      %v853 = vunpack.c.l.b16 %v591
      %v854 = vunpack.c.l.b16 %v592
      %v855 = vunpack.c.l.b16 %v593
      %v856 = vunpack.c.l.b16 %v594
      %v857 = vunpack.c.l.b16 %v595
      %v858 = vunpack.c.l.b16 %v596
      %v859 = vunpack.c.l.b16 %v597
      %v860 = vunpack.c.l.b16 %v598
      %v861 = vunpack.c.l.b16 %v599
      %v862 = vunpack.c.l.b16 %v600
      %v863 = vunpack.c.l.b16 %v601
      %v864 = vunpack.c.l.b16 %v602
      %v865 = vunpack.c.l.b16 %v603
      %v866 = vunpack.c.l.b16 %v604
      %v867 = vunpack.c.l.b16 %v605
      %v868 = vunpack.c.l.b16 %v606
      %v869 = vunpack.c.l.b16 %v607
      %v870 = vunpack.c.l.b16 %v608
      %v871 = vunpack.c.l.b16 %v609
      %v872 = vunpack.c.l.b16 %v610
      %v873 = vunpack.c.l.b16 %v611
      %v874 = vunpack.c.l.b16 %v612
      %v875 = vunpack.c.l.b16 %v613
      %v876 = vunpack.c.l.b16 %v614
      %v877 = vunpack.c.l.b16 %v615
      %v878 = vunpack.c.l.b16 %v616
      %v879 = vunpack.c.l.b16 %v617
      %v880 = vunpack.c.l.b16 %v618
      %v881 = vunpack.c.l.b16 %v619
      %v882 = vunpack.c.l.b16 %v620
      %v883 = vunpack.c.l.b16 %v621
      %v884 = vunpack.c.l.b16 %v622
      %v885 = vunpack.c.l.b16 %v623
      %v886 = vunpack.c.l.b16 %v624
      %v887 = vunpack.c.l.b16 %v625
      %v888 = vunpack.c.l.b16 %v626
      %v889 = vunpack.c.l.b16 %v627
      %v890 = vunpack.c.l.b16 %v628
      %v891 = vunpack.c.l.b16 %v629
      %v892 = vunpack.c.l.b16 %v630
      %v893 = vunpack.c.l.b16 %v631
      %v894 = vunpack.c.l.b16 %v632
      %v895 = vunpack.c.l.b16 %v633
      %v896 = vunpack.c.l.b16 %v634
      %v897 = vunpack.c.l.b16 %v635
      %v898 = vunpack.c.l.b16 %v636
      %v899 = vunpack.c.l.b16 %v637
      %v900 = vunpack.c.l.b16 %v638
      %v901 = vunpack.c.l.b16 %v639
      %v902 = vunpack.c.l.b16 %v640
      %v903 = vunpack.c.l.b16 %v641
      %v904 = vunpack.c.l.b16 %v642
      %v905 = vunpack.c.l.b16 %v643
      %v906 = vunpack.c.l.b16 %v644
      %v907 = vunpack.c.l.b16 %v645
      %v908 = vunpack.c.l.b16 %v646
      %v909 = vunpack.c.l.b16 %v647
      %v910 = vunpack.c.l.b16 %v648
      %v911 = vunpack.c.l.b16 %v649
      %v912 = vunpack.c.l.b16 %v650
      %v913 = vunpack.c.l.b16 %v651
      %v914 = vunpack.c.l.b16 %v652
      %v915 = vunpack.c.l.b16 %v653
      %v916 = vunpack.c.l.b16 %v654
      %v917 = vunpack.c.l.b16 %v655
      %v918 = vunpack.c.l.b16 %v656
      %v919 = vunpack.c.l.b16 %v657
      %v920 = vunpack.c.l.b16 %v658
      %v921 = vunpack.c.l.b16 %v659
      %v922 = vunpack.c.l.b16 %v660
      %v923 = vunpack.c.l.b16 %v661
      %v924 = vunpack.c.l.b16 %v662
      %v925 = vunpack.c.l.b16 %v663
      %v926 = vunpack.c.l.b16 %v664
      %v927 = vunpack.c.l.b16 %v665
      %v928 = vunpack.c.l.b16 %v666
      %v929 = vunpack.c.l.b16 %v667
      %v930 = vunpack.c.l.b16 %v668
      %v931 = vunpack.c.l.b16 %v669
      %v932 = vunpack.c.l.b16 %v670
      %v933 = vunpack.c.l.b16 %v671
      %v934 = vunpack.c.l.b16 %v672
      %v935 = vunpack.c.l.b16 %v673
      %v936 = vunpack.c.l.b16 %v674
      %v937 = vunpack.c.l.b16 %v675
      %v938 = vunpack.c.l.b16 %v676
      %v939 = vunpack.c.l.b16 %v677
      %v940 = vpack.c.b16 %v813, %v812
      %v941 = vpack.c.b16 %v815, %v814
      %v942 = vpack.c.b16 %v817, %v816
      %v943 = vpack.c.b16 %v819, %v818
      %v944 = vpack.c.b16 %v821, %v820
      %v945 = vpack.c.b16 %v823, %v822
      %v946 = vpack.c.b16 %v825, %v824
      %v947 = vpack.c.b16 %v827, %v826
      %v948 = vpack.c.b16 %v829, %v828
      %v949 = vpack.c.b16 %v831, %v830
      %v950 = vpack.c.b16 %v833, %v832
      %v951 = vpack.c.b16 %v835, %v834
      %v952 = vpack.c.b16 %v837, %v836
      %v953 = vpack.c.b16 %v839, %v838
      %v954 = vpack.c.b16 %v841, %v840
      %v955 = vpack.c.b16 %v843, %v842
      %v956 = vpack.c.b16 %v845, %v844
      %v957 = vpack.c.b16 %v847, %v846
      %v958 = vpack.c.b16 %v849, %v848
      %v959 = vpack.c.b16 %v851, %v850
      %v960 = vpack.c.b16 %v853, %v852
      %v961 = vpack.c.b16 %v855, %v854
      %v962 = vpack.c.b16 %v857, %v856
      %v963 = vpack.c.b16 %v859, %v858
      %v964 = vpack.c.b16 %v861, %v860
      %v965 = vpack.c.b16 %v863, %v862
      %v966 = vpack.c.b16 %v865, %v864
      %v967 = vpack.c.b16 %v867, %v866
      %v968 = vpack.c.b16 %v869, %v868
      %v969 = vpack.c.b16 %v871, %v870
      %v970 = vpack.c.b16 %v873, %v872
      %v971 = vpack.c.b16 %v875, %v874
      %v972 = vpack.c.b16 %v877, %v876
      %v973 = vpack.c.b16 %v879, %v878
      %v974 = vpack.c.b16 %v881, %v880
      %v975 = vpack.c.b16 %v883, %v882
      %v976 = vpack.c.b16 %v885, %v884
      %v977 = vpack.c.b16 %v887, %v886
      %v978 = vpack.c.b16 %v889, %v888
      %v979 = vpack.c.b16 %v891, %v890
      %v980 = vpack.c.b16 %v893, %v892
      %v981 = vpack.c.b16 %v895, %v894
      %v982 = vpack.c.b16 %v897, %v896
      %v983 = vpack.c.b16 %v899, %v898
      %v984 = vpack.c.b16 %v901, %v900
      %v985 = vpack.c.b16 %v903, %v902
      %v986 = vpack.c.b16 %v905, %v904
      %v987 = vpack.c.b16 %v907, %v906
      %v988 = vpack.c.b16 %v909, %v908
      %v989 = vpack.c.b16 %v911, %v910
      %v990 = vpack.c.b16 %v913, %v912
      %v991 = vpack.c.b16 %v915, %v914
      %v992 = vpack.c.b16 %v917, %v916
      %v993 = vpack.c.b16 %v919, %v918
      %v994 = vpack.c.b16 %v921, %v920
      %v995 = vpack.c.b16 %v923, %v922
      %v996 = vpack.c.b16 %v925, %v924
      %v997 = vpack.c.b16 %v927, %v926
      %v998 = vpack.c.b16 %v929, %v928
      %v999 = vpack.c.b16 %v931, %v930
      %v1000 = vpack.c.b16 %v933, %v932
      %v1001 = vpack.c.b16 %v935, %v934
      %v1002 = vpack.c.b16 %v937, %v936
      %v1003 = vpack.c.b16 %v939, %v938
      %v1008 = vunpack.c.l.b16 %v529
      %v1009 = vunpack.c.l.b16 %v530
      %v1010 = vunpack.c.l.b16 %v531
      %v1011 = vunpack.c.l.b16 %v532
      %v1012 = vpack.c.b16 %v1009, %v1008
      %v1013 = vpack.c.b16 %v1011, %v1010
      %vm1016 = vcmask 261120
      %v1018 = vsel %vm1016, %v940, 0
      %v1021 = vsel %vm1016, %v941, 0
      %v1024 = vsel %vm1016, %v942, 0
      %v1027 = vsel %vm1016, %v943, 0
      %v1030 = vsel %vm1016, %v944, 0
      %v1033 = vsel %vm1016, %v945, 0
      %v1036 = vsel %vm1016, %v946, 0
      %v1039 = vsel %vm1016, %v947, 0
      %v1042 = vsel %vm1016, %v948, 0
      %v1045 = vsel %vm1016, %v949, 0
      %v1048 = vsel %vm1016, %v950, 0
      %v1051 = vsel %vm1016, %v951, 0
      %v1054 = vsel %vm1016, %v952, 0
      %v1057 = vsel %vm1016, %v953, 0
      %v1060 = vsel %vm1016, %v954, 0
      %v1063 = vsel %vm1016, %v955, 0
      %v1066 = vsel %vm1016, %v956, 0
      %v1069 = vsel %vm1016, %v957, 0
      %v1072 = vsel %vm1016, %v958, 0
      %v1075 = vsel %vm1016, %v959, 0
      %v1078 = vsel %vm1016, %v960, 0
      %v1081 = vsel %vm1016, %v961, 0
      %v1084 = vsel %vm1016, %v962, 0
      %v1087 = vsel %vm1016, %v963, 0
      %v1090 = vsel %vm1016, %v964, 0
      %v1093 = vsel %vm1016, %v965, 0
      %v1096 = vsel %vm1016, %v966, 0
      %v1099 = vsel %vm1016, %v967, 0
      %v1102 = vsel %vm1016, %v968, 0
      %v1105 = vsel %vm1016, %v969, 0
      %v1108 = vsel %vm1016, %v970, 0
      %v1111 = vsel %vm1016, %v971, 0
      %v1114 = vsel %vm1016, %v972, 0
      %v1117 = vsel %vm1016, %v973, 0
      %v1120 = vsel %vm1016, %v974, 0
      %v1123 = vsel %vm1016, %v975, 0
      %v1126 = vsel %vm1016, %v976, 0
      %v1129 = vsel %vm1016, %v977, 0
      %v1132 = vsel %vm1016, %v978, 0
      %v1135 = vsel %vm1016, %v979, 0
      %v1138 = vsel %vm1016, %v980, 0
      %v1141 = vsel %vm1016, %v981, 0
      %v1144 = vsel %vm1016, %v982, 0
      %v1147 = vsel %vm1016, %v983, 0
      %v1150 = vsel %vm1016, %v984, 0
      %v1153 = vsel %vm1016, %v985, 0
      %v1156 = vsel %vm1016, %v986, 0
      %v1159 = vsel %vm1016, %v987, 0
      %v1162 = vsel %vm1016, %v988, 0
      %v1165 = vsel %vm1016, %v989, 0
      %v1168 = vsel %vm1016, %v990, 0
      %v1171 = vsel %vm1016, %v991, 0
      %v1174 = vsel %vm1016, %v992, 0
      %v1177 = vsel %vm1016, %v993, 0
      %v1180 = vsel %vm1016, %v994, 0
      %v1183 = vsel %vm1016, %v995, 0
      %v1186 = vsel %vm1016, %v996, 0
      %v1189 = vsel %vm1016, %v997, 0
      %v1192 = vsel %vm1016, %v998, 0
      %v1195 = vsel %vm1016, %v999, 0
      %v1198 = vsel %vm1016, %v1000, 0
      %v1201 = vsel %vm1016, %v1001, 0
      %v1204 = vsel %vm1016, %v1002, 0
      %v1207 = vsel %vm1016, %v1003, 0
      %1209 = vmatprep.subr.bf16.mxu0 0
      %1210 = vmatpush1.bf16.msra.mxu0 0
      %1211 = vmatprep.subr.bf16.mxu0 0
      %1212 = vmatpush1.bf16.msra.mxu0 0
      %1213 = vmatprep.subr.bf16.mxu0 0
      %1214 = vmatpush1.bf16.msra.mxu0 0
      %1215 = vmatprep.subr.bf16.mxu0 0
      %1216 = vmatpush1.bf16.msra.mxu0 0
      %1217 = vmatprep.subr.bf16.mxu0 0
      %1218 = vmatpush1.bf16.msra.mxu0 0
      %1219 = vmatprep.subr.bf16.mxu0 0
      %1220 = vmatpush1.bf16.msra.mxu0 0
      %1221 = vmatprep.subr.bf16.mxu0 0
      %1222 = vmatpush1.bf16.msra.mxu0 %v1013
      %1223 = vmatprep.subr.bf16.mxu0 0
      %1224 = vmatpush1.bf16.msra.mxu0 %v1012
      %1225 = vmatprep.subr.bf16.mxu0 0
      %1226 = vmatpush2.bf16.msra.mxu0 0
      %1227 = vmatprep.subr.bf16.mxu0 0
      %1228 = vmatpush2.bf16.msra.mxu0 0
      %1229 = vmatprep.subr.bf16.mxu0 0
      %1230 = vmatpush2.bf16.msra.mxu0 0
      %1231 = vmatprep.subr.bf16.mxu0 0
      %1232 = vmatpush2.bf16.msra.mxu0 0
      %1233 = vmatprep.subr.bf16.mxu0 0
      %1234 = vmatpush2.bf16.msra.mxu0 0
      %1235 = vmatprep.subr.bf16.mxu0 0
      %1236 = vmatpush2.bf16.msra.mxu0 0
      %1237 = vmatprep.subr.bf16.mxu0 0
      %1238 = vmatpush2.bf16.msra.mxu0 0
      %1239 = vmatprep.subr.bf16.mxu0 0
      %1240 = vmatpush2.bf16.msra.mxu0 0
      %1241 = vmatprep.mubr.bf16.mxu0 0
      %1242 = vmatmul.mubr.bf16.gmra.mxu0 %v1018
      %v1243 = vpop.f32.mrf.mxu0
      %v1244 = vadd.f32 %v682, %v1243
      %v1245 = vpop.f32.mrf.mxu0
      %v1246 = vpop.f32.mrf.mxu0
      %v1247 = vadd.f32 %v682, %v1246
      %v1248 = vpop.f32.mrf.mxu0
      %1249 = vmatprep.mubr.bf16.mxu0 0
      %1250 = vmatmul.mubr.bf16.gmra.mxu0 %v1021
      %v1251 = vpop.f32.mrf.mxu0
      %v1252 = vadd.f32 %v682, %v1251
      %v1253 = vpop.f32.mrf.mxu0
      %v1254 = vpop.f32.mrf.mxu0
      %v1255 = vadd.f32 %v682, %v1254
      %v1256 = vpop.f32.mrf.mxu0
      %1257 = vmatprep.mubr.bf16.mxu0 0
      %1258 = vmatmul.mubr.bf16.gmra.mxu0 %v1024
      %v1259 = vpop.f32.mrf.mxu0
      %v1260 = vadd.f32 %v682, %v1259
      %v1261 = vpop.f32.mrf.mxu0
      %v1262 = vpop.f32.mrf.mxu0
      %v1263 = vadd.f32 %v682, %v1262
      %v1264 = vpop.f32.mrf.mxu0
      %1265 = vmatprep.mubr.bf16.mxu0 0
      %1266 = vmatmul.mubr.bf16.gmra.mxu0 %v1027
      %v1267 = vpop.f32.mrf.mxu0
      %v1268 = vadd.f32 %v682, %v1267
      %v1269 = vpop.f32.mrf.mxu0
      %v1270 = vpop.f32.mrf.mxu0
      %v1271 = vadd.f32 %v682, %v1270
      %v1272 = vpop.f32.mrf.mxu0
      %1273 = vmatprep.mubr.bf16.mxu0 0
      %1274 = vmatmul.mubr.bf16.gmra.mxu0 %v1030
      %v1275 = vpop.f32.mrf.mxu0
      %v1276 = vadd.f32 %v682, %v1275
      %v1277 = vpop.f32.mrf.mxu0
      %v1278 = vpop.f32.mrf.mxu0
      %v1279 = vadd.f32 %v682, %v1278
      %v1280 = vpop.f32.mrf.mxu0
      %1281 = vmatprep.mubr.bf16.mxu0 0
      %1282 = vmatmul.mubr.bf16.gmra.mxu0 %v1033
      %v1283 = vpop.f32.mrf.mxu0
      %v1284 = vadd.f32 %v682, %v1283
      %v1285 = vpop.f32.mrf.mxu0
      %v1286 = vpop.f32.mrf.mxu0
      %v1287 = vadd.f32 %v682, %v1286
      %v1288 = vpop.f32.mrf.mxu0
      %1289 = vmatprep.mubr.bf16.mxu0 0
      %1290 = vmatmul.mubr.bf16.gmra.mxu0 %v1036
      %v1291 = vpop.f32.mrf.mxu0
      %v1292 = vadd.f32 %v682, %v1291
      %v1293 = vpop.f32.mrf.mxu0
      %v1294 = vpop.f32.mrf.mxu0
      %v1295 = vadd.f32 %v682, %v1294
      %v1296 = vpop.f32.mrf.mxu0
      %1297 = vmatprep.mubr.bf16.mxu0 0
      %1298 = vmatmul.mubr.bf16.gmra.mxu0 %v1039
      %v1299 = vpop.f32.mrf.mxu0
      %v1300 = vadd.f32 %v682, %v1299
      %v1301 = vpop.f32.mrf.mxu0
      %v1302 = vpop.f32.mrf.mxu0
      %v1303 = vadd.f32 %v682, %v1302
      %v1304 = vpop.f32.mrf.mxu0
      %1305 = vmatprep.mubr.bf16.mxu0 0
      %1306 = vmatmul.mubr.bf16.gmra.mxu0 %v1042
      %v1307 = vpop.f32.mrf.mxu0
      %v1308 = vadd.f32 %v682, %v1307
      %v1309 = vpop.f32.mrf.mxu0
      %v1310 = vpop.f32.mrf.mxu0
      %v1311 = vadd.f32 %v682, %v1310
      %v1312 = vpop.f32.mrf.mxu0
      %1313 = vmatprep.mubr.bf16.mxu0 0
      %1314 = vmatmul.mubr.bf16.gmra.mxu0 %v1045
      %v1315 = vpop.f32.mrf.mxu0
      %v1316 = vadd.f32 %v682, %v1315
      %v1317 = vpop.f32.mrf.mxu0
      %v1318 = vpop.f32.mrf.mxu0
      %v1319 = vadd.f32 %v682, %v1318
      %v1320 = vpop.f32.mrf.mxu0
      %1321 = vmatprep.mubr.bf16.mxu0 0
      %1322 = vmatmul.mubr.bf16.gmra.mxu0 %v1048
      %v1323 = vpop.f32.mrf.mxu0
      %v1324 = vadd.f32 %v682, %v1323
      %v1325 = vpop.f32.mrf.mxu0
      %v1326 = vpop.f32.mrf.mxu0
      %v1327 = vadd.f32 %v682, %v1326
      %v1328 = vpop.f32.mrf.mxu0
      %1329 = vmatprep.mubr.bf16.mxu0 0
      %1330 = vmatmul.mubr.bf16.gmra.mxu0 %v1051
      %v1331 = vpop.f32.mrf.mxu0
      %v1332 = vadd.f32 %v682, %v1331
      %v1333 = vpop.f32.mrf.mxu0
      %v1334 = vpop.f32.mrf.mxu0
      %v1335 = vadd.f32 %v682, %v1334
      %v1336 = vpop.f32.mrf.mxu0
      %1337 = vmatprep.mubr.bf16.mxu0 0
      %1338 = vmatmul.mubr.bf16.gmra.mxu0 %v1054
      %v1339 = vpop.f32.mrf.mxu0
      %v1340 = vadd.f32 %v682, %v1339
      %v1341 = vpop.f32.mrf.mxu0
      %v1342 = vpop.f32.mrf.mxu0
      %v1343 = vadd.f32 %v682, %v1342
      %v1344 = vpop.f32.mrf.mxu0
      %1345 = vmatprep.mubr.bf16.mxu0 0
      %1346 = vmatmul.mubr.bf16.gmra.mxu0 %v1057
      %v1347 = vpop.f32.mrf.mxu0
      %v1348 = vadd.f32 %v682, %v1347
      %v1349 = vpop.f32.mrf.mxu0
      %v1350 = vpop.f32.mrf.mxu0
      %v1351 = vadd.f32 %v682, %v1350
      %v1352 = vpop.f32.mrf.mxu0
      %1353 = vmatprep.mubr.bf16.mxu0 0
      %1354 = vmatmul.mubr.bf16.gmra.mxu0 %v1060
      %v1355 = vpop.f32.mrf.mxu0
      %v1356 = vadd.f32 %v682, %v1355
      %v1357 = vpop.f32.mrf.mxu0
      %v1358 = vpop.f32.mrf.mxu0
      %v1359 = vadd.f32 %v682, %v1358
      %v1360 = vpop.f32.mrf.mxu0
      %1361 = vmatprep.mubr.bf16.mxu0 0
      %1362 = vmatmul.mubr.bf16.gmra.mxu0 %v1063
      %v1363 = vpop.f32.mrf.mxu0
      %v1364 = vadd.f32 %v682, %v1363
      %v1365 = vpop.f32.mrf.mxu0
      %v1366 = vpop.f32.mrf.mxu0
      %v1367 = vadd.f32 %v682, %v1366
      %v1368 = vpop.f32.mrf.mxu0
      %1369 = vmatprep.mubr.bf16.mxu0 0
      %1370 = vmatmul.mubr.bf16.gmra.mxu0 %v1066
      %v1371 = vpop.f32.mrf.mxu0
      %v1372 = vadd.f32 %v682, %v1371
      %v1373 = vpop.f32.mrf.mxu0
      %v1374 = vpop.f32.mrf.mxu0
      %v1375 = vadd.f32 %v682, %v1374
      %v1376 = vpop.f32.mrf.mxu0
      %1377 = vmatprep.mubr.bf16.mxu0 0
      %1378 = vmatmul.mubr.bf16.gmra.mxu0 %v1069
      %v1379 = vpop.f32.mrf.mxu0
      %v1380 = vadd.f32 %v682, %v1379
      %v1381 = vpop.f32.mrf.mxu0
      %v1382 = vpop.f32.mrf.mxu0
      %v1383 = vadd.f32 %v682, %v1382
      %v1384 = vpop.f32.mrf.mxu0
      %1385 = vmatprep.mubr.bf16.mxu0 0
      %1386 = vmatmul.mubr.bf16.gmra.mxu0 %v1072
      %v1387 = vpop.f32.mrf.mxu0
      %v1388 = vadd.f32 %v682, %v1387
      %v1389 = vpop.f32.mrf.mxu0
      %v1390 = vpop.f32.mrf.mxu0
      %v1391 = vadd.f32 %v682, %v1390
      %v1392 = vpop.f32.mrf.mxu0
      %1393 = vmatprep.mubr.bf16.mxu0 0
      %1394 = vmatmul.mubr.bf16.gmra.mxu0 %v1075
      %v1395 = vpop.f32.mrf.mxu0
      %v1396 = vadd.f32 %v682, %v1395
      %v1397 = vpop.f32.mrf.mxu0
      %v1398 = vpop.f32.mrf.mxu0
      %v1399 = vadd.f32 %v682, %v1398
      %v1400 = vpop.f32.mrf.mxu0
      %1401 = vmatprep.mubr.bf16.mxu0 0
      %1402 = vmatmul.mubr.bf16.gmra.mxu0 %v1078
      %v1403 = vpop.f32.mrf.mxu0
      %v1404 = vadd.f32 %v682, %v1403
      %v1405 = vpop.f32.mrf.mxu0
      %v1406 = vpop.f32.mrf.mxu0
      %v1407 = vadd.f32 %v682, %v1406
      %v1408 = vpop.f32.mrf.mxu0
      %1409 = vmatprep.mubr.bf16.mxu0 0
      %1410 = vmatmul.mubr.bf16.gmra.mxu0 %v1081
      %v1411 = vpop.f32.mrf.mxu0
      %v1412 = vadd.f32 %v682, %v1411
      %v1413 = vpop.f32.mrf.mxu0
      %v1414 = vpop.f32.mrf.mxu0
      %v1415 = vadd.f32 %v682, %v1414
      %v1416 = vpop.f32.mrf.mxu0
      %1417 = vmatprep.mubr.bf16.mxu0 0
      %1418 = vmatmul.mubr.bf16.gmra.mxu0 %v1084
      %v1419 = vpop.f32.mrf.mxu0
      %v1420 = vadd.f32 %v682, %v1419
      %v1421 = vpop.f32.mrf.mxu0
      %v1422 = vpop.f32.mrf.mxu0
      %v1423 = vadd.f32 %v682, %v1422
      %v1424 = vpop.f32.mrf.mxu0
      %1425 = vmatprep.mubr.bf16.mxu0 0
      %1426 = vmatmul.mubr.bf16.gmra.mxu0 %v1087
      %v1427 = vpop.f32.mrf.mxu0
      %v1428 = vadd.f32 %v682, %v1427
      %v1429 = vpop.f32.mrf.mxu0
      %v1430 = vpop.f32.mrf.mxu0
      %v1431 = vadd.f32 %v682, %v1430
      %v1432 = vpop.f32.mrf.mxu0
      %1433 = vmatprep.mubr.bf16.mxu0 0
      %1434 = vmatmul.mubr.bf16.gmra.mxu0 %v1090
      %v1435 = vpop.f32.mrf.mxu0
      %v1436 = vadd.f32 %v682, %v1435
      %v1437 = vpop.f32.mrf.mxu0
      %v1438 = vpop.f32.mrf.mxu0
      %v1439 = vadd.f32 %v682, %v1438
      %v1440 = vpop.f32.mrf.mxu0
      %1441 = vmatprep.mubr.bf16.mxu0 0
      %1442 = vmatmul.mubr.bf16.gmra.mxu0 %v1093
      %v1443 = vpop.f32.mrf.mxu0
      %v1444 = vadd.f32 %v682, %v1443
      %v1445 = vpop.f32.mrf.mxu0
      %v1446 = vpop.f32.mrf.mxu0
      %v1447 = vadd.f32 %v682, %v1446
      %v1448 = vpop.f32.mrf.mxu0
      %1449 = vmatprep.mubr.bf16.mxu0 0
      %1450 = vmatmul.mubr.bf16.gmra.mxu0 %v1096
      %v1451 = vpop.f32.mrf.mxu0
      %v1452 = vadd.f32 %v682, %v1451
      %v1453 = vpop.f32.mrf.mxu0
      %v1454 = vpop.f32.mrf.mxu0
      %v1455 = vadd.f32 %v682, %v1454
      %v1456 = vpop.f32.mrf.mxu0
      %1457 = vmatprep.mubr.bf16.mxu0 0
      %1458 = vmatmul.mubr.bf16.gmra.mxu0 %v1099
      %v1459 = vpop.f32.mrf.mxu0
      %v1460 = vadd.f32 %v682, %v1459
      %v1461 = vpop.f32.mrf.mxu0
      %v1462 = vpop.f32.mrf.mxu0
      %v1463 = vadd.f32 %v682, %v1462
      %v1464 = vpop.f32.mrf.mxu0
      %1465 = vmatprep.mubr.bf16.mxu0 0
      %1466 = vmatmul.mubr.bf16.gmra.mxu0 %v1102
      %v1467 = vpop.f32.mrf.mxu0
      %v1468 = vadd.f32 %v682, %v1467
      %v1469 = vpop.f32.mrf.mxu0
      %v1470 = vpop.f32.mrf.mxu0
      %v1471 = vadd.f32 %v682, %v1470
      %v1472 = vpop.f32.mrf.mxu0
      %1473 = vmatprep.mubr.bf16.mxu0 0
      %1474 = vmatmul.mubr.bf16.gmra.mxu0 %v1105
      %v1475 = vpop.f32.mrf.mxu0
      %v1476 = vadd.f32 %v682, %v1475
      %v1477 = vpop.f32.mrf.mxu0
      %v1478 = vpop.f32.mrf.mxu0
      %v1479 = vadd.f32 %v682, %v1478
      %v1480 = vpop.f32.mrf.mxu0
      %1481 = vmatprep.mubr.bf16.mxu0 0
      %1482 = vmatmul.mubr.bf16.gmra.mxu0 %v1108
      %v1483 = vpop.f32.mrf.mxu0
      %v1484 = vadd.f32 %v682, %v1483
      %v1485 = vpop.f32.mrf.mxu0
      %v1486 = vpop.f32.mrf.mxu0
      %v1487 = vadd.f32 %v682, %v1486
      %v1488 = vpop.f32.mrf.mxu0
      %1489 = vmatprep.mubr.bf16.mxu0 0
      %1490 = vmatmul.mubr.bf16.gmra.mxu0 %v1111
      %v1491 = vpop.f32.mrf.mxu0
      %v1492 = vadd.f32 %v682, %v1491
      %v1493 = vpop.f32.mrf.mxu0
      %v1494 = vpop.f32.mrf.mxu0
      %v1495 = vadd.f32 %v682, %v1494
      %v1496 = vpop.f32.mrf.mxu0
      %1497 = vmatprep.mubr.bf16.mxu0 0
      %1498 = vmatmul.mubr.bf16.gmra.mxu0 %v1114
      %v1499 = vpop.f32.mrf.mxu0
      %v1500 = vadd.f32 %v682, %v1499
      %v1501 = vpop.f32.mrf.mxu0
      %v1502 = vpop.f32.mrf.mxu0
      %v1503 = vadd.f32 %v682, %v1502
      %v1504 = vpop.f32.mrf.mxu0
      %1505 = vmatprep.mubr.bf16.mxu0 0
      %1506 = vmatmul.mubr.bf16.gmra.mxu0 %v1117
      %v1507 = vpop.f32.mrf.mxu0
      %v1508 = vadd.f32 %v682, %v1507
      %v1509 = vpop.f32.mrf.mxu0
      %v1510 = vpop.f32.mrf.mxu0
      %v1511 = vadd.f32 %v682, %v1510
      %v1512 = vpop.f32.mrf.mxu0
      %1513 = vmatprep.mubr.bf16.mxu0 0
      %1514 = vmatmul.mubr.bf16.gmra.mxu0 %v1120
      %v1515 = vpop.f32.mrf.mxu0
      %v1516 = vadd.f32 %v682, %v1515
      %v1517 = vpop.f32.mrf.mxu0
      %v1518 = vpop.f32.mrf.mxu0
      %v1519 = vadd.f32 %v682, %v1518
      %v1520 = vpop.f32.mrf.mxu0
      %1521 = vmatprep.mubr.bf16.mxu0 0
      %1522 = vmatmul.mubr.bf16.gmra.mxu0 %v1123
      %v1523 = vpop.f32.mrf.mxu0
      %v1524 = vadd.f32 %v682, %v1523
      %v1525 = vpop.f32.mrf.mxu0
      %v1526 = vpop.f32.mrf.mxu0
      %v1527 = vadd.f32 %v682, %v1526
      %v1528 = vpop.f32.mrf.mxu0
      %1529 = vmatprep.mubr.bf16.mxu0 0
      %1530 = vmatmul.mubr.bf16.gmra.mxu0 %v1126
      %v1531 = vpop.f32.mrf.mxu0
      %v1532 = vadd.f32 %v682, %v1531
      %v1533 = vpop.f32.mrf.mxu0
      %v1534 = vpop.f32.mrf.mxu0
      %v1535 = vadd.f32 %v682, %v1534
      %v1536 = vpop.f32.mrf.mxu0
      %1537 = vmatprep.mubr.bf16.mxu0 0
      %1538 = vmatmul.mubr.bf16.gmra.mxu0 %v1129
      %v1539 = vpop.f32.mrf.mxu0
      %v1540 = vadd.f32 %v682, %v1539
      %v1541 = vpop.f32.mrf.mxu0
      %v1542 = vpop.f32.mrf.mxu0
      %v1543 = vadd.f32 %v682, %v1542
      %v1544 = vpop.f32.mrf.mxu0
      %1545 = vmatprep.mubr.bf16.mxu0 0
      %1546 = vmatmul.mubr.bf16.gmra.mxu0 %v1132
      %v1547 = vpop.f32.mrf.mxu0
      %v1548 = vadd.f32 %v682, %v1547
      %v1549 = vpop.f32.mrf.mxu0
      %v1550 = vpop.f32.mrf.mxu0
      %v1551 = vadd.f32 %v682, %v1550
      %v1552 = vpop.f32.mrf.mxu0
      %1553 = vmatprep.mubr.bf16.mxu0 0
      %1554 = vmatmul.mubr.bf16.gmra.mxu0 %v1135
      %v1555 = vpop.f32.mrf.mxu0
      %v1556 = vadd.f32 %v682, %v1555
      %v1557 = vpop.f32.mrf.mxu0
      %v1558 = vpop.f32.mrf.mxu0
      %v1559 = vadd.f32 %v682, %v1558
      %v1560 = vpop.f32.mrf.mxu0
      %1561 = vmatprep.mubr.bf16.mxu0 0
      %1562 = vmatmul.mubr.bf16.gmra.mxu0 %v1138
      %v1563 = vpop.f32.mrf.mxu0
      %v1564 = vadd.f32 %v682, %v1563
      %v1565 = vpop.f32.mrf.mxu0
      %v1566 = vpop.f32.mrf.mxu0
      %v1567 = vadd.f32 %v682, %v1566
      %v1568 = vpop.f32.mrf.mxu0
      %1569 = vmatprep.mubr.bf16.mxu0 0
      %1570 = vmatmul.mubr.bf16.gmra.mxu0 %v1141
      %v1571 = vpop.f32.mrf.mxu0
      %v1572 = vadd.f32 %v682, %v1571
      %v1573 = vpop.f32.mrf.mxu0
      %v1574 = vpop.f32.mrf.mxu0
      %v1575 = vadd.f32 %v682, %v1574
      %v1576 = vpop.f32.mrf.mxu0
      %1577 = vmatprep.mubr.bf16.mxu0 0
      %1578 = vmatmul.mubr.bf16.gmra.mxu0 %v1144
      %v1579 = vpop.f32.mrf.mxu0
      %v1580 = vadd.f32 %v682, %v1579
      %v1581 = vpop.f32.mrf.mxu0
      %v1582 = vpop.f32.mrf.mxu0
      %v1583 = vadd.f32 %v682, %v1582
      %v1584 = vpop.f32.mrf.mxu0
      %1585 = vmatprep.mubr.bf16.mxu0 0
      %1586 = vmatmul.mubr.bf16.gmra.mxu0 %v1147
      %v1587 = vpop.f32.mrf.mxu0
      %v1588 = vadd.f32 %v682, %v1587
      %v1589 = vpop.f32.mrf.mxu0
      %v1590 = vpop.f32.mrf.mxu0
      %v1591 = vadd.f32 %v682, %v1590
      %v1592 = vpop.f32.mrf.mxu0
      %1593 = vmatprep.mubr.bf16.mxu0 0
      %1594 = vmatmul.mubr.bf16.gmra.mxu0 %v1150
      %v1595 = vpop.f32.mrf.mxu0
      %v1596 = vadd.f32 %v682, %v1595
      %v1597 = vpop.f32.mrf.mxu0
      %v1598 = vpop.f32.mrf.mxu0
      %v1599 = vadd.f32 %v682, %v1598
      %v1600 = vpop.f32.mrf.mxu0
      %1601 = vmatprep.mubr.bf16.mxu0 0
      %1602 = vmatmul.mubr.bf16.gmra.mxu0 %v1153
      %v1603 = vpop.f32.mrf.mxu0
      %v1604 = vadd.f32 %v682, %v1603
      %v1605 = vpop.f32.mrf.mxu0
      %v1606 = vpop.f32.mrf.mxu0
      %v1607 = vadd.f32 %v682, %v1606
      %v1608 = vpop.f32.mrf.mxu0
      %1609 = vmatprep.mubr.bf16.mxu0 0
      %1610 = vmatmul.mubr.bf16.gmra.mxu0 %v1156
      %v1611 = vpop.f32.mrf.mxu0
      %v1612 = vadd.f32 %v682, %v1611
      %v1613 = vpop.f32.mrf.mxu0
      %v1614 = vpop.f32.mrf.mxu0
      %v1615 = vadd.f32 %v682, %v1614
      %v1616 = vpop.f32.mrf.mxu0
      %1617 = vmatprep.mubr.bf16.mxu0 0
      %1618 = vmatmul.mubr.bf16.gmra.mxu0 %v1159
      %v1619 = vpop.f32.mrf.mxu0
      %v1620 = vadd.f32 %v682, %v1619
      %v1621 = vpop.f32.mrf.mxu0
      %v1622 = vpop.f32.mrf.mxu0
      %v1623 = vadd.f32 %v682, %v1622
      %v1624 = vpop.f32.mrf.mxu0
      %1625 = vmatprep.mubr.bf16.mxu0 0
      %1626 = vmatmul.mubr.bf16.gmra.mxu0 %v1162
      %v1627 = vpop.f32.mrf.mxu0
      %v1628 = vadd.f32 %v682, %v1627
      %v1629 = vpop.f32.mrf.mxu0
      %v1630 = vpop.f32.mrf.mxu0
      %v1631 = vadd.f32 %v682, %v1630
      %v1632 = vpop.f32.mrf.mxu0
      %1633 = vmatprep.mubr.bf16.mxu0 0
      %1634 = vmatmul.mubr.bf16.gmra.mxu0 %v1165
      %v1635 = vpop.f32.mrf.mxu0
      %v1636 = vadd.f32 %v682, %v1635
      %v1637 = vpop.f32.mrf.mxu0
      %v1638 = vpop.f32.mrf.mxu0
      %v1639 = vadd.f32 %v682, %v1638
      %v1640 = vpop.f32.mrf.mxu0
      %1641 = vmatprep.mubr.bf16.mxu0 0
      %1642 = vmatmul.mubr.bf16.gmra.mxu0 %v1168
      %v1643 = vpop.f32.mrf.mxu0
      %v1644 = vadd.f32 %v682, %v1643
      %v1645 = vpop.f32.mrf.mxu0
      %v1646 = vpop.f32.mrf.mxu0
      %v1647 = vadd.f32 %v682, %v1646
      %v1648 = vpop.f32.mrf.mxu0
      %1649 = vmatprep.mubr.bf16.mxu0 0
      %1650 = vmatmul.mubr.bf16.gmra.mxu0 %v1171
      %v1651 = vpop.f32.mrf.mxu0
      %v1652 = vadd.f32 %v682, %v1651
      %v1653 = vpop.f32.mrf.mxu0
      %v1654 = vpop.f32.mrf.mxu0
      %v1655 = vadd.f32 %v682, %v1654
      %v1656 = vpop.f32.mrf.mxu0
      %1657 = vmatprep.mubr.bf16.mxu0 0
      %1658 = vmatmul.mubr.bf16.gmra.mxu0 %v1174
      %v1659 = vpop.f32.mrf.mxu0
      %v1660 = vadd.f32 %v682, %v1659
      %v1661 = vpop.f32.mrf.mxu0
      %v1662 = vpop.f32.mrf.mxu0
      %v1663 = vadd.f32 %v682, %v1662
      %v1664 = vpop.f32.mrf.mxu0
      %1665 = vmatprep.mubr.bf16.mxu0 0
      %1666 = vmatmul.mubr.bf16.gmra.mxu0 %v1177
      %v1667 = vpop.f32.mrf.mxu0
      %v1668 = vadd.f32 %v682, %v1667
      %v1669 = vpop.f32.mrf.mxu0
      %v1670 = vpop.f32.mrf.mxu0
      %v1671 = vadd.f32 %v682, %v1670
      %v1672 = vpop.f32.mrf.mxu0
      %1673 = vmatprep.mubr.bf16.mxu0 0
      %1674 = vmatmul.mubr.bf16.gmra.mxu0 %v1180
      %v1675 = vpop.f32.mrf.mxu0
      %v1676 = vadd.f32 %v682, %v1675
      %v1677 = vpop.f32.mrf.mxu0
      %v1678 = vpop.f32.mrf.mxu0
      %v1679 = vadd.f32 %v682, %v1678
      %v1680 = vpop.f32.mrf.mxu0
      %1681 = vmatprep.mubr.bf16.mxu0 0
      %1682 = vmatmul.mubr.bf16.gmra.mxu0 %v1183
      %v1683 = vpop.f32.mrf.mxu0
      %v1684 = vadd.f32 %v682, %v1683
      %v1685 = vpop.f32.mrf.mxu0
      %v1686 = vpop.f32.mrf.mxu0
      %v1687 = vadd.f32 %v682, %v1686
      %v1688 = vpop.f32.mrf.mxu0
      %1689 = vmatprep.mubr.bf16.mxu0 0
      %1690 = vmatmul.mubr.bf16.gmra.mxu0 %v1186
      %v1691 = vpop.f32.mrf.mxu0
      %v1692 = vadd.f32 %v682, %v1691
      %v1693 = vpop.f32.mrf.mxu0
      %v1694 = vpop.f32.mrf.mxu0
      %v1695 = vadd.f32 %v682, %v1694
      %v1696 = vpop.f32.mrf.mxu0
      %1697 = vmatprep.mubr.bf16.mxu0 0
      %1698 = vmatmul.mubr.bf16.gmra.mxu0 %v1189
      %v1699 = vpop.f32.mrf.mxu0
      %v1700 = vadd.f32 %v682, %v1699
      %v1701 = vpop.f32.mrf.mxu0
      %v1702 = vpop.f32.mrf.mxu0
      %v1703 = vadd.f32 %v682, %v1702
      %v1704 = vpop.f32.mrf.mxu0
      %1705 = vmatprep.mubr.bf16.mxu0 0
      %1706 = vmatmul.mubr.bf16.gmra.mxu0 %v1192
      %v1707 = vpop.f32.mrf.mxu0
      %v1708 = vadd.f32 %v682, %v1707
      %v1709 = vpop.f32.mrf.mxu0
      %v1710 = vpop.f32.mrf.mxu0
      %v1711 = vadd.f32 %v682, %v1710
      %v1712 = vpop.f32.mrf.mxu0
      %1713 = vmatprep.mubr.bf16.mxu0 0
      %1714 = vmatmul.mubr.bf16.gmra.mxu0 %v1195
      %v1715 = vpop.f32.mrf.mxu0
      %v1716 = vadd.f32 %v682, %v1715
      %v1717 = vpop.f32.mrf.mxu0
      %v1718 = vpop.f32.mrf.mxu0
      %v1719 = vadd.f32 %v682, %v1718
      %v1720 = vpop.f32.mrf.mxu0
      %1721 = vmatprep.mubr.bf16.mxu0 0
      %1722 = vmatmul.mubr.bf16.gmra.mxu0 %v1198
      %v1723 = vpop.f32.mrf.mxu0
      %v1724 = vadd.f32 %v682, %v1723
      %v1725 = vpop.f32.mrf.mxu0
      %v1726 = vpop.f32.mrf.mxu0
      %v1727 = vadd.f32 %v682, %v1726
      %v1728 = vpop.f32.mrf.mxu0
      %1729 = vmatprep.mubr.bf16.mxu0 0
      %1730 = vmatmul.mubr.bf16.gmra.mxu0 %v1201
      %v1731 = vpop.f32.mrf.mxu0
      %v1732 = vadd.f32 %v682, %v1731
      %v1733 = vpop.f32.mrf.mxu0
      %v1734 = vpop.f32.mrf.mxu0
      %v1735 = vadd.f32 %v682, %v1734
      %v1736 = vpop.f32.mrf.mxu0
      %1737 = vmatprep.mubr.bf16.mxu0 0
      %1738 = vmatmul.mubr.bf16.gmra.mxu0 %v1204
      %v1739 = vpop.f32.mrf.mxu0
      %v1740 = vadd.f32 %v682, %v1739
      %v1741 = vpop.f32.mrf.mxu0
      %v1742 = vpop.f32.mrf.mxu0
      %v1743 = vadd.f32 %v682, %v1742
      %v1744 = vpop.f32.mrf.mxu0
      %1745 = vmatprep.mubr.bf16.mxu0 0
      %1746 = vmatmul.mubr.bf16.gmra.mxu0 %v1207
      %v1747 = vpop.f32.mrf.mxu0
      %v1748 = vadd.f32 %v682, %v1747
      %v1749 = vpop.f32.mrf.mxu0
      %v1750 = vpop.f32.mrf.mxu0
      %v1751 = vadd.f32 %v682, %v1750
      %v1752 = vpop.f32.mrf.mxu0
      %1753 = vdwg.mxu0
      %v1754 = vld [vmem:[%s512] sm:$0xff]
      %v1755 = vld [vmem:[%s512 + $0x8] sm:$0xff]
      %v1756 = vld [vmem:[%s512 + $0x10] sm:$0xff]
      %v1757 = vld [vmem:[%s512 + $0x18] sm:$0xff]
      %v1758 = vld [vmem:[%s512 + $0x20] sm:$0xff]
      %v1759 = vld [vmem:[%s512 + $0x28] sm:$0xff]
      %v1760 = vld [vmem:[%s512 + $0x30] sm:$0xff]
      %v1761 = vld [vmem:[%s512 + $0x38] sm:$0xff]
      %v1762 = vld [vmem:[%s512 + $0x40] sm:$0xff]
      %v1763 = vld [vmem:[%s512 + $0x48] sm:$0xff]
      %v1764 = vld [vmem:[%s512 + $0x50] sm:$0xff]
      %v1765 = vld [vmem:[%s512 + $0x58] sm:$0xff]
      %v1766 = vld [vmem:[%s512 + $0x60] sm:$0xff]
      %v1767 = vld [vmem:[%s512 + $0x68] sm:$0xff]
      %v1768 = vld [vmem:[%s512 + $0x70] sm:$0xff]
      %v1769 = vld [vmem:[%s512 + $0x78] sm:$0xff]
      %vm1770 = vcmp.gt.s32.totalorder %v1754, 0
      %vm1771 = vcmp.gt.s32.totalorder %v1755, 0
      %vm1772 = vcmp.gt.s32.totalorder %v1756, 0
      %vm1773 = vcmp.gt.s32.totalorder %v1757, 0
      %vm1774 = vcmp.gt.s32.totalorder %v1758, 0
      %vm1775 = vcmp.gt.s32.totalorder %v1759, 0
      %vm1776 = vcmp.gt.s32.totalorder %v1760, 0
      %vm1777 = vcmp.gt.s32.totalorder %v1761, 0
      %vm1778 = vcmp.gt.s32.totalorder %v1762, 0
      %vm1779 = vcmp.gt.s32.totalorder %v1763, 0
      %vm1780 = vcmp.gt.s32.totalorder %v1764, 0
      %vm1781 = vcmp.gt.s32.totalorder %v1765, 0
      %vm1782 = vcmp.gt.s32.totalorder %v1766, 0
      %vm1783 = vcmp.gt.s32.totalorder %v1767, 0
      %vm1784 = vcmp.gt.s32.totalorder %v1768, 0
      %vm1785 = vcmp.gt.s32.totalorder %v1769, 0
      %vm1786 = vcmp.gt.s32.totalorder %v1754, 1
      %vm1787 = vcmp.gt.s32.totalorder %v1755, 1
      %vm1788 = vcmp.gt.s32.totalorder %v1756, 1
      %vm1789 = vcmp.gt.s32.totalorder %v1757, 1
      %vm1790 = vcmp.gt.s32.totalorder %v1758, 1
      %vm1791 = vcmp.gt.s32.totalorder %v1759, 1
      %vm1792 = vcmp.gt.s32.totalorder %v1760, 1
      %vm1793 = vcmp.gt.s32.totalorder %v1761, 1
      %vm1794 = vcmp.gt.s32.totalorder %v1762, 1
      %vm1795 = vcmp.gt.s32.totalorder %v1763, 1
      %vm1796 = vcmp.gt.s32.totalorder %v1764, 1
      %vm1797 = vcmp.gt.s32.totalorder %v1765, 1
      %vm1798 = vcmp.gt.s32.totalorder %v1766, 1
      %vm1799 = vcmp.gt.s32.totalorder %v1767, 1
      %vm1800 = vcmp.gt.s32.totalorder %v1768, 1
      %vm1801 = vcmp.gt.s32.totalorder %v1769, 1
      %vm1802 = vcmp.gt.s32.totalorder %v1754, 2
      %vm1803 = vcmp.gt.s32.totalorder %v1755, 2
      %vm1804 = vcmp.gt.s32.totalorder %v1756, 2
      %vm1805 = vcmp.gt.s32.totalorder %v1757, 2
      %vm1806 = vcmp.gt.s32.totalorder %v1758, 2
      %vm1807 = vcmp.gt.s32.totalorder %v1759, 2
      %vm1808 = vcmp.gt.s32.totalorder %v1760, 2
      %vm1809 = vcmp.gt.s32.totalorder %v1761, 2
      %vm1810 = vcmp.gt.s32.totalorder %v1762, 2
      %vm1811 = vcmp.gt.s32.totalorder %v1763, 2
      %vm1812 = vcmp.gt.s32.totalorder %v1764, 2
      %vm1813 = vcmp.gt.s32.totalorder %v1765, 2
      %vm1814 = vcmp.gt.s32.totalorder %v1766, 2
      %vm1815 = vcmp.gt.s32.totalorder %v1767, 2
      %vm1816 = vcmp.gt.s32.totalorder %v1768, 2
      %vm1817 = vcmp.gt.s32.totalorder %v1769, 2
      %vm1818 = vcmp.gt.s32.totalorder %v1754, 3
      %vm1819 = vcmp.gt.s32.totalorder %v1755, 3
      %vm1820 = vcmp.gt.s32.totalorder %v1756, 3
      %vm1821 = vcmp.gt.s32.totalorder %v1757, 3
      %vm1822 = vcmp.gt.s32.totalorder %v1758, 3
      %vm1823 = vcmp.gt.s32.totalorder %v1759, 3
      %vm1824 = vcmp.gt.s32.totalorder %v1760, 3
      %vm1825 = vcmp.gt.s32.totalorder %v1761, 3
      %vm1826 = vcmp.gt.s32.totalorder %v1762, 3
      %vm1827 = vcmp.gt.s32.totalorder %v1763, 3
      %vm1828 = vcmp.gt.s32.totalorder %v1764, 3
      %vm1829 = vcmp.gt.s32.totalorder %v1765, 3
      %vm1830 = vcmp.gt.s32.totalorder %v1766, 3
      %vm1831 = vcmp.gt.s32.totalorder %v1767, 3
      %vm1832 = vcmp.gt.s32.totalorder %v1768, 3
      %vm1833 = vcmp.gt.s32.totalorder %v1769, 3
      %vm1834 = vcmp.gt.s32.totalorder %v1754, 4
      %vm1835 = vcmp.gt.s32.totalorder %v1755, 4
      %vm1836 = vcmp.gt.s32.totalorder %v1756, 4
      %vm1837 = vcmp.gt.s32.totalorder %v1757, 4
      %vm1838 = vcmp.gt.s32.totalorder %v1758, 4
      %vm1839 = vcmp.gt.s32.totalorder %v1759, 4
      %vm1840 = vcmp.gt.s32.totalorder %v1760, 4
      %vm1841 = vcmp.gt.s32.totalorder %v1761, 4
      %vm1842 = vcmp.gt.s32.totalorder %v1762, 4
      %vm1843 = vcmp.gt.s32.totalorder %v1763, 4
      %vm1844 = vcmp.gt.s32.totalorder %v1764, 4
      %vm1845 = vcmp.gt.s32.totalorder %v1765, 4
      %vm1846 = vcmp.gt.s32.totalorder %v1766, 4
      %vm1847 = vcmp.gt.s32.totalorder %v1767, 4
      %vm1848 = vcmp.gt.s32.totalorder %v1768, 4
      %vm1849 = vcmp.gt.s32.totalorder %v1769, 4
      %vm1850 = vcmp.gt.s32.totalorder %v1754, 5
      %vm1851 = vcmp.gt.s32.totalorder %v1755, 5
      %vm1852 = vcmp.gt.s32.totalorder %v1756, 5
      %vm1853 = vcmp.gt.s32.totalorder %v1757, 5
      %vm1854 = vcmp.gt.s32.totalorder %v1758, 5
      %vm1855 = vcmp.gt.s32.totalorder %v1759, 5
      %vm1856 = vcmp.gt.s32.totalorder %v1760, 5
      %vm1857 = vcmp.gt.s32.totalorder %v1761, 5
      %vm1858 = vcmp.gt.s32.totalorder %v1762, 5
      %vm1859 = vcmp.gt.s32.totalorder %v1763, 5
      %vm1860 = vcmp.gt.s32.totalorder %v1764, 5
      %vm1861 = vcmp.gt.s32.totalorder %v1765, 5
      %vm1862 = vcmp.gt.s32.totalorder %v1766, 5
      %vm1863 = vcmp.gt.s32.totalorder %v1767, 5
      %vm1864 = vcmp.gt.s32.totalorder %v1768, 5
      %vm1865 = vcmp.gt.s32.totalorder %v1769, 5
      %vm1866 = vcmp.gt.s32.totalorder %v1754, 6
      %vm1867 = vcmp.gt.s32.totalorder %v1755, 6
      %vm1868 = vcmp.gt.s32.totalorder %v1756, 6
      %vm1869 = vcmp.gt.s32.totalorder %v1757, 6
      %vm1870 = vcmp.gt.s32.totalorder %v1758, 6
      %vm1871 = vcmp.gt.s32.totalorder %v1759, 6
      %vm1872 = vcmp.gt.s32.totalorder %v1760, 6
      %vm1873 = vcmp.gt.s32.totalorder %v1761, 6
      %vm1874 = vcmp.gt.s32.totalorder %v1762, 6
      %vm1875 = vcmp.gt.s32.totalorder %v1763, 6
      %vm1876 = vcmp.gt.s32.totalorder %v1764, 6
      %vm1877 = vcmp.gt.s32.totalorder %v1765, 6
      %vm1878 = vcmp.gt.s32.totalorder %v1766, 6
      %vm1879 = vcmp.gt.s32.totalorder %v1767, 6
      %vm1880 = vcmp.gt.s32.totalorder %v1768, 6
      %vm1881 = vcmp.gt.s32.totalorder %v1769, 6
      %vm1882 = vcmp.gt.s32.totalorder %v1754, 7
      %vm1883 = vcmp.gt.s32.totalorder %v1755, 7
      %vm1884 = vcmp.gt.s32.totalorder %v1756, 7
      %vm1885 = vcmp.gt.s32.totalorder %v1757, 7
      %vm1886 = vcmp.gt.s32.totalorder %v1758, 7
      %vm1887 = vcmp.gt.s32.totalorder %v1759, 7
      %vm1888 = vcmp.gt.s32.totalorder %v1760, 7
      %vm1889 = vcmp.gt.s32.totalorder %v1761, 7
      %vm1890 = vcmp.gt.s32.totalorder %v1762, 7
      %vm1891 = vcmp.gt.s32.totalorder %v1763, 7
      %vm1892 = vcmp.gt.s32.totalorder %v1764, 7
      %vm1893 = vcmp.gt.s32.totalorder %v1765, 7
      %vm1894 = vcmp.gt.s32.totalorder %v1766, 7
      %vm1895 = vcmp.gt.s32.totalorder %v1767, 7
      %vm1896 = vcmp.gt.s32.totalorder %v1768, 7
      %vm1897 = vcmp.gt.s32.totalorder %v1769, 7
      %v1914 = vunpack.c.l.b16 %v533
      %v1915 = vunpack.c.l.b16 %v534
      %v1916 = vunpack.c.l.b16 %v535
      %v1917 = vunpack.c.l.b16 %v536
      %v1918 = vunpack.c.l.b16 %v537
      %v1919 = vunpack.c.l.b16 %v538
      %v1920 = vunpack.c.l.b16 %v539
      %v1921 = vunpack.c.l.b16 %v540
      %v1922 = vunpack.c.l.b16 %v541
      %v1923 = vunpack.c.l.b16 %v542
      %v1924 = vunpack.c.l.b16 %v543
      %v1925 = vunpack.c.l.b16 %v544
      %v1926 = vunpack.c.l.b16 %v545
      %v1927 = vunpack.c.l.b16 %v546
      %v1928 = vunpack.c.l.b16 %v547
      %v1929 = vunpack.c.l.b16 %v548
      %v1930 = vpack.c.b16 %v1915, %v1914
      %v1931 = vpack.c.b16 %v1917, %v1916
      %v1932 = vpack.c.b16 %v1919, %v1918
      %v1933 = vpack.c.b16 %v1921, %v1920
      %v1934 = vpack.c.b16 %v1923, %v1922
      %v1935 = vpack.c.b16 %v1925, %v1924
      %v1936 = vpack.c.b16 %v1927, %v1926
      %v1937 = vpack.c.b16 %v1929, %v1928
      %1946 = vmatprep.subr.bf16.mxu0 0
      %1947 = vmatpush1.bf16.msra.mxu0 %v1937
      %1948 = vmatprep.subr.bf16.mxu0 0
      %1949 = vmatpush1.bf16.msra.mxu0 %v1936
      %1950 = vmatprep.subr.bf16.mxu0 0
      %1951 = vmatpush1.bf16.msra.mxu0 %v1935
      %1952 = vmatprep.subr.bf16.mxu0 0
      %1953 = vmatpush1.bf16.msra.mxu0 %v1934
      %1954 = vmatprep.subr.bf16.mxu0 0
      %1955 = vmatpush1.bf16.msra.mxu0 %v1933
      %1956 = vmatprep.subr.bf16.mxu0 0
      %1957 = vmatpush1.bf16.msra.mxu0 %v1932
      %1958 = vmatprep.subr.bf16.mxu0 0
      %1959 = vmatpush1.bf16.msra.mxu0 %v1931
      %1960 = vmatprep.subr.bf16.mxu0 0
      %1961 = vmatpush1.bf16.msra.mxu0 %v1930
      %1962 = vmatprep.subr.bf16.mxu0 0
      %1963 = vmatpush2.bf16.msra.mxu0 0
      %1964 = vmatprep.subr.bf16.mxu0 0
      %1965 = vmatpush2.bf16.msra.mxu0 0
      %1966 = vmatprep.subr.bf16.mxu0 0
      %1967 = vmatpush2.bf16.msra.mxu0 0
      %1968 = vmatprep.subr.bf16.mxu0 0
      %1969 = vmatpush2.bf16.msra.mxu0 0
      %1970 = vmatprep.subr.bf16.mxu0 0
      %1971 = vmatpush2.bf16.msra.mxu0 0
      %1972 = vmatprep.subr.bf16.mxu0 0
      %1973 = vmatpush2.bf16.msra.mxu0 0
      %1974 = vmatprep.subr.bf16.mxu0 0
      %1975 = vmatpush2.bf16.msra.mxu0 0
      %1976 = vmatprep.subr.bf16.mxu0 0
      %1977 = vmatpush2.bf16.msra.mxu0 0
      %1978 = vmatprep.mubr.bf16.mxu0 0
      %1979 = vmatmul.mubr.bf16.gmra.mxu0 0
      %v1980 = vpop.f32.mrf.mxu0
      %v1981 = vadd.f32 0.0, %v1980
      %v1982 = vpop.f32.mrf.mxu0
      %v1983 = vpop.f32.mrf.mxu0
      %v1984 = vadd.f32 0.0, %v1983
      %v1985 = vpop.f32.mrf.mxu0
      %1986 = vmatprep.mubr.bf16.mxu0 0
      %1987 = vmatmul.mubr.bf16.gmra.mxu0 0
      %v1988 = vpop.f32.mrf.mxu0
      %v1989 = vadd.f32 0.0, %v1988
      %v1990 = vpop.f32.mrf.mxu0
      %v1991 = vpop.f32.mrf.mxu0
      %v1992 = vadd.f32 0.0, %v1991
      %v1993 = vpop.f32.mrf.mxu0
      %1994 = vmatprep.mubr.bf16.mxu0 0
      %1995 = vmatmul.mubr.bf16.gmra.mxu0 0
      %v1996 = vpop.f32.mrf.mxu0
      %v1997 = vadd.f32 0.0, %v1996
      %v1998 = vpop.f32.mrf.mxu0
      %v1999 = vpop.f32.mrf.mxu0
      %v2000 = vadd.f32 0.0, %v1999
      %v2001 = vpop.f32.mrf.mxu0
      %2002 = vmatprep.mubr.bf16.mxu0 0
      %2003 = vmatmul.mubr.bf16.gmra.mxu0 0
      %v2004 = vpop.f32.mrf.mxu0
      %v2005 = vadd.f32 0.0, %v2004
      %v2006 = vpop.f32.mrf.mxu0
      %v2007 = vpop.f32.mrf.mxu0
      %v2008 = vadd.f32 0.0, %v2007
      %v2009 = vpop.f32.mrf.mxu0
      %2010 = vmatprep.mubr.bf16.mxu0 0
      %2011 = vmatmul.mubr.bf16.gmra.mxu0 0
      %v2012 = vpop.f32.mrf.mxu0
      %v2013 = vadd.f32 0.0, %v2012
      %v2014 = vpop.f32.mrf.mxu0
      %v2015 = vpop.f32.mrf.mxu0
      %v2016 = vadd.f32 0.0, %v2015
      %v2017 = vpop.f32.mrf.mxu0
      %2018 = vmatprep.mubr.bf16.mxu0 0
      %2019 = vmatmul.mubr.bf16.gmra.mxu0 0
      %v2020 = vpop.f32.mrf.mxu0
      %v2021 = vadd.f32 0.0, %v2020
      %v2022 = vpop.f32.mrf.mxu0
      %v2023 = vpop.f32.mrf.mxu0
      %v2024 = vadd.f32 0.0, %v2023
      %v2025 = vpop.f32.mrf.mxu0
      %2026 = vmatprep.mubr.bf16.mxu0 0
      %2027 = vmatmul.mubr.bf16.gmra.mxu0 0
      %v2028 = vpop.f32.mrf.mxu0
      %v2029 = vadd.f32 0.0, %v2028
      %v2030 = vpop.f32.mrf.mxu0
      %v2031 = vpop.f32.mrf.mxu0
      %v2032 = vadd.f32 0.0, %v2031
      %v2033 = vpop.f32.mrf.mxu0
      %2034 = vmatprep.mubr.bf16.mxu0 0
      %2035 = vmatmul.mubr.bf16.gmra.mxu0 0
      %v2036 = vpop.f32.mrf.mxu0
      %v2037 = vadd.f32 0.0, %v2036
      %v2038 = vpop.f32.mrf.mxu0
      %v2039 = vpop.f32.mrf.mxu0
      %v2040 = vadd.f32 0.0, %v2039
      %v2041 = vpop.f32.mrf.mxu0
      %2042 = vdwg.mxu0
      %v2043 = vadd.f32 %v1244, %v1981
      %v2044 = vadd.f32 %v1247, %v1984
      %v2045 = vadd.f32 %v1252, %v1989
      %v2046 = vadd.f32 %v1255, %v1992
      %v2047 = vadd.f32 %v1260, %v1997
      %v2048 = vadd.f32 %v1263, %v2000
      %v2049 = vadd.f32 %v1268, %v2005
      %v2050 = vadd.f32 %v1271, %v2008
      %v2051 = vadd.f32 %v1276, %v2013
      %v2052 = vadd.f32 %v1279, %v2016
      %v2053 = vadd.f32 %v1284, %v2021
      %v2054 = vadd.f32 %v1287, %v2024
      %v2055 = vadd.f32 %v1292, %v2029
      %v2056 = vadd.f32 %v1295, %v2032
      %v2057 = vadd.f32 %v1300, %v2037
      %v2058 = vadd.f32 %v1303, %v2040
      %v2059 = vtanh.pop %v2043
      %v2060 = vtanh.pop %v2044
      %v2061 = vtanh.pop %v2045
      %v2062 = vtanh.pop %v2046
      %v2063 = vtanh.pop %v2047
      %v2064 = vtanh.pop %v2048
      %v2065 = vtanh.pop %v2049
      %v2066 = vtanh.pop %v2050
      %v2067 = vtanh.pop %v2051
      %v2068 = vtanh.pop %v2052
      %v2069 = vtanh.pop %v2053
      %v2070 = vtanh.pop %v2054
      %v2071 = vtanh.pop %v2055
      %v2072 = vtanh.pop %v2056
      %v2073 = vtanh.pop %v2057
      %v2074 = vtanh.pop %v2058
      %v2075 = vmax.f32 %v2059, -1e+30
      %v2076 = vmax.f32 %v2060, -1e+30
      %v2077 = vmax.f32 %v2061, -1e+30
      %v2078 = vmax.f32 %v2062, -1e+30
      %v2079 = vmax.f32 %v2063, -1e+30
      %v2080 = vmax.f32 %v2064, -1e+30
      %v2081 = vmax.f32 %v2065, -1e+30
      %v2082 = vmax.f32 %v2066, -1e+30
      %v2083 = vmax.f32 %v2067, -1e+30
      %v2084 = vmax.f32 %v2068, -1e+30
      %v2085 = vmax.f32 %v2069, -1e+30
      %v2086 = vmax.f32 %v2070, -1e+30
      %v2087 = vmax.f32 %v2071, -1e+30
      %v2088 = vmax.f32 %v2072, -1e+30
      %v2089 = vmax.f32 %v2073, -1e+30
      %v2090 = vmax.f32 %v2074, -1e+30
      %v2091 = vsel %vm1770, 1, 0
      %v2092 = vsel %vm1771, 1, 0
      %v2093 = vsel %vm1772, 1, 0
      %v2094 = vsel %vm1773, 1, 0
      %v2095 = vsel %vm1774, 1, 0
      %v2096 = vsel %vm1775, 1, 0
      %v2097 = vsel %vm1776, 1, 0
      %v2098 = vsel %vm1777, 1, 0
      %v2099 = vsel %vm1778, 1, 0
      %v2100 = vsel %vm1779, 1, 0
      %v2101 = vsel %vm1780, 1, 0
      %v2102 = vsel %vm1781, 1, 0
      %v2103 = vsel %vm1782, 1, 0
      %v2104 = vsel %vm1783, 1, 0
      %v2105 = vsel %vm1784, 1, 0
      %v2106 = vsel %vm1785, 1, 0
      %2107 = vset.pattern.permute.xlu0 0
      %2108 = vperm.xlu0 %2107, %v2091
      %v2109 = vpop.permute.xlu0 %2108
      %2110 = vset.pattern.permute.xlu0 0
      %2111 = vperm.xlu0 %2110, %v2092
      %v2112 = vpop.permute.xlu0 %2111
      %2113 = vset.pattern.permute.xlu0 0
      %2114 = vperm.xlu0 %2113, %v2093
      %v2115 = vpop.permute.xlu0 %2114
      %2116 = vset.pattern.permute.xlu0 0
      %2117 = vperm.xlu0 %2116, %v2094
      %v2118 = vpop.permute.xlu0 %2117
      %2119 = vset.pattern.permute.xlu0 0
      %2120 = vperm.xlu0 %2119, %v2095
      %v2121 = vpop.permute.xlu0 %2120
      %2122 = vset.pattern.permute.xlu0 0
      %2123 = vperm.xlu0 %2122, %v2096
      %v2124 = vpop.permute.xlu0 %2123
      %2125 = vset.pattern.permute.xlu0 0
      %2126 = vperm.xlu0 %2125, %v2097
      %v2127 = vpop.permute.xlu0 %2126
      %2128 = vset.pattern.permute.xlu0 0
      %2129 = vperm.xlu0 %2128, %v2098
      %v2130 = vpop.permute.xlu0 %2129
      %2131 = vset.pattern.permute.xlu0 0
      %2132 = vperm.xlu0 %2131, %v2099
      %v2133 = vpop.permute.xlu0 %2132
      %2134 = vset.pattern.permute.xlu0 0
      %2135 = vperm.xlu0 %2134, %v2100
      %v2136 = vpop.permute.xlu0 %2135
      %2137 = vset.pattern.permute.xlu0 0
      %2138 = vperm.xlu0 %2137, %v2101
      %v2139 = vpop.permute.xlu0 %2138
      %2140 = vset.pattern.permute.xlu0 0
      %2141 = vperm.xlu0 %2140, %v2102
      %v2142 = vpop.permute.xlu0 %2141
      %2143 = vset.pattern.permute.xlu0 0
      %2144 = vperm.xlu0 %2143, %v2103
      %v2145 = vpop.permute.xlu0 %2144
      %2146 = vset.pattern.permute.xlu0 0
      %2147 = vperm.xlu0 %2146, %v2104
      %v2148 = vpop.permute.xlu0 %2147
      %2149 = vset.pattern.permute.xlu0 0
      %2150 = vperm.xlu0 %2149, %v2105
      %v2151 = vpop.permute.xlu0 %2150
      %2152 = vset.pattern.permute.xlu0 0
      %2153 = vperm.xlu0 %2152, %v2106
      %v2154 = vpop.permute.xlu0 %2153
      %vm2155 = vcmp.eq.s32.totalorder %v2109, 1
      %vm2156 = vcmp.eq.s32.totalorder %v2112, 1
      %vm2157 = vcmp.eq.s32.totalorder %v2115, 1
      %vm2158 = vcmp.eq.s32.totalorder %v2118, 1
      %vm2159 = vcmp.eq.s32.totalorder %v2121, 1
      %vm2160 = vcmp.eq.s32.totalorder %v2124, 1
      %vm2161 = vcmp.eq.s32.totalorder %v2127, 1
      %vm2162 = vcmp.eq.s32.totalorder %v2130, 1
      %vm2163 = vcmp.eq.s32.totalorder %v2133, 1
      %vm2164 = vcmp.eq.s32.totalorder %v2136, 1
      %vm2165 = vcmp.eq.s32.totalorder %v2139, 1
      %vm2166 = vcmp.eq.s32.totalorder %v2142, 1
      %vm2167 = vcmp.eq.s32.totalorder %v2145, 1
      %vm2168 = vcmp.eq.s32.totalorder %v2148, 1
      %vm2169 = vcmp.eq.s32.totalorder %v2151, 1
      %vm2170 = vcmp.eq.s32.totalorder %v2154, 1
      %v2171 = vsel %vm2155, %v2075, -1e+30
      %v2172 = vsel %vm2156, %v2076, -1e+30
      %v2173 = vsel %vm2157, %v2077, -1e+30
      %v2174 = vsel %vm2158, %v2078, -1e+30
      %v2175 = vsel %vm2159, %v2079, -1e+30
      %v2176 = vsel %vm2160, %v2080, -1e+30
      %v2177 = vsel %vm2161, %v2081, -1e+30
      %v2178 = vsel %vm2162, %v2082, -1e+30
      %v2179 = vsel %vm2163, %v2083, -1e+30
      %v2180 = vsel %vm2164, %v2084, -1e+30
      %v2181 = vsel %vm2165, %v2085, -1e+30
      %v2182 = vsel %vm2166, %v2086, -1e+30
      %v2183 = vsel %vm2167, %v2087, -1e+30
      %v2184 = vsel %vm2168, %v2088, -1e+30
      %v2185 = vsel %vm2169, %v2089, -1e+30
      %v2186 = vsel %vm2170, %v2090, -1e+30
      %v2187 = vsel %vm2155, %v2059, 0.0
      %v2188 = vsel %vm2156, %v2060, 0.0
      %v2189 = vsel %vm2157, %v2061, 0.0
      %v2190 = vsel %vm2158, %v2062, 0.0
      %v2191 = vsel %vm2159, %v2063, 0.0
      %v2192 = vsel %vm2160, %v2064, 0.0
      %v2193 = vsel %vm2161, %v2065, 0.0
      %v2194 = vsel %vm2162, %v2066, 0.0
      %v2195 = vsel %vm2163, %v2067, 0.0
      %v2196 = vsel %vm2164, %v2068, 0.0
      %v2197 = vsel %vm2165, %v2069, 0.0
      %v2198 = vsel %vm2166, %v2070, 0.0
      %v2199 = vsel %vm2167, %v2071, 0.0
      %v2200 = vsel %vm2168, %v2072, 0.0
      %v2201 = vsel %vm2169, %v2073, 0.0
      %v2202 = vsel %vm2170, %v2074, 0.0
      %v2203 = vpack.c.bf16 %v2188, %v2187
      %v2204 = vpack.c.bf16 %v2190, %v2189
      %v2205 = vpack.c.bf16 %v2192, %v2191
      %v2206 = vpack.c.bf16 %v2194, %v2193
      %v2207 = vpack.c.bf16 %v2196, %v2195
      %v2208 = vpack.c.bf16 %v2198, %v2197
      %v2209 = vpack.c.bf16 %v2200, %v2199
      %v2210 = vpack.c.bf16 %v2202, %v2201
      %2211 = vmatprep.subr.bf16.mxu0 0
      %2212 = vmatpush1.bf16.msra.mxu0 %v1937
      %2213 = vmatprep.subr.bf16.mxu0 0
      %2214 = vmatpush1.bf16.msra.mxu0 %v1936
      %2215 = vmatprep.subr.bf16.mxu0 0
      %2216 = vmatpush1.bf16.msra.mxu0 %v1935
      %2217 = vmatprep.subr.bf16.mxu0 0
      %2218 = vmatpush1.bf16.msra.mxu0 %v1934
      %2219 = vmatprep.subr.bf16.mxu0 0
      %2220 = vmatpush1.bf16.msra.mxu0 %v1933
      %2221 = vmatprep.subr.bf16.mxu0 0
      %2222 = vmatpush1.bf16.msra.mxu0 %v1932
      %2223 = vmatprep.subr.bf16.mxu0 0
      %2224 = vmatpush1.bf16.msra.mxu0 %v1931
      %2225 = vmatprep.subr.bf16.mxu0 0
      %2226 = vmatpush1.bf16.msra.mxu0 %v1930
      %2227 = vmatprep.subr.bf16.mxu0 0
      %2228 = vmatpush2.bf16.msra.mxu0 0
      %2229 = vmatprep.subr.bf16.mxu0 0
      %2230 = vmatpush2.bf16.msra.mxu0 0
      %2231 = vmatprep.subr.bf16.mxu0 0
      %2232 = vmatpush2.bf16.msra.mxu0 0
      %2233 = vmatprep.subr.bf16.mxu0 0
      %2234 = vmatpush2.bf16.msra.mxu0 0
      %2235 = vmatprep.subr.bf16.mxu0 0
      %2236 = vmatpush2.bf16.msra.mxu0 0
      %2237 = vmatprep.subr.bf16.mxu0 0
      %2238 = vmatpush2.bf16.msra.mxu0 0
      %2239 = vmatprep.subr.bf16.mxu0 0
      %2240 = vmatpush2.bf16.msra.mxu0 0
      %2241 = vmatprep.subr.bf16.mxu0 0
      %2242 = vmatpush2.bf16.msra.mxu0 0
      %2243 = vmatprep.mubr.bf16.mxu0 0
      %2244 = vmatmul.mubr.bf16.gmra.mxu0 %v2203
      %v2245 = vpop.f32.mrf.mxu0
      %v2246 = vadd.f32 0.0, %v2245
      %v2247 = vpop.f32.mrf.mxu0
      %v2248 = vpop.f32.mrf.mxu0
      %v2249 = vadd.f32 0.0, %v2248
      %v2250 = vpop.f32.mrf.mxu0
      %2251 = vmatprep.mubr.bf16.mxu0 0
      %2252 = vmatmul.mubr.bf16.gmra.mxu0 %v2204
      %v2253 = vpop.f32.mrf.mxu0
      %v2254 = vadd.f32 0.0, %v2253
      %v2255 = vpop.f32.mrf.mxu0
      %v2256 = vpop.f32.mrf.mxu0
      %v2257 = vadd.f32 0.0, %v2256
      %v2258 = vpop.f32.mrf.mxu0
      %2259 = vmatprep.mubr.bf16.mxu0 0
      %2260 = vmatmul.mubr.bf16.gmra.mxu0 %v2205
      %v2261 = vpop.f32.mrf.mxu0
      %v2262 = vadd.f32 0.0, %v2261
      %v2263 = vpop.f32.mrf.mxu0
      %v2264 = vpop.f32.mrf.mxu0
      %v2265 = vadd.f32 0.0, %v2264
      %v2266 = vpop.f32.mrf.mxu0
      %2267 = vmatprep.mubr.bf16.mxu0 0
      %2268 = vmatmul.mubr.bf16.gmra.mxu0 %v2206
      %v2269 = vpop.f32.mrf.mxu0
      %v2270 = vadd.f32 0.0, %v2269
      %v2271 = vpop.f32.mrf.mxu0
      %v2272 = vpop.f32.mrf.mxu0
      %v2273 = vadd.f32 0.0, %v2272
      %v2274 = vpop.f32.mrf.mxu0
      %2275 = vmatprep.mubr.bf16.mxu0 0
      %2276 = vmatmul.mubr.bf16.gmra.mxu0 %v2207
      %v2277 = vpop.f32.mrf.mxu0
      %v2278 = vadd.f32 0.0, %v2277
      %v2279 = vpop.f32.mrf.mxu0
      %v2280 = vpop.f32.mrf.mxu0
      %v2281 = vadd.f32 0.0, %v2280
      %v2282 = vpop.f32.mrf.mxu0
      %2283 = vmatprep.mubr.bf16.mxu0 0
      %2284 = vmatmul.mubr.bf16.gmra.mxu0 %v2208
      %v2285 = vpop.f32.mrf.mxu0
      %v2286 = vadd.f32 0.0, %v2285
      %v2287 = vpop.f32.mrf.mxu0
      %v2288 = vpop.f32.mrf.mxu0
      %v2289 = vadd.f32 0.0, %v2288
      %v2290 = vpop.f32.mrf.mxu0
      %2291 = vmatprep.mubr.bf16.mxu0 0
      %2292 = vmatmul.mubr.bf16.gmra.mxu0 %v2209
      %v2293 = vpop.f32.mrf.mxu0
      %v2294 = vadd.f32 0.0, %v2293
      %v2295 = vpop.f32.mrf.mxu0
      %v2296 = vpop.f32.mrf.mxu0
      %v2297 = vadd.f32 0.0, %v2296
      %v2298 = vpop.f32.mrf.mxu0
      %2299 = vmatprep.mubr.bf16.mxu0 0
      %2300 = vmatmul.mubr.bf16.gmra.mxu0 %v2210
      %v2301 = vpop.f32.mrf.mxu0
      %v2302 = vadd.f32 0.0, %v2301
      %v2303 = vpop.f32.mrf.mxu0
      %v2304 = vpop.f32.mrf.mxu0
      %v2305 = vadd.f32 0.0, %v2304
      %v2306 = vpop.f32.mrf.mxu0
      %2307 = vdwg.mxu0
      %v2308 = vadd.f32 %v1308, %v2246
      %v2309 = vadd.f32 %v1311, %v2249
      %v2310 = vadd.f32 %v1316, %v2254
      %v2311 = vadd.f32 %v1319, %v2257
      %v2312 = vadd.f32 %v1324, %v2262
      %v2313 = vadd.f32 %v1327, %v2265
      %v2314 = vadd.f32 %v1332, %v2270
      %v2315 = vadd.f32 %v1335, %v2273
      %v2316 = vadd.f32 %v1340, %v2278
      %v2317 = vadd.f32 %v1343, %v2281
      %v2318 = vadd.f32 %v1348, %v2286
      %v2319 = vadd.f32 %v1351, %v2289
      %v2320 = vadd.f32 %v1356, %v2294
      %v2321 = vadd.f32 %v1359, %v2297
      %v2322 = vadd.f32 %v1364, %v2302
      %v2323 = vadd.f32 %v1367, %v2305
      %v2324 = vtanh.pop %v2308
      %v2325 = vtanh.pop %v2309
      %v2326 = vtanh.pop %v2310
      %v2327 = vtanh.pop %v2311
      %v2328 = vtanh.pop %v2312
      %v2329 = vtanh.pop %v2313
      %v2330 = vtanh.pop %v2314
      %v2331 = vtanh.pop %v2315
      %v2332 = vtanh.pop %v2316
      %v2333 = vtanh.pop %v2317
      %v2334 = vtanh.pop %v2318
      %v2335 = vtanh.pop %v2319
      %v2336 = vtanh.pop %v2320
      %v2337 = vtanh.pop %v2321
      %v2338 = vtanh.pop %v2322
      %v2339 = vtanh.pop %v2323
      %v2340 = vmax.f32 %v2171, %v2324
      %v2341 = vmax.f32 %v2172, %v2325
      %v2342 = vmax.f32 %v2173, %v2326
      %v2343 = vmax.f32 %v2174, %v2327
      %v2344 = vmax.f32 %v2175, %v2328
      %v2345 = vmax.f32 %v2176, %v2329
      %v2346 = vmax.f32 %v2177, %v2330
      %v2347 = vmax.f32 %v2178, %v2331
      %v2348 = vmax.f32 %v2179, %v2332
      %v2349 = vmax.f32 %v2180, %v2333
      %v2350 = vmax.f32 %v2181, %v2334
      %v2351 = vmax.f32 %v2182, %v2335
      %v2352 = vmax.f32 %v2183, %v2336
      %v2353 = vmax.f32 %v2184, %v2337
      %v2354 = vmax.f32 %v2185, %v2338
      %v2355 = vmax.f32 %v2186, %v2339
      %v2356 = vsel %vm1786, 1, 0
      %v2357 = vsel %vm1787, 1, 0
      %v2358 = vsel %vm1788, 1, 0
      %v2359 = vsel %vm1789, 1, 0
      %v2360 = vsel %vm1790, 1, 0
      %v2361 = vsel %vm1791, 1, 0
      %v2362 = vsel %vm1792, 1, 0
      %v2363 = vsel %vm1793, 1, 0
      %v2364 = vsel %vm1794, 1, 0
      %v2365 = vsel %vm1795, 1, 0
      %v2366 = vsel %vm1796, 1, 0
      %v2367 = vsel %vm1797, 1, 0
      %v2368 = vsel %vm1798, 1, 0
      %v2369 = vsel %vm1799, 1, 0
      %v2370 = vsel %vm1800, 1, 0
      %v2371 = vsel %vm1801, 1, 0
      %2372 = vset.pattern.permute.xlu0 0
      %2373 = vperm.xlu0 %2372, %v2356
      %v2374 = vpop.permute.xlu0 %2373
      %2375 = vset.pattern.permute.xlu0 0
      %2376 = vperm.xlu0 %2375, %v2357
      %v2377 = vpop.permute.xlu0 %2376
      %2378 = vset.pattern.permute.xlu0 0
      %2379 = vperm.xlu0 %2378, %v2358
      %v2380 = vpop.permute.xlu0 %2379
      %2381 = vset.pattern.permute.xlu0 0
      %2382 = vperm.xlu0 %2381, %v2359
      %v2383 = vpop.permute.xlu0 %2382
      %2384 = vset.pattern.permute.xlu0 0
      %2385 = vperm.xlu0 %2384, %v2360
      %v2386 = vpop.permute.xlu0 %2385
      %2387 = vset.pattern.permute.xlu0 0
      %2388 = vperm.xlu0 %2387, %v2361
      %v2389 = vpop.permute.xlu0 %2388
      %2390 = vset.pattern.permute.xlu0 0
      %2391 = vperm.xlu0 %2390, %v2362
      %v2392 = vpop.permute.xlu0 %2391
      %2393 = vset.pattern.permute.xlu0 0
      %2394 = vperm.xlu0 %2393, %v2363
      %v2395 = vpop.permute.xlu0 %2394
      %2396 = vset.pattern.permute.xlu0 0
      %2397 = vperm.xlu0 %2396, %v2364
      %v2398 = vpop.permute.xlu0 %2397
      %2399 = vset.pattern.permute.xlu0 0
      %2400 = vperm.xlu0 %2399, %v2365
      %v2401 = vpop.permute.xlu0 %2400
      %2402 = vset.pattern.permute.xlu0 0
      %2403 = vperm.xlu0 %2402, %v2366
      %v2404 = vpop.permute.xlu0 %2403
      %2405 = vset.pattern.permute.xlu0 0
      %2406 = vperm.xlu0 %2405, %v2367
      %v2407 = vpop.permute.xlu0 %2406
      %2408 = vset.pattern.permute.xlu0 0
      %2409 = vperm.xlu0 %2408, %v2368
      %v2410 = vpop.permute.xlu0 %2409
      %2411 = vset.pattern.permute.xlu0 0
      %2412 = vperm.xlu0 %2411, %v2369
      %v2413 = vpop.permute.xlu0 %2412
      %2414 = vset.pattern.permute.xlu0 0
      %2415 = vperm.xlu0 %2414, %v2370
      %v2416 = vpop.permute.xlu0 %2415
      %2417 = vset.pattern.permute.xlu0 0
      %2418 = vperm.xlu0 %2417, %v2371
      %v2419 = vpop.permute.xlu0 %2418
      %vm2420 = vcmp.eq.s32.totalorder %v2374, 1
      %vm2421 = vcmp.eq.s32.totalorder %v2377, 1
      %vm2422 = vcmp.eq.s32.totalorder %v2380, 1
      %vm2423 = vcmp.eq.s32.totalorder %v2383, 1
      %vm2424 = vcmp.eq.s32.totalorder %v2386, 1
      %vm2425 = vcmp.eq.s32.totalorder %v2389, 1
      %vm2426 = vcmp.eq.s32.totalorder %v2392, 1
      %vm2427 = vcmp.eq.s32.totalorder %v2395, 1
      %vm2428 = vcmp.eq.s32.totalorder %v2398, 1
      %vm2429 = vcmp.eq.s32.totalorder %v2401, 1
      %vm2430 = vcmp.eq.s32.totalorder %v2404, 1
      %vm2431 = vcmp.eq.s32.totalorder %v2407, 1
      %vm2432 = vcmp.eq.s32.totalorder %v2410, 1
      %vm2433 = vcmp.eq.s32.totalorder %v2413, 1
      %vm2434 = vcmp.eq.s32.totalorder %v2416, 1
      %vm2435 = vcmp.eq.s32.totalorder %v2419, 1
      %v2436 = vsel %vm2420, %v2340, %v2171
      %v2437 = vsel %vm2421, %v2341, %v2172
      %v2438 = vsel %vm2422, %v2342, %v2173
      %v2439 = vsel %vm2423, %v2343, %v2174
      %v2440 = vsel %vm2424, %v2344, %v2175
      %v2441 = vsel %vm2425, %v2345, %v2176
      %v2442 = vsel %vm2426, %v2346, %v2177
      %v2443 = vsel %vm2427, %v2347, %v2178
      %v2444 = vsel %vm2428, %v2348, %v2179
      %v2445 = vsel %vm2429, %v2349, %v2180
      %v2446 = vsel %vm2430, %v2350, %v2181
      %v2447 = vsel %vm2431, %v2351, %v2182
      %v2448 = vsel %vm2432, %v2352, %v2183
      %v2449 = vsel %vm2433, %v2353, %v2184
      %v2450 = vsel %vm2434, %v2354, %v2185
      %v2451 = vsel %vm2435, %v2355, %v2186
      %v2452 = vsel %vm2420, %v2324, %v2187
      %v2453 = vsel %vm2421, %v2325, %v2188
      %v2454 = vsel %vm2422, %v2326, %v2189
      %v2455 = vsel %vm2423, %v2327, %v2190
      %v2456 = vsel %vm2424, %v2328, %v2191
      %v2457 = vsel %vm2425, %v2329, %v2192
      %v2458 = vsel %vm2426, %v2330, %v2193
      %v2459 = vsel %vm2427, %v2331, %v2194
      %v2460 = vsel %vm2428, %v2332, %v2195
      %v2461 = vsel %vm2429, %v2333, %v2196
      %v2462 = vsel %vm2430, %v2334, %v2197
      %v2463 = vsel %vm2431, %v2335, %v2198
      %v2464 = vsel %vm2432, %v2336, %v2199
      %v2465 = vsel %vm2433, %v2337, %v2200
      %v2466 = vsel %vm2434, %v2338, %v2201
      %v2467 = vsel %vm2435, %v2339, %v2202
      %v2468 = vpack.c.bf16 %v2453, %v2452
      %v2469 = vpack.c.bf16 %v2455, %v2454
      %v2470 = vpack.c.bf16 %v2457, %v2456
      %v2471 = vpack.c.bf16 %v2459, %v2458
      %v2472 = vpack.c.bf16 %v2461, %v2460
      %v2473 = vpack.c.bf16 %v2463, %v2462
      %v2474 = vpack.c.bf16 %v2465, %v2464
      %v2475 = vpack.c.bf16 %v2467, %v2466
      %2476 = vmatprep.subr.bf16.mxu0 0
      %2477 = vmatpush1.bf16.msra.mxu0 %v1937
      %2478 = vmatprep.subr.bf16.mxu0 0
      %2479 = vmatpush1.bf16.msra.mxu0 %v1936
      %2480 = vmatprep.subr.bf16.mxu0 0
      %2481 = vmatpush1.bf16.msra.mxu0 %v1935
      %2482 = vmatprep.subr.bf16.mxu0 0
      %2483 = vmatpush1.bf16.msra.mxu0 %v1934
      %2484 = vmatprep.subr.bf16.mxu0 0
      %2485 = vmatpush1.bf16.msra.mxu0 %v1933
      %2486 = vmatprep.subr.bf16.mxu0 0
      %2487 = vmatpush1.bf16.msra.mxu0 %v1932
      %2488 = vmatprep.subr.bf16.mxu0 0
      %2489 = vmatpush1.bf16.msra.mxu0 %v1931
      %2490 = vmatprep.subr.bf16.mxu0 0
      %2491 = vmatpush1.bf16.msra.mxu0 %v1930
      %2492 = vmatprep.subr.bf16.mxu0 0
      %2493 = vmatpush2.bf16.msra.mxu0 0
      %2494 = vmatprep.subr.bf16.mxu0 0
      %2495 = vmatpush2.bf16.msra.mxu0 0
      %2496 = vmatprep.subr.bf16.mxu0 0
      %2497 = vmatpush2.bf16.msra.mxu0 0
      %2498 = vmatprep.subr.bf16.mxu0 0
      %2499 = vmatpush2.bf16.msra.mxu0 0
      %2500 = vmatprep.subr.bf16.mxu0 0
      %2501 = vmatpush2.bf16.msra.mxu0 0
      %2502 = vmatprep.subr.bf16.mxu0 0
      %2503 = vmatpush2.bf16.msra.mxu0 0
      %2504 = vmatprep.subr.bf16.mxu0 0
      %2505 = vmatpush2.bf16.msra.mxu0 0
      %2506 = vmatprep.subr.bf16.mxu0 0
      %2507 = vmatpush2.bf16.msra.mxu0 0
      %2508 = vmatprep.mubr.bf16.mxu0 0
      %2509 = vmatmul.mubr.bf16.gmra.mxu0 %v2468
      %v2510 = vpop.f32.mrf.mxu0
      %v2511 = vadd.f32 0.0, %v2510
      %v2512 = vpop.f32.mrf.mxu0
      %v2513 = vpop.f32.mrf.mxu0
      %v2514 = vadd.f32 0.0, %v2513
      %v2515 = vpop.f32.mrf.mxu0
      %2516 = vmatprep.mubr.bf16.mxu0 0
      %2517 = vmatmul.mubr.bf16.gmra.mxu0 %v2469
      %v2518 = vpop.f32.mrf.mxu0
      %v2519 = vadd.f32 0.0, %v2518
      %v2520 = vpop.f32.mrf.mxu0
      %v2521 = vpop.f32.mrf.mxu0
      %v2522 = vadd.f32 0.0, %v2521
      %v2523 = vpop.f32.mrf.mxu0
      %2524 = vmatprep.mubr.bf16.mxu0 0
      %2525 = vmatmul.mubr.bf16.gmra.mxu0 %v2470
      %v2526 = vpop.f32.mrf.mxu0
      %v2527 = vadd.f32 0.0, %v2526
      %v2528 = vpop.f32.mrf.mxu0
      %v2529 = vpop.f32.mrf.mxu0
      %v2530 = vadd.f32 0.0, %v2529
      %v2531 = vpop.f32.mrf.mxu0
      %2532 = vmatprep.mubr.bf16.mxu0 0
      %2533 = vmatmul.mubr.bf16.gmra.mxu0 %v2471
      %v2534 = vpop.f32.mrf.mxu0
      %v2535 = vadd.f32 0.0, %v2534
      %v2536 = vpop.f32.mrf.mxu0
      %v2537 = vpop.f32.mrf.mxu0
      %v2538 = vadd.f32 0.0, %v2537
      %v2539 = vpop.f32.mrf.mxu0
      %2540 = vmatprep.mubr.bf16.mxu0 0
      %2541 = vmatmul.mubr.bf16.gmra.mxu0 %v2472
      %v2542 = vpop.f32.mrf.mxu0
      %v2543 = vadd.f32 0.0, %v2542
      %v2544 = vpop.f32.mrf.mxu0
      %v2545 = vpop.f32.mrf.mxu0
      %v2546 = vadd.f32 0.0, %v2545
      %v2547 = vpop.f32.mrf.mxu0
      %2548 = vmatprep.mubr.bf16.mxu0 0
      %2549 = vmatmul.mubr.bf16.gmra.mxu0 %v2473
      %v2550 = vpop.f32.mrf.mxu0
      %v2551 = vadd.f32 0.0, %v2550
      %v2552 = vpop.f32.mrf.mxu0
      %v2553 = vpop.f32.mrf.mxu0
      %v2554 = vadd.f32 0.0, %v2553
      %v2555 = vpop.f32.mrf.mxu0
      %2556 = vmatprep.mubr.bf16.mxu0 0
      %2557 = vmatmul.mubr.bf16.gmra.mxu0 %v2474
      %v2558 = vpop.f32.mrf.mxu0
      %v2559 = vadd.f32 0.0, %v2558
      %v2560 = vpop.f32.mrf.mxu0
      %v2561 = vpop.f32.mrf.mxu0
      %v2562 = vadd.f32 0.0, %v2561
      %v2563 = vpop.f32.mrf.mxu0
      %2564 = vmatprep.mubr.bf16.mxu0 0
      %2565 = vmatmul.mubr.bf16.gmra.mxu0 %v2475
      %v2566 = vpop.f32.mrf.mxu0
      %v2567 = vadd.f32 0.0, %v2566
      %v2568 = vpop.f32.mrf.mxu0
      %v2569 = vpop.f32.mrf.mxu0
      %v2570 = vadd.f32 0.0, %v2569
      %v2571 = vpop.f32.mrf.mxu0
      %2572 = vdwg.mxu0
      %v2573 = vadd.f32 %v1372, %v2511
      %v2574 = vadd.f32 %v1375, %v2514
      %v2575 = vadd.f32 %v1380, %v2519
      %v2576 = vadd.f32 %v1383, %v2522
      %v2577 = vadd.f32 %v1388, %v2527
      %v2578 = vadd.f32 %v1391, %v2530
      %v2579 = vadd.f32 %v1396, %v2535
      %v2580 = vadd.f32 %v1399, %v2538
      %v2581 = vadd.f32 %v1404, %v2543
      %v2582 = vadd.f32 %v1407, %v2546
      %v2583 = vadd.f32 %v1412, %v2551
      %v2584 = vadd.f32 %v1415, %v2554
      %v2585 = vadd.f32 %v1420, %v2559
      %v2586 = vadd.f32 %v1423, %v2562
      %v2587 = vadd.f32 %v1428, %v2567
      %v2588 = vadd.f32 %v1431, %v2570
      %v2589 = vtanh.pop %v2573
      %v2590 = vtanh.pop %v2574
      %v2591 = vtanh.pop %v2575
      %v2592 = vtanh.pop %v2576
      %v2593 = vtanh.pop %v2577
      %v2594 = vtanh.pop %v2578
      %v2595 = vtanh.pop %v2579
      %v2596 = vtanh.pop %v2580
      %v2597 = vtanh.pop %v2581
      %v2598 = vtanh.pop %v2582
      %v2599 = vtanh.pop %v2583
      %v2600 = vtanh.pop %v2584
      %v2601 = vtanh.pop %v2585
      %v2602 = vtanh.pop %v2586
      %v2603 = vtanh.pop %v2587
      %v2604 = vtanh.pop %v2588
      %v2605 = vmax.f32 %v2436, %v2589
      %v2606 = vmax.f32 %v2437, %v2590
      %v2607 = vmax.f32 %v2438, %v2591
      %v2608 = vmax.f32 %v2439, %v2592
      %v2609 = vmax.f32 %v2440, %v2593
      %v2610 = vmax.f32 %v2441, %v2594
      %v2611 = vmax.f32 %v2442, %v2595
      %v2612 = vmax.f32 %v2443, %v2596
      %v2613 = vmax.f32 %v2444, %v2597
      %v2614 = vmax.f32 %v2445, %v2598
      %v2615 = vmax.f32 %v2446, %v2599
      %v2616 = vmax.f32 %v2447, %v2600
      %v2617 = vmax.f32 %v2448, %v2601
      %v2618 = vmax.f32 %v2449, %v2602
      %v2619 = vmax.f32 %v2450, %v2603
      %v2620 = vmax.f32 %v2451, %v2604
      %v2621 = vsel %vm1802, 1, 0
      %v2622 = vsel %vm1803, 1, 0
      %v2623 = vsel %vm1804, 1, 0
      %v2624 = vsel %vm1805, 1, 0
      %v2625 = vsel %vm1806, 1, 0
      %v2626 = vsel %vm1807, 1, 0
      %v2627 = vsel %vm1808, 1, 0
      %v2628 = vsel %vm1809, 1, 0
      %v2629 = vsel %vm1810, 1, 0
      %v2630 = vsel %vm1811, 1, 0
      %v2631 = vsel %vm1812, 1, 0
      %v2632 = vsel %vm1813, 1, 0
      %v2633 = vsel %vm1814, 1, 0
      %v2634 = vsel %vm1815, 1, 0
      %v2635 = vsel %vm1816, 1, 0
      %v2636 = vsel %vm1817, 1, 0
      %2637 = vset.pattern.permute.xlu0 0
      %2638 = vperm.xlu0 %2637, %v2621
      %v2639 = vpop.permute.xlu0 %2638
      %2640 = vset.pattern.permute.xlu0 0
      %2641 = vperm.xlu0 %2640, %v2622
      %v2642 = vpop.permute.xlu0 %2641
      %2643 = vset.pattern.permute.xlu0 0
      %2644 = vperm.xlu0 %2643, %v2623
      %v2645 = vpop.permute.xlu0 %2644
      %2646 = vset.pattern.permute.xlu0 0
      %2647 = vperm.xlu0 %2646, %v2624
      %v2648 = vpop.permute.xlu0 %2647
      %2649 = vset.pattern.permute.xlu0 0
      %2650 = vperm.xlu0 %2649, %v2625
      %v2651 = vpop.permute.xlu0 %2650
      %2652 = vset.pattern.permute.xlu0 0
      %2653 = vperm.xlu0 %2652, %v2626
      %v2654 = vpop.permute.xlu0 %2653
      %2655 = vset.pattern.permute.xlu0 0
      %2656 = vperm.xlu0 %2655, %v2627
      %v2657 = vpop.permute.xlu0 %2656
      %2658 = vset.pattern.permute.xlu0 0
      %2659 = vperm.xlu0 %2658, %v2628
      %v2660 = vpop.permute.xlu0 %2659
      %2661 = vset.pattern.permute.xlu0 0
      %2662 = vperm.xlu0 %2661, %v2629
      %v2663 = vpop.permute.xlu0 %2662
      %2664 = vset.pattern.permute.xlu0 0
      %2665 = vperm.xlu0 %2664, %v2630
      %v2666 = vpop.permute.xlu0 %2665
      %2667 = vset.pattern.permute.xlu0 0
      %2668 = vperm.xlu0 %2667, %v2631
      %v2669 = vpop.permute.xlu0 %2668
      %2670 = vset.pattern.permute.xlu0 0
      %2671 = vperm.xlu0 %2670, %v2632
      %v2672 = vpop.permute.xlu0 %2671
      %2673 = vset.pattern.permute.xlu0 0
      %2674 = vperm.xlu0 %2673, %v2633
      %v2675 = vpop.permute.xlu0 %2674
      %2676 = vset.pattern.permute.xlu0 0
      %2677 = vperm.xlu0 %2676, %v2634
      %v2678 = vpop.permute.xlu0 %2677
      %2679 = vset.pattern.permute.xlu0 0
      %2680 = vperm.xlu0 %2679, %v2635
      %v2681 = vpop.permute.xlu0 %2680
      %2682 = vset.pattern.permute.xlu0 0
      %2683 = vperm.xlu0 %2682, %v2636
      %v2684 = vpop.permute.xlu0 %2683
      %vm2685 = vcmp.eq.s32.totalorder %v2639, 1
      %vm2686 = vcmp.eq.s32.totalorder %v2642, 1
      %vm2687 = vcmp.eq.s32.totalorder %v2645, 1
      %vm2688 = vcmp.eq.s32.totalorder %v2648, 1
      %vm2689 = vcmp.eq.s32.totalorder %v2651, 1
      %vm2690 = vcmp.eq.s32.totalorder %v2654, 1
      %vm2691 = vcmp.eq.s32.totalorder %v2657, 1
      %vm2692 = vcmp.eq.s32.totalorder %v2660, 1
      %vm2693 = vcmp.eq.s32.totalorder %v2663, 1
      %vm2694 = vcmp.eq.s32.totalorder %v2666, 1
      %vm2695 = vcmp.eq.s32.totalorder %v2669, 1
      %vm2696 = vcmp.eq.s32.totalorder %v2672, 1
      %vm2697 = vcmp.eq.s32.totalorder %v2675, 1
      %vm2698 = vcmp.eq.s32.totalorder %v2678, 1
      %vm2699 = vcmp.eq.s32.totalorder %v2681, 1
      %vm2700 = vcmp.eq.s32.totalorder %v2684, 1
      %v2701 = vsel %vm2685, %v2605, %v2436
      %v2702 = vsel %vm2686, %v2606, %v2437
      %v2703 = vsel %vm2687, %v2607, %v2438
      %v2704 = vsel %vm2688, %v2608, %v2439
      %v2705 = vsel %vm2689, %v2609, %v2440
      %v2706 = vsel %vm2690, %v2610, %v2441
      %v2707 = vsel %vm2691, %v2611, %v2442
      %v2708 = vsel %vm2692, %v2612, %v2443
      %v2709 = vsel %vm2693, %v2613, %v2444
      %v2710 = vsel %vm2694, %v2614, %v2445
      %v2711 = vsel %vm2695, %v2615, %v2446
      %v2712 = vsel %vm2696, %v2616, %v2447
      %v2713 = vsel %vm2697, %v2617, %v2448
      %v2714 = vsel %vm2698, %v2618, %v2449
      %v2715 = vsel %vm2699, %v2619, %v2450
      %v2716 = vsel %vm2700, %v2620, %v2451
      %v2717 = vsel %vm2685, %v2589, %v2452
      %v2718 = vsel %vm2686, %v2590, %v2453
      %v2719 = vsel %vm2687, %v2591, %v2454
      %v2720 = vsel %vm2688, %v2592, %v2455
      %v2721 = vsel %vm2689, %v2593, %v2456
      %v2722 = vsel %vm2690, %v2594, %v2457
      %v2723 = vsel %vm2691, %v2595, %v2458
      %v2724 = vsel %vm2692, %v2596, %v2459
      %v2725 = vsel %vm2693, %v2597, %v2460
      %v2726 = vsel %vm2694, %v2598, %v2461
      %v2727 = vsel %vm2695, %v2599, %v2462
      %v2728 = vsel %vm2696, %v2600, %v2463
      %v2729 = vsel %vm2697, %v2601, %v2464
      %v2730 = vsel %vm2698, %v2602, %v2465
      %v2731 = vsel %vm2699, %v2603, %v2466
      %v2732 = vsel %vm2700, %v2604, %v2467
      %v2733 = vpack.c.bf16 %v2718, %v2717
      %v2734 = vpack.c.bf16 %v2720, %v2719
      %v2735 = vpack.c.bf16 %v2722, %v2721
      %v2736 = vpack.c.bf16 %v2724, %v2723
      %v2737 = vpack.c.bf16 %v2726, %v2725
      %v2738 = vpack.c.bf16 %v2728, %v2727
      %v2739 = vpack.c.bf16 %v2730, %v2729
      %v2740 = vpack.c.bf16 %v2732, %v2731
      %2741 = vmatprep.subr.bf16.mxu0 0
      %2742 = vmatpush1.bf16.msra.mxu0 %v1937
      %2743 = vmatprep.subr.bf16.mxu0 0
      %2744 = vmatpush1.bf16.msra.mxu0 %v1936
      %2745 = vmatprep.subr.bf16.mxu0 0
      %2746 = vmatpush1.bf16.msra.mxu0 %v1935
      %2747 = vmatprep.subr.bf16.mxu0 0
      %2748 = vmatpush1.bf16.msra.mxu0 %v1934
      %2749 = vmatprep.subr.bf16.mxu0 0
      %2750 = vmatpush1.bf16.msra.mxu0 %v1933
      %2751 = vmatprep.subr.bf16.mxu0 0
      %2752 = vmatpush1.bf16.msra.mxu0 %v1932
      %2753 = vmatprep.subr.bf16.mxu0 0
      %2754 = vmatpush1.bf16.msra.mxu0 %v1931
      %2755 = vmatprep.subr.bf16.mxu0 0
      %2756 = vmatpush1.bf16.msra.mxu0 %v1930
      %2757 = vmatprep.subr.bf16.mxu0 0
      %2758 = vmatpush2.bf16.msra.mxu0 0
      %2759 = vmatprep.subr.bf16.mxu0 0
      %2760 = vmatpush2.bf16.msra.mxu0 0
      %2761 = vmatprep.subr.bf16.mxu0 0
      %2762 = vmatpush2.bf16.msra.mxu0 0
      %2763 = vmatprep.subr.bf16.mxu0 0
      %2764 = vmatpush2.bf16.msra.mxu0 0
      %2765 = vmatprep.subr.bf16.mxu0 0
      %2766 = vmatpush2.bf16.msra.mxu0 0
      %2767 = vmatprep.subr.bf16.mxu0 0
      %2768 = vmatpush2.bf16.msra.mxu0 0
      %2769 = vmatprep.subr.bf16.mxu0 0
      %2770 = vmatpush2.bf16.msra.mxu0 0
      %2771 = vmatprep.subr.bf16.mxu0 0
      %2772 = vmatpush2.bf16.msra.mxu0 0
      %2773 = vmatprep.mubr.bf16.mxu0 0
      %2774 = vmatmul.mubr.bf16.gmra.mxu0 %v2733
      %v2775 = vpop.f32.mrf.mxu0
      %v2776 = vadd.f32 0.0, %v2775
      %v2777 = vpop.f32.mrf.mxu0
      %v2778 = vpop.f32.mrf.mxu0
      %v2779 = vadd.f32 0.0, %v2778
      %v2780 = vpop.f32.mrf.mxu0
      %2781 = vmatprep.mubr.bf16.mxu0 0
      %2782 = vmatmul.mubr.bf16.gmra.mxu0 %v2734
      %v2783 = vpop.f32.mrf.mxu0
      %v2784 = vadd.f32 0.0, %v2783
      %v2785 = vpop.f32.mrf.mxu0
      %v2786 = vpop.f32.mrf.mxu0
      %v2787 = vadd.f32 0.0, %v2786
      %v2788 = vpop.f32.mrf.mxu0
      %2789 = vmatprep.mubr.bf16.mxu0 0
      %2790 = vmatmul.mubr.bf16.gmra.mxu0 %v2735
      %v2791 = vpop.f32.mrf.mxu0
      %v2792 = vadd.f32 0.0, %v2791
      %v2793 = vpop.f32.mrf.mxu0
      %v2794 = vpop.f32.mrf.mxu0
      %v2795 = vadd.f32 0.0, %v2794
      %v2796 = vpop.f32.mrf.mxu0
      %2797 = vmatprep.mubr.bf16.mxu0 0
      %2798 = vmatmul.mubr.bf16.gmra.mxu0 %v2736
      %v2799 = vpop.f32.mrf.mxu0
      %v2800 = vadd.f32 0.0, %v2799
      %v2801 = vpop.f32.mrf.mxu0
      %v2802 = vpop.f32.mrf.mxu0
      %v2803 = vadd.f32 0.0, %v2802
      %v2804 = vpop.f32.mrf.mxu0
      %2805 = vmatprep.mubr.bf16.mxu0 0
      %2806 = vmatmul.mubr.bf16.gmra.mxu0 %v2737
      %v2807 = vpop.f32.mrf.mxu0
      %v2808 = vadd.f32 0.0, %v2807
      %v2809 = vpop.f32.mrf.mxu0
      %v2810 = vpop.f32.mrf.mxu0
      %v2811 = vadd.f32 0.0, %v2810
      %v2812 = vpop.f32.mrf.mxu0
      %2813 = vmatprep.mubr.bf16.mxu0 0
      %2814 = vmatmul.mubr.bf16.gmra.mxu0 %v2738
      %v2815 = vpop.f32.mrf.mxu0
      %v2816 = vadd.f32 0.0, %v2815
      %v2817 = vpop.f32.mrf.mxu0
      %v2818 = vpop.f32.mrf.mxu0
      %v2819 = vadd.f32 0.0, %v2818
      %v2820 = vpop.f32.mrf.mxu0
      %2821 = vmatprep.mubr.bf16.mxu0 0
      %2822 = vmatmul.mubr.bf16.gmra.mxu0 %v2739
      %v2823 = vpop.f32.mrf.mxu0
      %v2824 = vadd.f32 0.0, %v2823
      %v2825 = vpop.f32.mrf.mxu0
      %v2826 = vpop.f32.mrf.mxu0
      %v2827 = vadd.f32 0.0, %v2826
      %v2828 = vpop.f32.mrf.mxu0
      %2829 = vmatprep.mubr.bf16.mxu0 0
      %2830 = vmatmul.mubr.bf16.gmra.mxu0 %v2740
      %v2831 = vpop.f32.mrf.mxu0
      %v2832 = vadd.f32 0.0, %v2831
      %v2833 = vpop.f32.mrf.mxu0
      %v2834 = vpop.f32.mrf.mxu0
      %v2835 = vadd.f32 0.0, %v2834
      %v2836 = vpop.f32.mrf.mxu0
      %2837 = vdwg.mxu0
      %v2838 = vadd.f32 %v1436, %v2776
      %v2839 = vadd.f32 %v1439, %v2779
      %v2840 = vadd.f32 %v1444, %v2784
      %v2841 = vadd.f32 %v1447, %v2787
      %v2842 = vadd.f32 %v1452, %v2792
      %v2843 = vadd.f32 %v1455, %v2795
      %v2844 = vadd.f32 %v1460, %v2800
      %v2845 = vadd.f32 %v1463, %v2803
      %v2846 = vadd.f32 %v1468, %v2808
      %v2847 = vadd.f32 %v1471, %v2811
      %v2848 = vadd.f32 %v1476, %v2816
      %v2849 = vadd.f32 %v1479, %v2819
      %v2850 = vadd.f32 %v1484, %v2824
      %v2851 = vadd.f32 %v1487, %v2827
      %v2852 = vadd.f32 %v1492, %v2832
      %v2853 = vadd.f32 %v1495, %v2835
      %v2854 = vtanh.pop %v2838
      %v2855 = vtanh.pop %v2839
      %v2856 = vtanh.pop %v2840
      %v2857 = vtanh.pop %v2841
      %v2858 = vtanh.pop %v2842
      %v2859 = vtanh.pop %v2843
      %v2860 = vtanh.pop %v2844
      %v2861 = vtanh.pop %v2845
      %v2862 = vtanh.pop %v2846
      %v2863 = vtanh.pop %v2847
      %v2864 = vtanh.pop %v2848
      %v2865 = vtanh.pop %v2849
      %v2866 = vtanh.pop %v2850
      %v2867 = vtanh.pop %v2851
      %v2868 = vtanh.pop %v2852
      %v2869 = vtanh.pop %v2853
      %v2870 = vmax.f32 %v2701, %v2854
      %v2871 = vmax.f32 %v2702, %v2855
      %v2872 = vmax.f32 %v2703, %v2856
      %v2873 = vmax.f32 %v2704, %v2857
      %v2874 = vmax.f32 %v2705, %v2858
      %v2875 = vmax.f32 %v2706, %v2859
      %v2876 = vmax.f32 %v2707, %v2860
      %v2877 = vmax.f32 %v2708, %v2861
      %v2878 = vmax.f32 %v2709, %v2862
      %v2879 = vmax.f32 %v2710, %v2863
      %v2880 = vmax.f32 %v2711, %v2864
      %v2881 = vmax.f32 %v2712, %v2865
      %v2882 = vmax.f32 %v2713, %v2866
      %v2883 = vmax.f32 %v2714, %v2867
      %v2884 = vmax.f32 %v2715, %v2868
      %v2885 = vmax.f32 %v2716, %v2869
      %v2886 = vsel %vm1818, 1, 0
      %v2887 = vsel %vm1819, 1, 0
      %v2888 = vsel %vm1820, 1, 0
      %v2889 = vsel %vm1821, 1, 0
      %v2890 = vsel %vm1822, 1, 0
      %v2891 = vsel %vm1823, 1, 0
      %v2892 = vsel %vm1824, 1, 0
      %v2893 = vsel %vm1825, 1, 0
      %v2894 = vsel %vm1826, 1, 0
      %v2895 = vsel %vm1827, 1, 0
      %v2896 = vsel %vm1828, 1, 0
      %v2897 = vsel %vm1829, 1, 0
      %v2898 = vsel %vm1830, 1, 0
      %v2899 = vsel %vm1831, 1, 0
      %v2900 = vsel %vm1832, 1, 0
      %v2901 = vsel %vm1833, 1, 0
      %2902 = vset.pattern.permute.xlu0 0
      %2903 = vperm.xlu0 %2902, %v2886
      %v2904 = vpop.permute.xlu0 %2903
      %2905 = vset.pattern.permute.xlu0 0
      %2906 = vperm.xlu0 %2905, %v2887
      %v2907 = vpop.permute.xlu0 %2906
      %2908 = vset.pattern.permute.xlu0 0
      %2909 = vperm.xlu0 %2908, %v2888
      %v2910 = vpop.permute.xlu0 %2909
      %2911 = vset.pattern.permute.xlu0 0
      %2912 = vperm.xlu0 %2911, %v2889
      %v2913 = vpop.permute.xlu0 %2912
      %2914 = vset.pattern.permute.xlu0 0
      %2915 = vperm.xlu0 %2914, %v2890
      %v2916 = vpop.permute.xlu0 %2915
      %2917 = vset.pattern.permute.xlu0 0
      %2918 = vperm.xlu0 %2917, %v2891
      %v2919 = vpop.permute.xlu0 %2918
      %2920 = vset.pattern.permute.xlu0 0
      %2921 = vperm.xlu0 %2920, %v2892
      %v2922 = vpop.permute.xlu0 %2921
      %2923 = vset.pattern.permute.xlu0 0
      %2924 = vperm.xlu0 %2923, %v2893
      %v2925 = vpop.permute.xlu0 %2924
      %2926 = vset.pattern.permute.xlu0 0
      %2927 = vperm.xlu0 %2926, %v2894
      %v2928 = vpop.permute.xlu0 %2927
      %2929 = vset.pattern.permute.xlu0 0
      %2930 = vperm.xlu0 %2929, %v2895
      %v2931 = vpop.permute.xlu0 %2930
      %2932 = vset.pattern.permute.xlu0 0
      %2933 = vperm.xlu0 %2932, %v2896
      %v2934 = vpop.permute.xlu0 %2933
      %2935 = vset.pattern.permute.xlu0 0
      %2936 = vperm.xlu0 %2935, %v2897
      %v2937 = vpop.permute.xlu0 %2936
      %2938 = vset.pattern.permute.xlu0 0
      %2939 = vperm.xlu0 %2938, %v2898
      %v2940 = vpop.permute.xlu0 %2939
      %2941 = vset.pattern.permute.xlu0 0
      %2942 = vperm.xlu0 %2941, %v2899
      %v2943 = vpop.permute.xlu0 %2942
      %2944 = vset.pattern.permute.xlu0 0
      %2945 = vperm.xlu0 %2944, %v2900
      %v2946 = vpop.permute.xlu0 %2945
      %2947 = vset.pattern.permute.xlu0 0
      %2948 = vperm.xlu0 %2947, %v2901
      %v2949 = vpop.permute.xlu0 %2948
      %vm2950 = vcmp.eq.s32.totalorder %v2904, 1
      %vm2951 = vcmp.eq.s32.totalorder %v2907, 1
      %vm2952 = vcmp.eq.s32.totalorder %v2910, 1
      %vm2953 = vcmp.eq.s32.totalorder %v2913, 1
      %vm2954 = vcmp.eq.s32.totalorder %v2916, 1
      %vm2955 = vcmp.eq.s32.totalorder %v2919, 1
      %vm2956 = vcmp.eq.s32.totalorder %v2922, 1
      %vm2957 = vcmp.eq.s32.totalorder %v2925, 1
      %vm2958 = vcmp.eq.s32.totalorder %v2928, 1
      %vm2959 = vcmp.eq.s32.totalorder %v2931, 1
      %vm2960 = vcmp.eq.s32.totalorder %v2934, 1
      %vm2961 = vcmp.eq.s32.totalorder %v2937, 1
      %vm2962 = vcmp.eq.s32.totalorder %v2940, 1
      %vm2963 = vcmp.eq.s32.totalorder %v2943, 1
      %vm2964 = vcmp.eq.s32.totalorder %v2946, 1
      %vm2965 = vcmp.eq.s32.totalorder %v2949, 1
      %v2966 = vsel %vm2950, %v2870, %v2701
      %v2967 = vsel %vm2951, %v2871, %v2702
      %v2968 = vsel %vm2952, %v2872, %v2703
      %v2969 = vsel %vm2953, %v2873, %v2704
      %v2970 = vsel %vm2954, %v2874, %v2705
      %v2971 = vsel %vm2955, %v2875, %v2706
      %v2972 = vsel %vm2956, %v2876, %v2707
      %v2973 = vsel %vm2957, %v2877, %v2708
      %v2974 = vsel %vm2958, %v2878, %v2709
      %v2975 = vsel %vm2959, %v2879, %v2710
      %v2976 = vsel %vm2960, %v2880, %v2711
      %v2977 = vsel %vm2961, %v2881, %v2712
      %v2978 = vsel %vm2962, %v2882, %v2713
      %v2979 = vsel %vm2963, %v2883, %v2714
      %v2980 = vsel %vm2964, %v2884, %v2715
      %v2981 = vsel %vm2965, %v2885, %v2716
      %v2982 = vsel %vm2950, %v2854, %v2717
      %v2983 = vsel %vm2951, %v2855, %v2718
      %v2984 = vsel %vm2952, %v2856, %v2719
      %v2985 = vsel %vm2953, %v2857, %v2720
      %v2986 = vsel %vm2954, %v2858, %v2721
      %v2987 = vsel %vm2955, %v2859, %v2722
      %v2988 = vsel %vm2956, %v2860, %v2723
      %v2989 = vsel %vm2957, %v2861, %v2724
      %v2990 = vsel %vm2958, %v2862, %v2725
      %v2991 = vsel %vm2959, %v2863, %v2726
      %v2992 = vsel %vm2960, %v2864, %v2727
      %v2993 = vsel %vm2961, %v2865, %v2728
      %v2994 = vsel %vm2962, %v2866, %v2729
      %v2995 = vsel %vm2963, %v2867, %v2730
      %v2996 = vsel %vm2964, %v2868, %v2731
      %v2997 = vsel %vm2965, %v2869, %v2732
      %v2998 = vpack.c.bf16 %v2983, %v2982
      %v2999 = vpack.c.bf16 %v2985, %v2984
      %v3000 = vpack.c.bf16 %v2987, %v2986
      %v3001 = vpack.c.bf16 %v2989, %v2988
      %v3002 = vpack.c.bf16 %v2991, %v2990
      %v3003 = vpack.c.bf16 %v2993, %v2992
      %v3004 = vpack.c.bf16 %v2995, %v2994
      %v3005 = vpack.c.bf16 %v2997, %v2996
      %3006 = vmatprep.subr.bf16.mxu0 0
      %3007 = vmatpush1.bf16.msra.mxu0 %v1937
      %3008 = vmatprep.subr.bf16.mxu0 0
      %3009 = vmatpush1.bf16.msra.mxu0 %v1936
      %3010 = vmatprep.subr.bf16.mxu0 0
      %3011 = vmatpush1.bf16.msra.mxu0 %v1935
      %3012 = vmatprep.subr.bf16.mxu0 0
      %3013 = vmatpush1.bf16.msra.mxu0 %v1934
      %3014 = vmatprep.subr.bf16.mxu0 0
      %3015 = vmatpush1.bf16.msra.mxu0 %v1933
      %3016 = vmatprep.subr.bf16.mxu0 0
      %3017 = vmatpush1.bf16.msra.mxu0 %v1932
      %3018 = vmatprep.subr.bf16.mxu0 0
      %3019 = vmatpush1.bf16.msra.mxu0 %v1931
      %3020 = vmatprep.subr.bf16.mxu0 0
      %3021 = vmatpush1.bf16.msra.mxu0 %v1930
      %3022 = vmatprep.subr.bf16.mxu0 0
      %3023 = vmatpush2.bf16.msra.mxu0 0
      %3024 = vmatprep.subr.bf16.mxu0 0
      %3025 = vmatpush2.bf16.msra.mxu0 0
      %3026 = vmatprep.subr.bf16.mxu0 0
      %3027 = vmatpush2.bf16.msra.mxu0 0
      %3028 = vmatprep.subr.bf16.mxu0 0
      %3029 = vmatpush2.bf16.msra.mxu0 0
      %3030 = vmatprep.subr.bf16.mxu0 0
      %3031 = vmatpush2.bf16.msra.mxu0 0
      %3032 = vmatprep.subr.bf16.mxu0 0
      %3033 = vmatpush2.bf16.msra.mxu0 0
      %3034 = vmatprep.subr.bf16.mxu0 0
      %3035 = vmatpush2.bf16.msra.mxu0 0
      %3036 = vmatprep.subr.bf16.mxu0 0
      %3037 = vmatpush2.bf16.msra.mxu0 0
      %3038 = vmatprep.mubr.bf16.mxu0 0
      %3039 = vmatmul.mubr.bf16.gmra.mxu0 %v2998
      %v3040 = vpop.f32.mrf.mxu0
      %v3041 = vadd.f32 0.0, %v3040
      %v3042 = vpop.f32.mrf.mxu0
      %v3043 = vpop.f32.mrf.mxu0
      %v3044 = vadd.f32 0.0, %v3043
      %v3045 = vpop.f32.mrf.mxu0
      %3046 = vmatprep.mubr.bf16.mxu0 0
      %3047 = vmatmul.mubr.bf16.gmra.mxu0 %v2999
      %v3048 = vpop.f32.mrf.mxu0
      %v3049 = vadd.f32 0.0, %v3048
      %v3050 = vpop.f32.mrf.mxu0
      %v3051 = vpop.f32.mrf.mxu0
      %v3052 = vadd.f32 0.0, %v3051
      %v3053 = vpop.f32.mrf.mxu0
      %3054 = vmatprep.mubr.bf16.mxu0 0
      %3055 = vmatmul.mubr.bf16.gmra.mxu0 %v3000
      %v3056 = vpop.f32.mrf.mxu0
      %v3057 = vadd.f32 0.0, %v3056
      %v3058 = vpop.f32.mrf.mxu0
      %v3059 = vpop.f32.mrf.mxu0
      %v3060 = vadd.f32 0.0, %v3059
      %v3061 = vpop.f32.mrf.mxu0
      %3062 = vmatprep.mubr.bf16.mxu0 0
      %3063 = vmatmul.mubr.bf16.gmra.mxu0 %v3001
      %v3064 = vpop.f32.mrf.mxu0
      %v3065 = vadd.f32 0.0, %v3064
      %v3066 = vpop.f32.mrf.mxu0
      %v3067 = vpop.f32.mrf.mxu0
      %v3068 = vadd.f32 0.0, %v3067
      %v3069 = vpop.f32.mrf.mxu0
      %3070 = vmatprep.mubr.bf16.mxu0 0
      %3071 = vmatmul.mubr.bf16.gmra.mxu0 %v3002
      %v3072 = vpop.f32.mrf.mxu0
      %v3073 = vadd.f32 0.0, %v3072
      %v3074 = vpop.f32.mrf.mxu0
      %v3075 = vpop.f32.mrf.mxu0
      %v3076 = vadd.f32 0.0, %v3075
      %v3077 = vpop.f32.mrf.mxu0
      %3078 = vmatprep.mubr.bf16.mxu0 0
      %3079 = vmatmul.mubr.bf16.gmra.mxu0 %v3003
      %v3080 = vpop.f32.mrf.mxu0
      %v3081 = vadd.f32 0.0, %v3080
      %v3082 = vpop.f32.mrf.mxu0
      %v3083 = vpop.f32.mrf.mxu0
      %v3084 = vadd.f32 0.0, %v3083
      %v3085 = vpop.f32.mrf.mxu0
      %3086 = vmatprep.mubr.bf16.mxu0 0
      %3087 = vmatmul.mubr.bf16.gmra.mxu0 %v3004
      %v3088 = vpop.f32.mrf.mxu0
      %v3089 = vadd.f32 0.0, %v3088
      %v3090 = vpop.f32.mrf.mxu0
      %v3091 = vpop.f32.mrf.mxu0
      %v3092 = vadd.f32 0.0, %v3091
      %v3093 = vpop.f32.mrf.mxu0
      %3094 = vmatprep.mubr.bf16.mxu0 0
      %3095 = vmatmul.mubr.bf16.gmra.mxu0 %v3005
      %v3096 = vpop.f32.mrf.mxu0
      %v3097 = vadd.f32 0.0, %v3096
      %v3098 = vpop.f32.mrf.mxu0
      %v3099 = vpop.f32.mrf.mxu0
      %v3100 = vadd.f32 0.0, %v3099
      %v3101 = vpop.f32.mrf.mxu0
      %3102 = vdwg.mxu0
      %v3103 = vadd.f32 %v1500, %v3041
      %v3104 = vadd.f32 %v1503, %v3044
      %v3105 = vadd.f32 %v1508, %v3049
      %v3106 = vadd.f32 %v1511, %v3052
      %v3107 = vadd.f32 %v1516, %v3057
      %v3108 = vadd.f32 %v1519, %v3060
      %v3109 = vadd.f32 %v1524, %v3065
      %v3110 = vadd.f32 %v1527, %v3068
      %v3111 = vadd.f32 %v1532, %v3073
      %v3112 = vadd.f32 %v1535, %v3076
      %v3113 = vadd.f32 %v1540, %v3081
      %v3114 = vadd.f32 %v1543, %v3084
      %v3115 = vadd.f32 %v1548, %v3089
      %v3116 = vadd.f32 %v1551, %v3092
      %v3117 = vadd.f32 %v1556, %v3097
      %v3118 = vadd.f32 %v1559, %v3100
      %v3119 = vtanh.pop %v3103
      %v3120 = vtanh.pop %v3104
      %v3121 = vtanh.pop %v3105
      %v3122 = vtanh.pop %v3106
      %v3123 = vtanh.pop %v3107
      %v3124 = vtanh.pop %v3108
      %v3125 = vtanh.pop %v3109
      %v3126 = vtanh.pop %v3110
      %v3127 = vtanh.pop %v3111
      %v3128 = vtanh.pop %v3112
      %v3129 = vtanh.pop %v3113
      %v3130 = vtanh.pop %v3114
      %v3131 = vtanh.pop %v3115
      %v3132 = vtanh.pop %v3116
      %v3133 = vtanh.pop %v3117
      %v3134 = vtanh.pop %v3118
      %v3135 = vmax.f32 %v2966, %v3119
      %v3136 = vmax.f32 %v2967, %v3120
      %v3137 = vmax.f32 %v2968, %v3121
      %v3138 = vmax.f32 %v2969, %v3122
      %v3139 = vmax.f32 %v2970, %v3123
      %v3140 = vmax.f32 %v2971, %v3124
      %v3141 = vmax.f32 %v2972, %v3125
      %v3142 = vmax.f32 %v2973, %v3126
      %v3143 = vmax.f32 %v2974, %v3127
      %v3144 = vmax.f32 %v2975, %v3128
      %v3145 = vmax.f32 %v2976, %v3129
      %v3146 = vmax.f32 %v2977, %v3130
      %v3147 = vmax.f32 %v2978, %v3131
      %v3148 = vmax.f32 %v2979, %v3132
      %v3149 = vmax.f32 %v2980, %v3133
      %v3150 = vmax.f32 %v2981, %v3134
      %v3151 = vsel %vm1834, 1, 0
      %v3152 = vsel %vm1835, 1, 0
      %v3153 = vsel %vm1836, 1, 0
      %v3154 = vsel %vm1837, 1, 0
      %v3155 = vsel %vm1838, 1, 0
      %v3156 = vsel %vm1839, 1, 0
      %v3157 = vsel %vm1840, 1, 0
      %v3158 = vsel %vm1841, 1, 0
      %v3159 = vsel %vm1842, 1, 0
      %v3160 = vsel %vm1843, 1, 0
      %v3161 = vsel %vm1844, 1, 0
      %v3162 = vsel %vm1845, 1, 0
      %v3163 = vsel %vm1846, 1, 0
      %v3164 = vsel %vm1847, 1, 0
      %v3165 = vsel %vm1848, 1, 0
      %v3166 = vsel %vm1849, 1, 0
      %3167 = vset.pattern.permute.xlu0 0
      %3168 = vperm.xlu0 %3167, %v3151
      %v3169 = vpop.permute.xlu0 %3168
      %3170 = vset.pattern.permute.xlu0 0
      %3171 = vperm.xlu0 %3170, %v3152
      %v3172 = vpop.permute.xlu0 %3171
      %3173 = vset.pattern.permute.xlu0 0
      %3174 = vperm.xlu0 %3173, %v3153
      %v3175 = vpop.permute.xlu0 %3174
      %3176 = vset.pattern.permute.xlu0 0
      %3177 = vperm.xlu0 %3176, %v3154
      %v3178 = vpop.permute.xlu0 %3177
      %3179 = vset.pattern.permute.xlu0 0
      %3180 = vperm.xlu0 %3179, %v3155
      %v3181 = vpop.permute.xlu0 %3180
      %3182 = vset.pattern.permute.xlu0 0
      %3183 = vperm.xlu0 %3182, %v3156
      %v3184 = vpop.permute.xlu0 %3183
      %3185 = vset.pattern.permute.xlu0 0
      %3186 = vperm.xlu0 %3185, %v3157
      %v3187 = vpop.permute.xlu0 %3186
      %3188 = vset.pattern.permute.xlu0 0
      %3189 = vperm.xlu0 %3188, %v3158
      %v3190 = vpop.permute.xlu0 %3189
      %3191 = vset.pattern.permute.xlu0 0
      %3192 = vperm.xlu0 %3191, %v3159
      %v3193 = vpop.permute.xlu0 %3192
      %3194 = vset.pattern.permute.xlu0 0
      %3195 = vperm.xlu0 %3194, %v3160
      %v3196 = vpop.permute.xlu0 %3195
      %3197 = vset.pattern.permute.xlu0 0
      %3198 = vperm.xlu0 %3197, %v3161
      %v3199 = vpop.permute.xlu0 %3198
      %3200 = vset.pattern.permute.xlu0 0
      %3201 = vperm.xlu0 %3200, %v3162
      %v3202 = vpop.permute.xlu0 %3201
      %3203 = vset.pattern.permute.xlu0 0
      %3204 = vperm.xlu0 %3203, %v3163
      %v3205 = vpop.permute.xlu0 %3204
      %3206 = vset.pattern.permute.xlu0 0
      %3207 = vperm.xlu0 %3206, %v3164
      %v3208 = vpop.permute.xlu0 %3207
      %3209 = vset.pattern.permute.xlu0 0
      %3210 = vperm.xlu0 %3209, %v3165
      %v3211 = vpop.permute.xlu0 %3210
      %3212 = vset.pattern.permute.xlu0 0
      %3213 = vperm.xlu0 %3212, %v3166
      %v3214 = vpop.permute.xlu0 %3213
      %vm3215 = vcmp.eq.s32.totalorder %v3169, 1
      %vm3216 = vcmp.eq.s32.totalorder %v3172, 1
      %vm3217 = vcmp.eq.s32.totalorder %v3175, 1
      %vm3218 = vcmp.eq.s32.totalorder %v3178, 1
      %vm3219 = vcmp.eq.s32.totalorder %v3181, 1
      %vm3220 = vcmp.eq.s32.totalorder %v3184, 1
      %vm3221 = vcmp.eq.s32.totalorder %v3187, 1
      %vm3222 = vcmp.eq.s32.totalorder %v3190, 1
      %vm3223 = vcmp.eq.s32.totalorder %v3193, 1
      %vm3224 = vcmp.eq.s32.totalorder %v3196, 1
      %vm3225 = vcmp.eq.s32.totalorder %v3199, 1
      %vm3226 = vcmp.eq.s32.totalorder %v3202, 1
      %vm3227 = vcmp.eq.s32.totalorder %v3205, 1
      %vm3228 = vcmp.eq.s32.totalorder %v3208, 1
      %vm3229 = vcmp.eq.s32.totalorder %v3211, 1
      %vm3230 = vcmp.eq.s32.totalorder %v3214, 1
      %v3231 = vsel %vm3215, %v3135, %v2966
      %v3232 = vsel %vm3216, %v3136, %v2967
      %v3233 = vsel %vm3217, %v3137, %v2968
      %v3234 = vsel %vm3218, %v3138, %v2969
      %v3235 = vsel %vm3219, %v3139, %v2970
      %v3236 = vsel %vm3220, %v3140, %v2971
      %v3237 = vsel %vm3221, %v3141, %v2972
      %v3238 = vsel %vm3222, %v3142, %v2973
      %v3239 = vsel %vm3223, %v3143, %v2974
      %v3240 = vsel %vm3224, %v3144, %v2975
      %v3241 = vsel %vm3225, %v3145, %v2976
      %v3242 = vsel %vm3226, %v3146, %v2977
      %v3243 = vsel %vm3227, %v3147, %v2978
      %v3244 = vsel %vm3228, %v3148, %v2979
      %v3245 = vsel %vm3229, %v3149, %v2980
      %v3246 = vsel %vm3230, %v3150, %v2981
      %v3247 = vsel %vm3215, %v3119, %v2982
      %v3248 = vsel %vm3216, %v3120, %v2983
      %v3249 = vsel %vm3217, %v3121, %v2984
      %v3250 = vsel %vm3218, %v3122, %v2985
      %v3251 = vsel %vm3219, %v3123, %v2986
      %v3252 = vsel %vm3220, %v3124, %v2987
      %v3253 = vsel %vm3221, %v3125, %v2988
      %v3254 = vsel %vm3222, %v3126, %v2989
      %v3255 = vsel %vm3223, %v3127, %v2990
      %v3256 = vsel %vm3224, %v3128, %v2991
      %v3257 = vsel %vm3225, %v3129, %v2992
      %v3258 = vsel %vm3226, %v3130, %v2993
      %v3259 = vsel %vm3227, %v3131, %v2994
      %v3260 = vsel %vm3228, %v3132, %v2995
      %v3261 = vsel %vm3229, %v3133, %v2996
      %v3262 = vsel %vm3230, %v3134, %v2997
      %v3263 = vpack.c.bf16 %v3248, %v3247
      %v3264 = vpack.c.bf16 %v3250, %v3249
      %v3265 = vpack.c.bf16 %v3252, %v3251
      %v3266 = vpack.c.bf16 %v3254, %v3253
      %v3267 = vpack.c.bf16 %v3256, %v3255
      %v3268 = vpack.c.bf16 %v3258, %v3257
      %v3269 = vpack.c.bf16 %v3260, %v3259
      %v3270 = vpack.c.bf16 %v3262, %v3261
      %3271 = vmatprep.subr.bf16.mxu0 0
      %3272 = vmatpush1.bf16.msra.mxu0 %v1937
      %3273 = vmatprep.subr.bf16.mxu0 0
      %3274 = vmatpush1.bf16.msra.mxu0 %v1936
      %3275 = vmatprep.subr.bf16.mxu0 0
      %3276 = vmatpush1.bf16.msra.mxu0 %v1935
      %3277 = vmatprep.subr.bf16.mxu0 0
      %3278 = vmatpush1.bf16.msra.mxu0 %v1934
      %3279 = vmatprep.subr.bf16.mxu0 0
      %3280 = vmatpush1.bf16.msra.mxu0 %v1933
      %3281 = vmatprep.subr.bf16.mxu0 0
      %3282 = vmatpush1.bf16.msra.mxu0 %v1932
      %3283 = vmatprep.subr.bf16.mxu0 0
      %3284 = vmatpush1.bf16.msra.mxu0 %v1931
      %3285 = vmatprep.subr.bf16.mxu0 0
      %3286 = vmatpush1.bf16.msra.mxu0 %v1930
      %3287 = vmatprep.subr.bf16.mxu0 0
      %3288 = vmatpush2.bf16.msra.mxu0 0
      %3289 = vmatprep.subr.bf16.mxu0 0
      %3290 = vmatpush2.bf16.msra.mxu0 0
      %3291 = vmatprep.subr.bf16.mxu0 0
      %3292 = vmatpush2.bf16.msra.mxu0 0
      %3293 = vmatprep.subr.bf16.mxu0 0
      %3294 = vmatpush2.bf16.msra.mxu0 0
      %3295 = vmatprep.subr.bf16.mxu0 0
      %3296 = vmatpush2.bf16.msra.mxu0 0
      %3297 = vmatprep.subr.bf16.mxu0 0
      %3298 = vmatpush2.bf16.msra.mxu0 0
      %3299 = vmatprep.subr.bf16.mxu0 0
      %3300 = vmatpush2.bf16.msra.mxu0 0
      %3301 = vmatprep.subr.bf16.mxu0 0
      %3302 = vmatpush2.bf16.msra.mxu0 0
      %3303 = vmatprep.mubr.bf16.mxu0 0
      %3304 = vmatmul.mubr.bf16.gmra.mxu0 %v3263
      %v3305 = vpop.f32.mrf.mxu0
      %v3306 = vadd.f32 0.0, %v3305
      %v3307 = vpop.f32.mrf.mxu0
      %v3308 = vpop.f32.mrf.mxu0
      %v3309 = vadd.f32 0.0, %v3308
      %v3310 = vpop.f32.mrf.mxu0
      %3311 = vmatprep.mubr.bf16.mxu0 0
      %3312 = vmatmul.mubr.bf16.gmra.mxu0 %v3264
      %v3313 = vpop.f32.mrf.mxu0
      %v3314 = vadd.f32 0.0, %v3313
      %v3315 = vpop.f32.mrf.mxu0
      %v3316 = vpop.f32.mrf.mxu0
      %v3317 = vadd.f32 0.0, %v3316
      %v3318 = vpop.f32.mrf.mxu0
      %3319 = vmatprep.mubr.bf16.mxu0 0
      %3320 = vmatmul.mubr.bf16.gmra.mxu0 %v3265
      %v3321 = vpop.f32.mrf.mxu0
      %v3322 = vadd.f32 0.0, %v3321
      %v3323 = vpop.f32.mrf.mxu0
      %v3324 = vpop.f32.mrf.mxu0
      %v3325 = vadd.f32 0.0, %v3324
      %v3326 = vpop.f32.mrf.mxu0
      %3327 = vmatprep.mubr.bf16.mxu0 0
      %3328 = vmatmul.mubr.bf16.gmra.mxu0 %v3266
      %v3329 = vpop.f32.mrf.mxu0
      %v3330 = vadd.f32 0.0, %v3329
      %v3331 = vpop.f32.mrf.mxu0
      %v3332 = vpop.f32.mrf.mxu0
      %v3333 = vadd.f32 0.0, %v3332
      %v3334 = vpop.f32.mrf.mxu0
      %3335 = vmatprep.mubr.bf16.mxu0 0
      %3336 = vmatmul.mubr.bf16.gmra.mxu0 %v3267
      %v3337 = vpop.f32.mrf.mxu0
      %v3338 = vadd.f32 0.0, %v3337
      %v3339 = vpop.f32.mrf.mxu0
      %v3340 = vpop.f32.mrf.mxu0
      %v3341 = vadd.f32 0.0, %v3340
      %v3342 = vpop.f32.mrf.mxu0
      %3343 = vmatprep.mubr.bf16.mxu0 0
      %3344 = vmatmul.mubr.bf16.gmra.mxu0 %v3268
      %v3345 = vpop.f32.mrf.mxu0
      %v3346 = vadd.f32 0.0, %v3345
      %v3347 = vpop.f32.mrf.mxu0
      %v3348 = vpop.f32.mrf.mxu0
      %v3349 = vadd.f32 0.0, %v3348
      %v3350 = vpop.f32.mrf.mxu0
      %3351 = vmatprep.mubr.bf16.mxu0 0
      %3352 = vmatmul.mubr.bf16.gmra.mxu0 %v3269
      %v3353 = vpop.f32.mrf.mxu0
      %v3354 = vadd.f32 0.0, %v3353
      %v3355 = vpop.f32.mrf.mxu0
      %v3356 = vpop.f32.mrf.mxu0
      %v3357 = vadd.f32 0.0, %v3356
      %v3358 = vpop.f32.mrf.mxu0
      %3359 = vmatprep.mubr.bf16.mxu0 0
      %3360 = vmatmul.mubr.bf16.gmra.mxu0 %v3270
      %v3361 = vpop.f32.mrf.mxu0
      %v3362 = vadd.f32 0.0, %v3361
      %v3363 = vpop.f32.mrf.mxu0
      %v3364 = vpop.f32.mrf.mxu0
      %v3365 = vadd.f32 0.0, %v3364
      %v3366 = vpop.f32.mrf.mxu0
      %3367 = vdwg.mxu0
      %v3368 = vadd.f32 %v1564, %v3306
      %v3369 = vadd.f32 %v1567, %v3309
      %v3370 = vadd.f32 %v1572, %v3314
      %v3371 = vadd.f32 %v1575, %v3317
      %v3372 = vadd.f32 %v1580, %v3322
      %v3373 = vadd.f32 %v1583, %v3325
      %v3374 = vadd.f32 %v1588, %v3330
      %v3375 = vadd.f32 %v1591, %v3333
      %v3376 = vadd.f32 %v1596, %v3338
      %v3377 = vadd.f32 %v1599, %v3341
      %v3378 = vadd.f32 %v1604, %v3346
      %v3379 = vadd.f32 %v1607, %v3349
      %v3380 = vadd.f32 %v1612, %v3354
      %v3381 = vadd.f32 %v1615, %v3357
      %v3382 = vadd.f32 %v1620, %v3362
      %v3383 = vadd.f32 %v1623, %v3365
      %v3384 = vtanh.pop %v3368
      %v3385 = vtanh.pop %v3369
      %v3386 = vtanh.pop %v3370
      %v3387 = vtanh.pop %v3371
      %v3388 = vtanh.pop %v3372
      %v3389 = vtanh.pop %v3373
      %v3390 = vtanh.pop %v3374
      %v3391 = vtanh.pop %v3375
      %v3392 = vtanh.pop %v3376
      %v3393 = vtanh.pop %v3377
      %v3394 = vtanh.pop %v3378
      %v3395 = vtanh.pop %v3379
      %v3396 = vtanh.pop %v3380
      %v3397 = vtanh.pop %v3381
      %v3398 = vtanh.pop %v3382
      %v3399 = vtanh.pop %v3383
      %v3400 = vmax.f32 %v3231, %v3384
      %v3401 = vmax.f32 %v3232, %v3385
      %v3402 = vmax.f32 %v3233, %v3386
      %v3403 = vmax.f32 %v3234, %v3387
      %v3404 = vmax.f32 %v3235, %v3388
      %v3405 = vmax.f32 %v3236, %v3389
      %v3406 = vmax.f32 %v3237, %v3390
      %v3407 = vmax.f32 %v3238, %v3391
      %v3408 = vmax.f32 %v3239, %v3392
      %v3409 = vmax.f32 %v3240, %v3393
      %v3410 = vmax.f32 %v3241, %v3394
      %v3411 = vmax.f32 %v3242, %v3395
      %v3412 = vmax.f32 %v3243, %v3396
      %v3413 = vmax.f32 %v3244, %v3397
      %v3414 = vmax.f32 %v3245, %v3398
      %v3415 = vmax.f32 %v3246, %v3399
      %v3416 = vsel %vm1850, 1, 0
      %v3417 = vsel %vm1851, 1, 0
      %v3418 = vsel %vm1852, 1, 0
      %v3419 = vsel %vm1853, 1, 0
      %v3420 = vsel %vm1854, 1, 0
      %v3421 = vsel %vm1855, 1, 0
      %v3422 = vsel %vm1856, 1, 0
      %v3423 = vsel %vm1857, 1, 0
      %v3424 = vsel %vm1858, 1, 0
      %v3425 = vsel %vm1859, 1, 0
      %v3426 = vsel %vm1860, 1, 0
      %v3427 = vsel %vm1861, 1, 0
      %v3428 = vsel %vm1862, 1, 0
      %v3429 = vsel %vm1863, 1, 0
      %v3430 = vsel %vm1864, 1, 0
      %v3431 = vsel %vm1865, 1, 0
      %3432 = vset.pattern.permute.xlu0 0
      %3433 = vperm.xlu0 %3432, %v3416
      %v3434 = vpop.permute.xlu0 %3433
      %3435 = vset.pattern.permute.xlu0 0
      %3436 = vperm.xlu0 %3435, %v3417
      %v3437 = vpop.permute.xlu0 %3436
      %3438 = vset.pattern.permute.xlu0 0
      %3439 = vperm.xlu0 %3438, %v3418
      %v3440 = vpop.permute.xlu0 %3439
      %3441 = vset.pattern.permute.xlu0 0
      %3442 = vperm.xlu0 %3441, %v3419
      %v3443 = vpop.permute.xlu0 %3442
      %3444 = vset.pattern.permute.xlu0 0
      %3445 = vperm.xlu0 %3444, %v3420
      %v3446 = vpop.permute.xlu0 %3445
      %3447 = vset.pattern.permute.xlu0 0
      %3448 = vperm.xlu0 %3447, %v3421
      %v3449 = vpop.permute.xlu0 %3448
      %3450 = vset.pattern.permute.xlu0 0
      %3451 = vperm.xlu0 %3450, %v3422
      %v3452 = vpop.permute.xlu0 %3451
      %3453 = vset.pattern.permute.xlu0 0
      %3454 = vperm.xlu0 %3453, %v3423
      %v3455 = vpop.permute.xlu0 %3454
      %3456 = vset.pattern.permute.xlu0 0
      %3457 = vperm.xlu0 %3456, %v3424
      %v3458 = vpop.permute.xlu0 %3457
      %3459 = vset.pattern.permute.xlu0 0
      %3460 = vperm.xlu0 %3459, %v3425
      %v3461 = vpop.permute.xlu0 %3460
      %3462 = vset.pattern.permute.xlu0 0
      %3463 = vperm.xlu0 %3462, %v3426
      %v3464 = vpop.permute.xlu0 %3463
      %3465 = vset.pattern.permute.xlu0 0
      %3466 = vperm.xlu0 %3465, %v3427
      %v3467 = vpop.permute.xlu0 %3466
      %3468 = vset.pattern.permute.xlu0 0
      %3469 = vperm.xlu0 %3468, %v3428
      %v3470 = vpop.permute.xlu0 %3469
      %3471 = vset.pattern.permute.xlu0 0
      %3472 = vperm.xlu0 %3471, %v3429
      %v3473 = vpop.permute.xlu0 %3472
      %3474 = vset.pattern.permute.xlu0 0
      %3475 = vperm.xlu0 %3474, %v3430
      %v3476 = vpop.permute.xlu0 %3475
      %3477 = vset.pattern.permute.xlu0 0
      %3478 = vperm.xlu0 %3477, %v3431
      %v3479 = vpop.permute.xlu0 %3478
      %vm3480 = vcmp.eq.s32.totalorder %v3434, 1
      %vm3481 = vcmp.eq.s32.totalorder %v3437, 1
      %vm3482 = vcmp.eq.s32.totalorder %v3440, 1
      %vm3483 = vcmp.eq.s32.totalorder %v3443, 1
      %vm3484 = vcmp.eq.s32.totalorder %v3446, 1
      %vm3485 = vcmp.eq.s32.totalorder %v3449, 1
      %vm3486 = vcmp.eq.s32.totalorder %v3452, 1
      %vm3487 = vcmp.eq.s32.totalorder %v3455, 1
      %vm3488 = vcmp.eq.s32.totalorder %v3458, 1
      %vm3489 = vcmp.eq.s32.totalorder %v3461, 1
      %vm3490 = vcmp.eq.s32.totalorder %v3464, 1
      %vm3491 = vcmp.eq.s32.totalorder %v3467, 1
      %vm3492 = vcmp.eq.s32.totalorder %v3470, 1
      %vm3493 = vcmp.eq.s32.totalorder %v3473, 1
      %vm3494 = vcmp.eq.s32.totalorder %v3476, 1
      %vm3495 = vcmp.eq.s32.totalorder %v3479, 1
      %v3496 = vsel %vm3480, %v3400, %v3231
      %v3497 = vsel %vm3481, %v3401, %v3232
      %v3498 = vsel %vm3482, %v3402, %v3233
      %v3499 = vsel %vm3483, %v3403, %v3234
      %v3500 = vsel %vm3484, %v3404, %v3235
      %v3501 = vsel %vm3485, %v3405, %v3236
      %v3502 = vsel %vm3486, %v3406, %v3237
      %v3503 = vsel %vm3487, %v3407, %v3238
      %v3504 = vsel %vm3488, %v3408, %v3239
      %v3505 = vsel %vm3489, %v3409, %v3240
      %v3506 = vsel %vm3490, %v3410, %v3241
      %v3507 = vsel %vm3491, %v3411, %v3242
      %v3508 = vsel %vm3492, %v3412, %v3243
      %v3509 = vsel %vm3493, %v3413, %v3244
      %v3510 = vsel %vm3494, %v3414, %v3245
      %v3511 = vsel %vm3495, %v3415, %v3246
      %v3512 = vsel %vm3480, %v3384, %v3247
      %v3513 = vsel %vm3481, %v3385, %v3248
      %v3514 = vsel %vm3482, %v3386, %v3249
      %v3515 = vsel %vm3483, %v3387, %v3250
      %v3516 = vsel %vm3484, %v3388, %v3251
      %v3517 = vsel %vm3485, %v3389, %v3252
      %v3518 = vsel %vm3486, %v3390, %v3253
      %v3519 = vsel %vm3487, %v3391, %v3254
      %v3520 = vsel %vm3488, %v3392, %v3255
      %v3521 = vsel %vm3489, %v3393, %v3256
      %v3522 = vsel %vm3490, %v3394, %v3257
      %v3523 = vsel %vm3491, %v3395, %v3258
      %v3524 = vsel %vm3492, %v3396, %v3259
      %v3525 = vsel %vm3493, %v3397, %v3260
      %v3526 = vsel %vm3494, %v3398, %v3261
      %v3527 = vsel %vm3495, %v3399, %v3262
      %v3528 = vpack.c.bf16 %v3513, %v3512
      %v3529 = vpack.c.bf16 %v3515, %v3514
      %v3530 = vpack.c.bf16 %v3517, %v3516
      %v3531 = vpack.c.bf16 %v3519, %v3518
      %v3532 = vpack.c.bf16 %v3521, %v3520
      %v3533 = vpack.c.bf16 %v3523, %v3522
      %v3534 = vpack.c.bf16 %v3525, %v3524
      %v3535 = vpack.c.bf16 %v3527, %v3526
      %3536 = vmatprep.subr.bf16.mxu0 0
      %3537 = vmatpush1.bf16.msra.mxu0 %v1937
      %3538 = vmatprep.subr.bf16.mxu0 0
      %3539 = vmatpush1.bf16.msra.mxu0 %v1936
      %3540 = vmatprep.subr.bf16.mxu0 0
      %3541 = vmatpush1.bf16.msra.mxu0 %v1935
      %3542 = vmatprep.subr.bf16.mxu0 0
      %3543 = vmatpush1.bf16.msra.mxu0 %v1934
      %3544 = vmatprep.subr.bf16.mxu0 0
      %3545 = vmatpush1.bf16.msra.mxu0 %v1933
      %3546 = vmatprep.subr.bf16.mxu0 0
      %3547 = vmatpush1.bf16.msra.mxu0 %v1932
      %3548 = vmatprep.subr.bf16.mxu0 0
      %3549 = vmatpush1.bf16.msra.mxu0 %v1931
      %3550 = vmatprep.subr.bf16.mxu0 0
      %3551 = vmatpush1.bf16.msra.mxu0 %v1930
      %3552 = vmatprep.subr.bf16.mxu0 0
      %3553 = vmatpush2.bf16.msra.mxu0 0
      %3554 = vmatprep.subr.bf16.mxu0 0
      %3555 = vmatpush2.bf16.msra.mxu0 0
      %3556 = vmatprep.subr.bf16.mxu0 0
      %3557 = vmatpush2.bf16.msra.mxu0 0
      %3558 = vmatprep.subr.bf16.mxu0 0
      %3559 = vmatpush2.bf16.msra.mxu0 0
      %3560 = vmatprep.subr.bf16.mxu0 0
      %3561 = vmatpush2.bf16.msra.mxu0 0
      %3562 = vmatprep.subr.bf16.mxu0 0
      %3563 = vmatpush2.bf16.msra.mxu0 0
      %3564 = vmatprep.subr.bf16.mxu0 0
      %3565 = vmatpush2.bf16.msra.mxu0 0
      %3566 = vmatprep.subr.bf16.mxu0 0
      %3567 = vmatpush2.bf16.msra.mxu0 0
      %3568 = vmatprep.mubr.bf16.mxu0 0
      %3569 = vmatmul.mubr.bf16.gmra.mxu0 %v3528
      %v3570 = vpop.f32.mrf.mxu0
      %v3571 = vadd.f32 0.0, %v3570
      %v3572 = vpop.f32.mrf.mxu0
      %v3573 = vpop.f32.mrf.mxu0
      %v3574 = vadd.f32 0.0, %v3573
      %v3575 = vpop.f32.mrf.mxu0
      %3576 = vmatprep.mubr.bf16.mxu0 0
      %3577 = vmatmul.mubr.bf16.gmra.mxu0 %v3529
      %v3578 = vpop.f32.mrf.mxu0
      %v3579 = vadd.f32 0.0, %v3578
      %v3580 = vpop.f32.mrf.mxu0
      %v3581 = vpop.f32.mrf.mxu0
      %v3582 = vadd.f32 0.0, %v3581
      %v3583 = vpop.f32.mrf.mxu0
      %3584 = vmatprep.mubr.bf16.mxu0 0
      %3585 = vmatmul.mubr.bf16.gmra.mxu0 %v3530
      %v3586 = vpop.f32.mrf.mxu0
      %v3587 = vadd.f32 0.0, %v3586
      %v3588 = vpop.f32.mrf.mxu0
      %v3589 = vpop.f32.mrf.mxu0
      %v3590 = vadd.f32 0.0, %v3589
      %v3591 = vpop.f32.mrf.mxu0
      %3592 = vmatprep.mubr.bf16.mxu0 0
      %3593 = vmatmul.mubr.bf16.gmra.mxu0 %v3531
      %v3594 = vpop.f32.mrf.mxu0
      %v3595 = vadd.f32 0.0, %v3594
      %v3596 = vpop.f32.mrf.mxu0
      %v3597 = vpop.f32.mrf.mxu0
      %v3598 = vadd.f32 0.0, %v3597
      %v3599 = vpop.f32.mrf.mxu0
      %3600 = vmatprep.mubr.bf16.mxu0 0
      %3601 = vmatmul.mubr.bf16.gmra.mxu0 %v3532
      %v3602 = vpop.f32.mrf.mxu0
      %v3603 = vadd.f32 0.0, %v3602
      %v3604 = vpop.f32.mrf.mxu0
      %v3605 = vpop.f32.mrf.mxu0
      %v3606 = vadd.f32 0.0, %v3605
      %v3607 = vpop.f32.mrf.mxu0
      %3608 = vmatprep.mubr.bf16.mxu0 0
      %3609 = vmatmul.mubr.bf16.gmra.mxu0 %v3533
      %v3610 = vpop.f32.mrf.mxu0
      %v3611 = vadd.f32 0.0, %v3610
      %v3612 = vpop.f32.mrf.mxu0
      %v3613 = vpop.f32.mrf.mxu0
      %v3614 = vadd.f32 0.0, %v3613
      %v3615 = vpop.f32.mrf.mxu0
      %3616 = vmatprep.mubr.bf16.mxu0 0
      %3617 = vmatmul.mubr.bf16.gmra.mxu0 %v3534
      %v3618 = vpop.f32.mrf.mxu0
      %v3619 = vadd.f32 0.0, %v3618
      %v3620 = vpop.f32.mrf.mxu0
      %v3621 = vpop.f32.mrf.mxu0
      %v3622 = vadd.f32 0.0, %v3621
      %v3623 = vpop.f32.mrf.mxu0
      %3624 = vmatprep.mubr.bf16.mxu0 0
      %3625 = vmatmul.mubr.bf16.gmra.mxu0 %v3535
      %v3626 = vpop.f32.mrf.mxu0
      %v3627 = vadd.f32 0.0, %v3626
      %v3628 = vpop.f32.mrf.mxu0
      %v3629 = vpop.f32.mrf.mxu0
      %v3630 = vadd.f32 0.0, %v3629
      %v3631 = vpop.f32.mrf.mxu0
      %3632 = vdwg.mxu0
      %v3633 = vadd.f32 %v1628, %v3571
      %v3634 = vadd.f32 %v1631, %v3574
      %v3635 = vadd.f32 %v1636, %v3579
      %v3636 = vadd.f32 %v1639, %v3582
      %v3637 = vadd.f32 %v1644, %v3587
      %v3638 = vadd.f32 %v1647, %v3590
      %v3639 = vadd.f32 %v1652, %v3595
      %v3640 = vadd.f32 %v1655, %v3598
      %v3641 = vadd.f32 %v1660, %v3603
      %v3642 = vadd.f32 %v1663, %v3606
      %v3643 = vadd.f32 %v1668, %v3611
      %v3644 = vadd.f32 %v1671, %v3614
      %v3645 = vadd.f32 %v1676, %v3619
      %v3646 = vadd.f32 %v1679, %v3622
      %v3647 = vadd.f32 %v1684, %v3627
      %v3648 = vadd.f32 %v1687, %v3630
      %v3649 = vtanh.pop %v3633
      %v3650 = vtanh.pop %v3634
      %v3651 = vtanh.pop %v3635
      %v3652 = vtanh.pop %v3636
      %v3653 = vtanh.pop %v3637
      %v3654 = vtanh.pop %v3638
      %v3655 = vtanh.pop %v3639
      %v3656 = vtanh.pop %v3640
      %v3657 = vtanh.pop %v3641
      %v3658 = vtanh.pop %v3642
      %v3659 = vtanh.pop %v3643
      %v3660 = vtanh.pop %v3644
      %v3661 = vtanh.pop %v3645
      %v3662 = vtanh.pop %v3646
      %v3663 = vtanh.pop %v3647
      %v3664 = vtanh.pop %v3648
      %v3665 = vmax.f32 %v3496, %v3649
      %v3666 = vmax.f32 %v3497, %v3650
      %v3667 = vmax.f32 %v3498, %v3651
      %v3668 = vmax.f32 %v3499, %v3652
      %v3669 = vmax.f32 %v3500, %v3653
      %v3670 = vmax.f32 %v3501, %v3654
      %v3671 = vmax.f32 %v3502, %v3655
      %v3672 = vmax.f32 %v3503, %v3656
      %v3673 = vmax.f32 %v3504, %v3657
      %v3674 = vmax.f32 %v3505, %v3658
      %v3675 = vmax.f32 %v3506, %v3659
      %v3676 = vmax.f32 %v3507, %v3660
      %v3677 = vmax.f32 %v3508, %v3661
      %v3678 = vmax.f32 %v3509, %v3662
      %v3679 = vmax.f32 %v3510, %v3663
      %v3680 = vmax.f32 %v3511, %v3664
      %v3681 = vsel %vm1866, 1, 0
      %v3682 = vsel %vm1867, 1, 0
      %v3683 = vsel %vm1868, 1, 0
      %v3684 = vsel %vm1869, 1, 0
      %v3685 = vsel %vm1870, 1, 0
      %v3686 = vsel %vm1871, 1, 0
      %v3687 = vsel %vm1872, 1, 0
      %v3688 = vsel %vm1873, 1, 0
      %v3689 = vsel %vm1874, 1, 0
      %v3690 = vsel %vm1875, 1, 0
      %v3691 = vsel %vm1876, 1, 0
      %v3692 = vsel %vm1877, 1, 0
      %v3693 = vsel %vm1878, 1, 0
      %v3694 = vsel %vm1879, 1, 0
      %v3695 = vsel %vm1880, 1, 0
      %v3696 = vsel %vm1881, 1, 0
      %3697 = vset.pattern.permute.xlu0 0
      %3698 = vperm.xlu0 %3697, %v3681
      %v3699 = vpop.permute.xlu0 %3698
      %3700 = vset.pattern.permute.xlu0 0
      %3701 = vperm.xlu0 %3700, %v3682
      %v3702 = vpop.permute.xlu0 %3701
      %3703 = vset.pattern.permute.xlu0 0
      %3704 = vperm.xlu0 %3703, %v3683
      %v3705 = vpop.permute.xlu0 %3704
      %3706 = vset.pattern.permute.xlu0 0
      %3707 = vperm.xlu0 %3706, %v3684
      %v3708 = vpop.permute.xlu0 %3707
      %3709 = vset.pattern.permute.xlu0 0
      %3710 = vperm.xlu0 %3709, %v3685
      %v3711 = vpop.permute.xlu0 %3710
      %3712 = vset.pattern.permute.xlu0 0
      %3713 = vperm.xlu0 %3712, %v3686
      %v3714 = vpop.permute.xlu0 %3713
      %3715 = vset.pattern.permute.xlu0 0
      %3716 = vperm.xlu0 %3715, %v3687
      %v3717 = vpop.permute.xlu0 %3716
      %3718 = vset.pattern.permute.xlu0 0
      %3719 = vperm.xlu0 %3718, %v3688
      %v3720 = vpop.permute.xlu0 %3719
      %3721 = vset.pattern.permute.xlu0 0
      %3722 = vperm.xlu0 %3721, %v3689
      %v3723 = vpop.permute.xlu0 %3722
      %3724 = vset.pattern.permute.xlu0 0
      %3725 = vperm.xlu0 %3724, %v3690
      %v3726 = vpop.permute.xlu0 %3725
      %3727 = vset.pattern.permute.xlu0 0
      %3728 = vperm.xlu0 %3727, %v3691
      %v3729 = vpop.permute.xlu0 %3728
      %3730 = vset.pattern.permute.xlu0 0
      %3731 = vperm.xlu0 %3730, %v3692
      %v3732 = vpop.permute.xlu0 %3731
      %3733 = vset.pattern.permute.xlu0 0
      %3734 = vperm.xlu0 %3733, %v3693
      %v3735 = vpop.permute.xlu0 %3734
      %3736 = vset.pattern.permute.xlu0 0
      %3737 = vperm.xlu0 %3736, %v3694
      %v3738 = vpop.permute.xlu0 %3737
      %3739 = vset.pattern.permute.xlu0 0
      %3740 = vperm.xlu0 %3739, %v3695
      %v3741 = vpop.permute.xlu0 %3740
      %3742 = vset.pattern.permute.xlu0 0
      %3743 = vperm.xlu0 %3742, %v3696
      %v3744 = vpop.permute.xlu0 %3743
      %vm3745 = vcmp.eq.s32.totalorder %v3699, 1
      %vm3746 = vcmp.eq.s32.totalorder %v3702, 1
      %vm3747 = vcmp.eq.s32.totalorder %v3705, 1
      %vm3748 = vcmp.eq.s32.totalorder %v3708, 1
      %vm3749 = vcmp.eq.s32.totalorder %v3711, 1
      %vm3750 = vcmp.eq.s32.totalorder %v3714, 1
      %vm3751 = vcmp.eq.s32.totalorder %v3717, 1
      %vm3752 = vcmp.eq.s32.totalorder %v3720, 1
      %vm3753 = vcmp.eq.s32.totalorder %v3723, 1
      %vm3754 = vcmp.eq.s32.totalorder %v3726, 1
      %vm3755 = vcmp.eq.s32.totalorder %v3729, 1
      %vm3756 = vcmp.eq.s32.totalorder %v3732, 1
      %vm3757 = vcmp.eq.s32.totalorder %v3735, 1
      %vm3758 = vcmp.eq.s32.totalorder %v3738, 1
      %vm3759 = vcmp.eq.s32.totalorder %v3741, 1
      %vm3760 = vcmp.eq.s32.totalorder %v3744, 1
      %v3761 = vsel %vm3745, %v3665, %v3496
      %v3762 = vsel %vm3746, %v3666, %v3497
      %v3763 = vsel %vm3747, %v3667, %v3498
      %v3764 = vsel %vm3748, %v3668, %v3499
      %v3765 = vsel %vm3749, %v3669, %v3500
      %v3766 = vsel %vm3750, %v3670, %v3501
      %v3767 = vsel %vm3751, %v3671, %v3502
      %v3768 = vsel %vm3752, %v3672, %v3503
      %v3769 = vsel %vm3753, %v3673, %v3504
      %v3770 = vsel %vm3754, %v3674, %v3505
      %v3771 = vsel %vm3755, %v3675, %v3506
      %v3772 = vsel %vm3756, %v3676, %v3507
      %v3773 = vsel %vm3757, %v3677, %v3508
      %v3774 = vsel %vm3758, %v3678, %v3509
      %v3775 = vsel %vm3759, %v3679, %v3510
      %v3776 = vsel %vm3760, %v3680, %v3511
      %v3777 = vsel %vm3745, %v3649, %v3512
      %v3778 = vsel %vm3746, %v3650, %v3513
      %v3779 = vsel %vm3747, %v3651, %v3514
      %v3780 = vsel %vm3748, %v3652, %v3515
      %v3781 = vsel %vm3749, %v3653, %v3516
      %v3782 = vsel %vm3750, %v3654, %v3517
      %v3783 = vsel %vm3751, %v3655, %v3518
      %v3784 = vsel %vm3752, %v3656, %v3519
      %v3785 = vsel %vm3753, %v3657, %v3520
      %v3786 = vsel %vm3754, %v3658, %v3521
      %v3787 = vsel %vm3755, %v3659, %v3522
      %v3788 = vsel %vm3756, %v3660, %v3523
      %v3789 = vsel %vm3757, %v3661, %v3524
      %v3790 = vsel %vm3758, %v3662, %v3525
      %v3791 = vsel %vm3759, %v3663, %v3526
      %v3792 = vsel %vm3760, %v3664, %v3527
      %v3793 = vpack.c.bf16 %v3778, %v3777
      %v3794 = vpack.c.bf16 %v3780, %v3779
      %v3795 = vpack.c.bf16 %v3782, %v3781
      %v3796 = vpack.c.bf16 %v3784, %v3783
      %v3797 = vpack.c.bf16 %v3786, %v3785
      %v3798 = vpack.c.bf16 %v3788, %v3787
      %v3799 = vpack.c.bf16 %v3790, %v3789
      %v3800 = vpack.c.bf16 %v3792, %v3791
      %3801 = vmatprep.subr.bf16.mxu0 0
      %3802 = vmatpush1.bf16.msra.mxu0 %v1937
      %3803 = vmatprep.subr.bf16.mxu0 0
      %3804 = vmatpush1.bf16.msra.mxu0 %v1936
      %3805 = vmatprep.subr.bf16.mxu0 0
      %3806 = vmatpush1.bf16.msra.mxu0 %v1935
      %3807 = vmatprep.subr.bf16.mxu0 0
      %3808 = vmatpush1.bf16.msra.mxu0 %v1934
      %3809 = vmatprep.subr.bf16.mxu0 0
      %3810 = vmatpush1.bf16.msra.mxu0 %v1933
      %3811 = vmatprep.subr.bf16.mxu0 0
      %3812 = vmatpush1.bf16.msra.mxu0 %v1932
      %3813 = vmatprep.subr.bf16.mxu0 0
      %3814 = vmatpush1.bf16.msra.mxu0 %v1931
      %3815 = vmatprep.subr.bf16.mxu0 0
      %3816 = vmatpush1.bf16.msra.mxu0 %v1930
      %3817 = vmatprep.subr.bf16.mxu0 0
      %3818 = vmatpush2.bf16.msra.mxu0 0
      %3819 = vmatprep.subr.bf16.mxu0 0
      %3820 = vmatpush2.bf16.msra.mxu0 0
      %3821 = vmatprep.subr.bf16.mxu0 0
      %3822 = vmatpush2.bf16.msra.mxu0 0
      %3823 = vmatprep.subr.bf16.mxu0 0
      %3824 = vmatpush2.bf16.msra.mxu0 0
      %3825 = vmatprep.subr.bf16.mxu0 0
      %3826 = vmatpush2.bf16.msra.mxu0 0
      %3827 = vmatprep.subr.bf16.mxu0 0
      %3828 = vmatpush2.bf16.msra.mxu0 0
      %3829 = vmatprep.subr.bf16.mxu0 0
      %3830 = vmatpush2.bf16.msra.mxu0 0
      %3831 = vmatprep.subr.bf16.mxu0 0
      %3832 = vmatpush2.bf16.msra.mxu0 0
      %3833 = vmatprep.mubr.bf16.mxu0 0
      %3834 = vmatmul.mubr.bf16.gmra.mxu0 %v3793
      %v3835 = vpop.f32.mrf.mxu0
      %v3836 = vadd.f32 0.0, %v3835
      %v3837 = vpop.f32.mrf.mxu0
      %v3838 = vpop.f32.mrf.mxu0
      %v3839 = vadd.f32 0.0, %v3838
      %v3840 = vpop.f32.mrf.mxu0
      %3841 = vmatprep.mubr.bf16.mxu0 0
      %3842 = vmatmul.mubr.bf16.gmra.mxu0 %v3794
      %v3843 = vpop.f32.mrf.mxu0
      %v3844 = vadd.f32 0.0, %v3843
      %v3845 = vpop.f32.mrf.mxu0
      %v3846 = vpop.f32.mrf.mxu0
      %v3847 = vadd.f32 0.0, %v3846
      %v3848 = vpop.f32.mrf.mxu0
      %3849 = vmatprep.mubr.bf16.mxu0 0
      %3850 = vmatmul.mubr.bf16.gmra.mxu0 %v3795
      %v3851 = vpop.f32.mrf.mxu0
      %v3852 = vadd.f32 0.0, %v3851
      %v3853 = vpop.f32.mrf.mxu0
      %v3854 = vpop.f32.mrf.mxu0
      %v3855 = vadd.f32 0.0, %v3854
      %v3856 = vpop.f32.mrf.mxu0
      %3857 = vmatprep.mubr.bf16.mxu0 0
      %3858 = vmatmul.mubr.bf16.gmra.mxu0 %v3796
      %v3859 = vpop.f32.mrf.mxu0
      %v3860 = vadd.f32 0.0, %v3859
      %v3861 = vpop.f32.mrf.mxu0
      %v3862 = vpop.f32.mrf.mxu0
      %v3863 = vadd.f32 0.0, %v3862
      %v3864 = vpop.f32.mrf.mxu0
      %3865 = vmatprep.mubr.bf16.mxu0 0
      %3866 = vmatmul.mubr.bf16.gmra.mxu0 %v3797
      %v3867 = vpop.f32.mrf.mxu0
      %v3868 = vadd.f32 0.0, %v3867
      %v3869 = vpop.f32.mrf.mxu0
      %v3870 = vpop.f32.mrf.mxu0
      %v3871 = vadd.f32 0.0, %v3870
      %v3872 = vpop.f32.mrf.mxu0
      %3873 = vmatprep.mubr.bf16.mxu0 0
      %3874 = vmatmul.mubr.bf16.gmra.mxu0 %v3798
      %v3875 = vpop.f32.mrf.mxu0
      %v3876 = vadd.f32 0.0, %v3875
      %v3877 = vpop.f32.mrf.mxu0
      %v3878 = vpop.f32.mrf.mxu0
      %v3879 = vadd.f32 0.0, %v3878
      %v3880 = vpop.f32.mrf.mxu0
      %3881 = vmatprep.mubr.bf16.mxu0 0
      %3882 = vmatmul.mubr.bf16.gmra.mxu0 %v3799
      %v3883 = vpop.f32.mrf.mxu0
      %v3884 = vadd.f32 0.0, %v3883
      %v3885 = vpop.f32.mrf.mxu0
      %v3886 = vpop.f32.mrf.mxu0
      %v3887 = vadd.f32 0.0, %v3886
      %v3888 = vpop.f32.mrf.mxu0
      %3889 = vmatprep.mubr.bf16.mxu0 0
      %3890 = vmatmul.mubr.bf16.gmra.mxu0 %v3800
      %v3891 = vpop.f32.mrf.mxu0
      %v3892 = vadd.f32 0.0, %v3891
      %v3893 = vpop.f32.mrf.mxu0
      %v3894 = vpop.f32.mrf.mxu0
      %v3895 = vadd.f32 0.0, %v3894
      %v3896 = vpop.f32.mrf.mxu0
      %3897 = vdwg.mxu0
      %v3898 = vadd.f32 %v1692, %v3836
      %v3899 = vadd.f32 %v1695, %v3839
      %v3900 = vadd.f32 %v1700, %v3844
      %v3901 = vadd.f32 %v1703, %v3847
      %v3902 = vadd.f32 %v1708, %v3852
      %v3903 = vadd.f32 %v1711, %v3855
      %v3904 = vadd.f32 %v1716, %v3860
      %v3905 = vadd.f32 %v1719, %v3863
      %v3906 = vadd.f32 %v1724, %v3868
      %v3907 = vadd.f32 %v1727, %v3871
      %v3908 = vadd.f32 %v1732, %v3876
      %v3909 = vadd.f32 %v1735, %v3879
      %v3910 = vadd.f32 %v1740, %v3884
      %v3911 = vadd.f32 %v1743, %v3887
      %v3912 = vadd.f32 %v1748, %v3892
      %v3913 = vadd.f32 %v1751, %v3895
      %v3914 = vtanh.pop %v3898
      %v3915 = vtanh.pop %v3899
      %v3916 = vtanh.pop %v3900
      %v3917 = vtanh.pop %v3901
      %v3918 = vtanh.pop %v3902
      %v3919 = vtanh.pop %v3903
      %v3920 = vtanh.pop %v3904
      %v3921 = vtanh.pop %v3905
      %v3922 = vtanh.pop %v3906
      %v3923 = vtanh.pop %v3907
      %v3924 = vtanh.pop %v3908
      %v3925 = vtanh.pop %v3909
      %v3926 = vtanh.pop %v3910
      %v3927 = vtanh.pop %v3911
      %v3928 = vtanh.pop %v3912
      %v3929 = vtanh.pop %v3913
      %v3930 = vmax.f32 %v3761, %v3914
      %v3931 = vmax.f32 %v3762, %v3915
      %v3932 = vmax.f32 %v3763, %v3916
      %v3933 = vmax.f32 %v3764, %v3917
      %v3934 = vmax.f32 %v3765, %v3918
      %v3935 = vmax.f32 %v3766, %v3919
      %v3936 = vmax.f32 %v3767, %v3920
      %v3937 = vmax.f32 %v3768, %v3921
      %v3938 = vmax.f32 %v3769, %v3922
      %v3939 = vmax.f32 %v3770, %v3923
      %v3940 = vmax.f32 %v3771, %v3924
      %v3941 = vmax.f32 %v3772, %v3925
      %v3942 = vmax.f32 %v3773, %v3926
      %v3943 = vmax.f32 %v3774, %v3927
      %v3944 = vmax.f32 %v3775, %v3928
      %v3945 = vmax.f32 %v3776, %v3929
      %v3946 = vsel %vm1882, 1, 0
      %v3947 = vsel %vm1883, 1, 0
      %v3948 = vsel %vm1884, 1, 0
      %v3949 = vsel %vm1885, 1, 0
      %v3950 = vsel %vm1886, 1, 0
      %v3951 = vsel %vm1887, 1, 0
      %v3952 = vsel %vm1888, 1, 0
      %v3953 = vsel %vm1889, 1, 0
      %v3954 = vsel %vm1890, 1, 0
      %v3955 = vsel %vm1891, 1, 0
      %v3956 = vsel %vm1892, 1, 0
      %v3957 = vsel %vm1893, 1, 0
      %v3958 = vsel %vm1894, 1, 0
      %v3959 = vsel %vm1895, 1, 0
      %v3960 = vsel %vm1896, 1, 0
      %v3961 = vsel %vm1897, 1, 0
      %3962 = vset.pattern.permute.xlu0 0
      %3963 = vperm.xlu0 %3962, %v3946
      %v3964 = vpop.permute.xlu0 %3963
      %3965 = vset.pattern.permute.xlu0 0
      %3966 = vperm.xlu0 %3965, %v3947
      %v3967 = vpop.permute.xlu0 %3966
      %3968 = vset.pattern.permute.xlu0 0
      %3969 = vperm.xlu0 %3968, %v3948
      %v3970 = vpop.permute.xlu0 %3969
      %3971 = vset.pattern.permute.xlu0 0
      %3972 = vperm.xlu0 %3971, %v3949
      %v3973 = vpop.permute.xlu0 %3972
      %3974 = vset.pattern.permute.xlu0 0
      %3975 = vperm.xlu0 %3974, %v3950
      %v3976 = vpop.permute.xlu0 %3975
      %3977 = vset.pattern.permute.xlu0 0
      %3978 = vperm.xlu0 %3977, %v3951
      %v3979 = vpop.permute.xlu0 %3978
      %3980 = vset.pattern.permute.xlu0 0
      %3981 = vperm.xlu0 %3980, %v3952
      %v3982 = vpop.permute.xlu0 %3981
      %3983 = vset.pattern.permute.xlu0 0
      %3984 = vperm.xlu0 %3983, %v3953
      %v3985 = vpop.permute.xlu0 %3984
      %3986 = vset.pattern.permute.xlu0 0
      %3987 = vperm.xlu0 %3986, %v3954
      %v3988 = vpop.permute.xlu0 %3987
      %3989 = vset.pattern.permute.xlu0 0
      %3990 = vperm.xlu0 %3989, %v3955
      %v3991 = vpop.permute.xlu0 %3990
      %3992 = vset.pattern.permute.xlu0 0
      %3993 = vperm.xlu0 %3992, %v3956
      %v3994 = vpop.permute.xlu0 %3993
      %3995 = vset.pattern.permute.xlu0 0
      %3996 = vperm.xlu0 %3995, %v3957
      %v3997 = vpop.permute.xlu0 %3996
      %3998 = vset.pattern.permute.xlu0 0
      %3999 = vperm.xlu0 %3998, %v3958
      %v4000 = vpop.permute.xlu0 %3999
      %4001 = vset.pattern.permute.xlu0 0
      %4002 = vperm.xlu0 %4001, %v3959
      %v4003 = vpop.permute.xlu0 %4002
      %4004 = vset.pattern.permute.xlu0 0
      %4005 = vperm.xlu0 %4004, %v3960
      %v4006 = vpop.permute.xlu0 %4005
      %4007 = vset.pattern.permute.xlu0 0
      %4008 = vperm.xlu0 %4007, %v3961
      %v4009 = vpop.permute.xlu0 %4008
      %vm4010 = vcmp.eq.s32.totalorder %v3964, 1
      %vm4011 = vcmp.eq.s32.totalorder %v3967, 1
      %vm4012 = vcmp.eq.s32.totalorder %v3970, 1
      %vm4013 = vcmp.eq.s32.totalorder %v3973, 1
      %vm4014 = vcmp.eq.s32.totalorder %v3976, 1
      %vm4015 = vcmp.eq.s32.totalorder %v3979, 1
      %vm4016 = vcmp.eq.s32.totalorder %v3982, 1
      %vm4017 = vcmp.eq.s32.totalorder %v3985, 1
      %vm4018 = vcmp.eq.s32.totalorder %v3988, 1
      %vm4019 = vcmp.eq.s32.totalorder %v3991, 1
      %vm4020 = vcmp.eq.s32.totalorder %v3994, 1
      %vm4021 = vcmp.eq.s32.totalorder %v3997, 1
      %vm4022 = vcmp.eq.s32.totalorder %v4000, 1
      %vm4023 = vcmp.eq.s32.totalorder %v4003, 1
      %vm4024 = vcmp.eq.s32.totalorder %v4006, 1
      %vm4025 = vcmp.eq.s32.totalorder %v4009, 1
      %v4026 = vsel %vm4010, %v3930, %v3761
      %v4027 = vsel %vm4011, %v3931, %v3762
      %v4028 = vsel %vm4012, %v3932, %v3763
      %v4029 = vsel %vm4013, %v3933, %v3764
      %v4030 = vsel %vm4014, %v3934, %v3765
      %v4031 = vsel %vm4015, %v3935, %v3766
      %v4032 = vsel %vm4016, %v3936, %v3767
      %v4033 = vsel %vm4017, %v3937, %v3768
      %v4034 = vsel %vm4018, %v3938, %v3769
      %v4035 = vsel %vm4019, %v3939, %v3770
      %v4036 = vsel %vm4020, %v3940, %v3771
      %v4037 = vsel %vm4021, %v3941, %v3772
      %v4038 = vsel %vm4022, %v3942, %v3773
      %v4039 = vsel %vm4023, %v3943, %v3774
      %v4040 = vsel %vm4024, %v3944, %v3775
      %v4041 = vsel %vm4025, %v3945, %v3776
      %v4042 = vld [vmem:[%s7] sm:$0xf]
      %v4043 = vld [vmem:[%s7 + $0x4] sm:$0xf]
      %v4044 = vld [vmem:[%s7 + $0x8] sm:$0xf]
      %v4045 = vld [vmem:[%s7 + $0xc] sm:$0xf]
      %v4046 = vld [vmem:[%s7 + $0x10] sm:$0xf]
      %v4047 = vld [vmem:[%s7 + $0x14] sm:$0xf]
      %v4048 = vld [vmem:[%s7 + $0x18] sm:$0xf]
      %v4049 = vld [vmem:[%s7 + $0x1c] sm:$0xf]
      %v4050 = vld [vmem:[%s7 + $0x20] sm:$0xf]
      %v4051 = vld [vmem:[%s7 + $0x24] sm:$0xf]
      %v4052 = vld [vmem:[%s7 + $0x28] sm:$0xf]
      %v4053 = vld [vmem:[%s7 + $0x2c] sm:$0xf]
      %v4054 = vld [vmem:[%s7 + $0x30] sm:$0xf]
      %v4055 = vld [vmem:[%s7 + $0x34] sm:$0xf]
      %v4056 = vld [vmem:[%s7 + $0x38] sm:$0xf]
      %v4057 = vld [vmem:[%s7 + $0x3c] sm:$0xf]
      %v4058 = vld [vmem:[%s8] sm:$0xf]
      %v4059 = vld [vmem:[%s8 + $0x4] sm:$0xf]
      %v4060 = vld [vmem:[%s8 + $0x8] sm:$0xf]
      %v4061 = vld [vmem:[%s8 + $0xc] sm:$0xf]
      %v4062 = vld [vmem:[%s8 + $0x10] sm:$0xf]
      %v4063 = vld [vmem:[%s8 + $0x14] sm:$0xf]
      %v4064 = vld [vmem:[%s8 + $0x18] sm:$0xf]
      %v4065 = vld [vmem:[%s8 + $0x1c] sm:$0xf]
      %v4066 = vld [vmem:[%s8 + $0x20] sm:$0xf]
      %v4067 = vld [vmem:[%s8 + $0x24] sm:$0xf]
      %v4068 = vld [vmem:[%s8 + $0x28] sm:$0xf]
      %v4069 = vld [vmem:[%s8 + $0x2c] sm:$0xf]
      %v4070 = vld [vmem:[%s8 + $0x30] sm:$0xf]
      %v4071 = vld [vmem:[%s8 + $0x34] sm:$0xf]
      %v4072 = vld [vmem:[%s8 + $0x38] sm:$0xf]
      %v4073 = vld [vmem:[%s8 + $0x3c] sm:$0xf]
      %v4074 = vld [vmem:[%s9] sm:$0xf]
      %v4075 = vld [vmem:[%s9 + $0x4] sm:$0xf]
      %v4076 = vld [vmem:[%s9 + $0x8] sm:$0xf]
      %v4077 = vld [vmem:[%s9 + $0xc] sm:$0xf]
      %v4078 = vld [vmem:[%s9 + $0x10] sm:$0xf]
      %v4079 = vld [vmem:[%s9 + $0x14] sm:$0xf]
      %v4080 = vld [vmem:[%s9 + $0x18] sm:$0xf]
      %v4081 = vld [vmem:[%s9 + $0x1c] sm:$0xf]
      %v4082 = vld [vmem:[%s9 + $0x20] sm:$0xf]
      %v4083 = vld [vmem:[%s9 + $0x24] sm:$0xf]
      %v4084 = vld [vmem:[%s9 + $0x28] sm:$0xf]
      %v4085 = vld [vmem:[%s9 + $0x2c] sm:$0xf]
      %v4086 = vld [vmem:[%s9 + $0x30] sm:$0xf]
      %v4087 = vld [vmem:[%s9 + $0x34] sm:$0xf]
      %v4088 = vld [vmem:[%s9 + $0x38] sm:$0xf]
      %v4089 = vld [vmem:[%s9 + $0x3c] sm:$0xf]
      %v4090 = vld [vmem:[%s10] sm:$0xf]
      %v4091 = vld [vmem:[%s10 + $0x4] sm:$0xf]
      %v4092 = vld [vmem:[%s10 + $0x8] sm:$0xf]
      %v4093 = vld [vmem:[%s10 + $0xc] sm:$0xf]
      %v4094 = vld [vmem:[%s10 + $0x10] sm:$0xf]
      %v4095 = vld [vmem:[%s10 + $0x14] sm:$0xf]
      %v4096 = vld [vmem:[%s10 + $0x18] sm:$0xf]
      %v4097 = vld [vmem:[%s10 + $0x1c] sm:$0xf]
      %v4098 = vld [vmem:[%s10 + $0x20] sm:$0xf]
      %v4099 = vld [vmem:[%s10 + $0x24] sm:$0xf]
      %v4100 = vld [vmem:[%s10 + $0x28] sm:$0xf]
      %v4101 = vld [vmem:[%s10 + $0x2c] sm:$0xf]
      %v4102 = vld [vmem:[%s10 + $0x30] sm:$0xf]
      %v4103 = vld [vmem:[%s10 + $0x34] sm:$0xf]
      %v4104 = vld [vmem:[%s10 + $0x38] sm:$0xf]
      %v4105 = vld [vmem:[%s10 + $0x3c] sm:$0xf]
      %v4106 = vld [vmem:[%s11] sm:$0x1]
      %v4107 = vld [vmem:[%s12] sm:$0xf]
      %v4108 = vld [vmem:[%s12 + $0x4] sm:$0xf]
      %v4109 = vld [vmem:[%s12 + $0x8] sm:$0xf]
      %v4110 = vld [vmem:[%s12 + $0xc] sm:$0xf]
      %v4111 = vld [vmem:[%s12 + $0x10] sm:$0xf]
      %v4112 = vld [vmem:[%s12 + $0x14] sm:$0xf]
      %v4113 = vld [vmem:[%s12 + $0x18] sm:$0xf]
      %v4114 = vld [vmem:[%s12 + $0x1c] sm:$0xf]
      %v4115 = vld [vmem:[%s12 + $0x20] sm:$0xf]
      %v4116 = vld [vmem:[%s12 + $0x24] sm:$0xf]
      %v4117 = vld [vmem:[%s12 + $0x28] sm:$0xf]
      %v4118 = vld [vmem:[%s12 + $0x2c] sm:$0xf]
      %v4119 = vld [vmem:[%s12 + $0x30] sm:$0xf]
      %v4120 = vld [vmem:[%s12 + $0x34] sm:$0xf]
      %v4121 = vld [vmem:[%s12 + $0x38] sm:$0xf]
      %v4122 = vld [vmem:[%s12 + $0x3c] sm:$0xf]
      %v4123 = vld [vmem:[%s13] sm:$0x1]
      %v4124 = vsub.f32 %v4026, %v4034
      %v4125 = vsub.f32 %v4027, %v4035
      %v4126 = vsub.f32 %v4028, %v4036
      %v4127 = vsub.f32 %v4029, %v4037
      %v4128 = vsub.f32 %v4030, %v4038
      %v4129 = vsub.f32 %v4031, %v4039
      %v4130 = vsub.f32 %v4032, %v4040
      %v4131 = vsub.f32 %v4033, %v4041
      %v4132 = vand.u32 2147483647, %v4124
      %v4133 = vand.u32 2147483647, %v4125
      %v4134 = vand.u32 2147483647, %v4126
      %v4135 = vand.u32 2147483647, %v4127
      %v4136 = vand.u32 2147483647, %v4128
      %v4137 = vand.u32 2147483647, %v4129
      %v4138 = vand.u32 2147483647, %v4130
      %v4139 = vand.u32 2147483647, %v4131
      %v4140 = vmul.f32 %v4026, %v4034
      %v4141 = vmul.f32 %v4027, %v4035
      %v4142 = vmul.f32 %v4028, %v4036
      %v4143 = vmul.f32 %v4029, %v4037
      %v4144 = vmul.f32 %v4030, %v4038
      %v4145 = vmul.f32 %v4031, %v4039
      %v4146 = vmul.f32 %v4032, %v4040
      %v4147 = vmul.f32 %v4033, %v4041
      %v4148 = vpack.c.bf16 %v4027, %v4026
      %v4149 = vpack.c.bf16 %v4029, %v4028
      %v4150 = vpack.c.bf16 %v4031, %v4030
      %v4151 = vpack.c.bf16 %v4033, %v4032
      %v4152 = vpack.c.bf16 %v4035, %v4034
      %v4153 = vpack.c.bf16 %v4037, %v4036
      %v4154 = vpack.c.bf16 %v4039, %v4038
      %v4155 = vpack.c.bf16 %v4041, %v4040
      %v4172 = vunpack.c.l.b16 %v4058
      %v4173 = vunpack.c.l.b16 %v4059
      %v4174 = vunpack.c.l.b16 %v4060
      %v4175 = vunpack.c.l.b16 %v4061
      %v4176 = vunpack.c.l.b16 %v4062
      %v4177 = vunpack.c.l.b16 %v4063
      %v4178 = vunpack.c.l.b16 %v4064
      %v4179 = vunpack.c.l.b16 %v4065
      %v4180 = vunpack.c.l.b16 %v4066
      %v4181 = vunpack.c.l.b16 %v4067
      %v4182 = vunpack.c.l.b16 %v4068
      %v4183 = vunpack.c.l.b16 %v4069
      %v4184 = vunpack.c.l.b16 %v4070
      %v4185 = vunpack.c.l.b16 %v4071
      %v4186 = vunpack.c.l.b16 %v4072
      %v4187 = vunpack.c.l.b16 %v4073
      %v4188 = vpack.c.b16 %v4173, %v4172
      %v4189 = vpack.c.b16 %v4175, %v4174
      %v4190 = vpack.c.b16 %v4177, %v4176
      %v4191 = vpack.c.b16 %v4179, %v4178
      %v4192 = vpack.c.b16 %v4181, %v4180
      %v4193 = vpack.c.b16 %v4183, %v4182
      %v4194 = vpack.c.b16 %v4185, %v4184
      %v4195 = vpack.c.b16 %v4187, %v4186
      %4204 = vmatprep.subr.bf16.mxu0 0
      %4205 = vmatpush1.bf16.msra.mxu0 %v4195
      %4206 = vmatprep.subr.bf16.mxu0 0
      %4207 = vmatpush1.bf16.msra.mxu0 %v4194
      %4208 = vmatprep.subr.bf16.mxu0 0
      %4209 = vmatpush1.bf16.msra.mxu0 %v4193
      %4210 = vmatprep.subr.bf16.mxu0 0
      %4211 = vmatpush1.bf16.msra.mxu0 %v4192
      %4212 = vmatprep.subr.bf16.mxu0 0
      %4213 = vmatpush1.bf16.msra.mxu0 %v4191
      %4214 = vmatprep.subr.bf16.mxu0 0
      %4215 = vmatpush1.bf16.msra.mxu0 %v4190
      %4216 = vmatprep.subr.bf16.mxu0 0
      %4217 = vmatpush1.bf16.msra.mxu0 %v4189
      %4218 = vmatprep.subr.bf16.mxu0 0
      %4219 = vmatpush1.bf16.msra.mxu0 %v4188
      %4220 = vmatprep.subr.bf16.mxu0 0
      %4221 = vmatpush2.bf16.msra.mxu0 0
      %4222 = vmatprep.subr.bf16.mxu0 0
      %4223 = vmatpush2.bf16.msra.mxu0 0
      %4224 = vmatprep.subr.bf16.mxu0 0
      %4225 = vmatpush2.bf16.msra.mxu0 0
      %4226 = vmatprep.subr.bf16.mxu0 0
      %4227 = vmatpush2.bf16.msra.mxu0 0
      %4228 = vmatprep.subr.bf16.mxu0 0
      %4229 = vmatpush2.bf16.msra.mxu0 0
      %4230 = vmatprep.subr.bf16.mxu0 0
      %4231 = vmatpush2.bf16.msra.mxu0 0
      %4232 = vmatprep.subr.bf16.mxu0 0
      %4233 = vmatpush2.bf16.msra.mxu0 0
      %4234 = vmatprep.subr.bf16.mxu0 0
      %4235 = vmatpush2.bf16.msra.mxu0 0
      %4236 = vmatprep.mubr.bf16.mxu0 0
      %4237 = vmatmul.mubr.bf16.gmra.mxu0 %v4152
      %v4238 = vpop.f32.mrf.mxu0
      %v4239 = vadd.f32 0.0, %v4238
      %v4240 = vpop.f32.mrf.mxu0
      %v4241 = vpop.f32.mrf.mxu0
      %v4242 = vadd.f32 0.0, %v4241
      %v4243 = vpop.f32.mrf.mxu0
      %4244 = vmatprep.mubr.bf16.mxu0 0
      %4245 = vmatmul.mubr.bf16.gmra.mxu0 %v4153
      %v4246 = vpop.f32.mrf.mxu0
      %v4247 = vadd.f32 0.0, %v4246
      %v4248 = vpop.f32.mrf.mxu0
      %v4249 = vpop.f32.mrf.mxu0
      %v4250 = vadd.f32 0.0, %v4249
      %v4251 = vpop.f32.mrf.mxu0
      %4252 = vmatprep.mubr.bf16.mxu0 0
      %4253 = vmatmul.mubr.bf16.gmra.mxu0 %v4154
      %v4254 = vpop.f32.mrf.mxu0
      %v4255 = vadd.f32 0.0, %v4254
      %v4256 = vpop.f32.mrf.mxu0
      %v4257 = vpop.f32.mrf.mxu0
      %v4258 = vadd.f32 0.0, %v4257
      %v4259 = vpop.f32.mrf.mxu0
      %4260 = vmatprep.mubr.bf16.mxu0 0
      %4261 = vmatmul.mubr.bf16.gmra.mxu0 %v4155
      %v4262 = vpop.f32.mrf.mxu0
      %v4263 = vadd.f32 0.0, %v4262
      %v4264 = vpop.f32.mrf.mxu0
      %v4265 = vpop.f32.mrf.mxu0
      %v4266 = vadd.f32 0.0, %v4265
      %v4267 = vpop.f32.mrf.mxu0
      %4268 = vdwg.mxu0
      %v4285 = vunpack.c.l.b16 %v4042
      %v4286 = vunpack.c.l.b16 %v4043
      %v4287 = vunpack.c.l.b16 %v4044
      %v4288 = vunpack.c.l.b16 %v4045
      %v4289 = vunpack.c.l.b16 %v4046
      %v4290 = vunpack.c.l.b16 %v4047
      %v4291 = vunpack.c.l.b16 %v4048
      %v4292 = vunpack.c.l.b16 %v4049
      %v4293 = vunpack.c.l.b16 %v4050
      %v4294 = vunpack.c.l.b16 %v4051
      %v4295 = vunpack.c.l.b16 %v4052
      %v4296 = vunpack.c.l.b16 %v4053
      %v4297 = vunpack.c.l.b16 %v4054
      %v4298 = vunpack.c.l.b16 %v4055
      %v4299 = vunpack.c.l.b16 %v4056
      %v4300 = vunpack.c.l.b16 %v4057
      %v4301 = vpack.c.b16 %v4286, %v4285
      %v4302 = vpack.c.b16 %v4288, %v4287
      %v4303 = vpack.c.b16 %v4290, %v4289
      %v4304 = vpack.c.b16 %v4292, %v4291
      %v4305 = vpack.c.b16 %v4294, %v4293
      %v4306 = vpack.c.b16 %v4296, %v4295
      %v4307 = vpack.c.b16 %v4298, %v4297
      %v4308 = vpack.c.b16 %v4300, %v4299
      %4317 = vmatprep.subr.bf16.mxu0 0
      %4318 = vmatpush1.bf16.msra.mxu0 %v4308
      %4319 = vmatprep.subr.bf16.mxu0 0
      %4320 = vmatpush1.bf16.msra.mxu0 %v4307
      %4321 = vmatprep.subr.bf16.mxu0 0
      %4322 = vmatpush1.bf16.msra.mxu0 %v4306
      %4323 = vmatprep.subr.bf16.mxu0 0
      %4324 = vmatpush1.bf16.msra.mxu0 %v4305
      %4325 = vmatprep.subr.bf16.mxu0 0
      %4326 = vmatpush1.bf16.msra.mxu0 %v4304
      %4327 = vmatprep.subr.bf16.mxu0 0
      %4328 = vmatpush1.bf16.msra.mxu0 %v4303
      %4329 = vmatprep.subr.bf16.mxu0 0
      %4330 = vmatpush1.bf16.msra.mxu0 %v4302
      %4331 = vmatprep.subr.bf16.mxu0 0
      %4332 = vmatpush1.bf16.msra.mxu0 %v4301
      %4333 = vmatprep.subr.bf16.mxu0 0
      %4334 = vmatpush2.bf16.msra.mxu0 0
      %4335 = vmatprep.subr.bf16.mxu0 0
      %4336 = vmatpush2.bf16.msra.mxu0 0
      %4337 = vmatprep.subr.bf16.mxu0 0
      %4338 = vmatpush2.bf16.msra.mxu0 0
      %4339 = vmatprep.subr.bf16.mxu0 0
      %4340 = vmatpush2.bf16.msra.mxu0 0
      %4341 = vmatprep.subr.bf16.mxu0 0
      %4342 = vmatpush2.bf16.msra.mxu0 0
      %4343 = vmatprep.subr.bf16.mxu0 0
      %4344 = vmatpush2.bf16.msra.mxu0 0
      %4345 = vmatprep.subr.bf16.mxu0 0
      %4346 = vmatpush2.bf16.msra.mxu0 0
      %4347 = vmatprep.subr.bf16.mxu0 0
      %4348 = vmatpush2.bf16.msra.mxu0 0
      %4349 = vmatprep.mubr.bf16.mxu0 0
      %4350 = vmatmul.mubr.bf16.gmra.mxu0 %v4148
      %v4351 = vpop.f32.mrf.mxu0
      %v4352 = vadd.f32 %v4239, %v4351
      %v4353 = vpop.f32.mrf.mxu0
      %v4354 = vpop.f32.mrf.mxu0
      %v4355 = vadd.f32 %v4242, %v4354
      %v4356 = vpop.f32.mrf.mxu0
      %4357 = vmatprep.mubr.bf16.mxu0 0
      %4358 = vmatmul.mubr.bf16.gmra.mxu0 %v4149
      %v4359 = vpop.f32.mrf.mxu0
      %v4360 = vadd.f32 %v4247, %v4359
      %v4361 = vpop.f32.mrf.mxu0
      %v4362 = vpop.f32.mrf.mxu0
      %v4363 = vadd.f32 %v4250, %v4362
      %v4364 = vpop.f32.mrf.mxu0
      %4365 = vmatprep.mubr.bf16.mxu0 0
      %4366 = vmatmul.mubr.bf16.gmra.mxu0 %v4150
      %v4367 = vpop.f32.mrf.mxu0
      %v4368 = vadd.f32 %v4255, %v4367
      %v4369 = vpop.f32.mrf.mxu0
      %v4370 = vpop.f32.mrf.mxu0
      %v4371 = vadd.f32 %v4258, %v4370
      %v4372 = vpop.f32.mrf.mxu0
      %4373 = vmatprep.mubr.bf16.mxu0 0
      %4374 = vmatmul.mubr.bf16.gmra.mxu0 %v4151
      %v4375 = vpop.f32.mrf.mxu0
      %v4376 = vadd.f32 %v4263, %v4375
      %v4377 = vpop.f32.mrf.mxu0
      %v4378 = vpop.f32.mrf.mxu0
      %v4379 = vadd.f32 %v4266, %v4378
      %v4380 = vpop.f32.mrf.mxu0
      %4381 = vdwg.mxu0
      %v4382 = vpack.c.bf16 %v4133, %v4132
      %v4383 = vpack.c.bf16 %v4135, %v4134
      %v4384 = vpack.c.bf16 %v4137, %v4136
      %v4385 = vpack.c.bf16 %v4139, %v4138
      %v4402 = vunpack.c.l.b16 %v4074
      %v4403 = vunpack.c.l.b16 %v4075
      %v4404 = vunpack.c.l.b16 %v4076
      %v4405 = vunpack.c.l.b16 %v4077
      %v4406 = vunpack.c.l.b16 %v4078
      %v4407 = vunpack.c.l.b16 %v4079
      %v4408 = vunpack.c.l.b16 %v4080
      %v4409 = vunpack.c.l.b16 %v4081
      %v4410 = vunpack.c.l.b16 %v4082
      %v4411 = vunpack.c.l.b16 %v4083
      %v4412 = vunpack.c.l.b16 %v4084
      %v4413 = vunpack.c.l.b16 %v4085
      %v4414 = vunpack.c.l.b16 %v4086
      %v4415 = vunpack.c.l.b16 %v4087
      %v4416 = vunpack.c.l.b16 %v4088
      %v4417 = vunpack.c.l.b16 %v4089
      %v4418 = vpack.c.b16 %v4403, %v4402
      %v4419 = vpack.c.b16 %v4405, %v4404
      %v4420 = vpack.c.b16 %v4407, %v4406
      %v4421 = vpack.c.b16 %v4409, %v4408
      %v4422 = vpack.c.b16 %v4411, %v4410
      %v4423 = vpack.c.b16 %v4413, %v4412
      %v4424 = vpack.c.b16 %v4415, %v4414
      %v4425 = vpack.c.b16 %v4417, %v4416
      %4434 = vmatprep.subr.bf16.mxu0 0
      %4435 = vmatpush1.bf16.msra.mxu0 %v4425
      %4436 = vmatprep.subr.bf16.mxu0 0
      %4437 = vmatpush1.bf16.msra.mxu0 %v4424
      %4438 = vmatprep.subr.bf16.mxu0 0
      %4439 = vmatpush1.bf16.msra.mxu0 %v4423
      %4440 = vmatprep.subr.bf16.mxu0 0
      %4441 = vmatpush1.bf16.msra.mxu0 %v4422
      %4442 = vmatprep.subr.bf16.mxu0 0
      %4443 = vmatpush1.bf16.msra.mxu0 %v4421
      %4444 = vmatprep.subr.bf16.mxu0 0
      %4445 = vmatpush1.bf16.msra.mxu0 %v4420
      %4446 = vmatprep.subr.bf16.mxu0 0
      %4447 = vmatpush1.bf16.msra.mxu0 %v4419
      %4448 = vmatprep.subr.bf16.mxu0 0
      %4449 = vmatpush1.bf16.msra.mxu0 %v4418
      %4450 = vmatprep.subr.bf16.mxu0 0
      %4451 = vmatpush2.bf16.msra.mxu0 0
      %4452 = vmatprep.subr.bf16.mxu0 0
      %4453 = vmatpush2.bf16.msra.mxu0 0
      %4454 = vmatprep.subr.bf16.mxu0 0
      %4455 = vmatpush2.bf16.msra.mxu0 0
      %4456 = vmatprep.subr.bf16.mxu0 0
      %4457 = vmatpush2.bf16.msra.mxu0 0
      %4458 = vmatprep.subr.bf16.mxu0 0
      %4459 = vmatpush2.bf16.msra.mxu0 0
      %4460 = vmatprep.subr.bf16.mxu0 0
      %4461 = vmatpush2.bf16.msra.mxu0 0
      %4462 = vmatprep.subr.bf16.mxu0 0
      %4463 = vmatpush2.bf16.msra.mxu0 0
      %4464 = vmatprep.subr.bf16.mxu0 0
      %4465 = vmatpush2.bf16.msra.mxu0 0
      %4466 = vmatprep.mubr.bf16.mxu0 0
      %4467 = vmatmul.mubr.bf16.gmra.mxu0 %v4382
      %v4468 = vpop.f32.mrf.mxu0
      %v4469 = vadd.f32 0.0, %v4468
      %v4470 = vpop.f32.mrf.mxu0
      %v4471 = vpop.f32.mrf.mxu0
      %v4472 = vadd.f32 0.0, %v4471
      %v4473 = vpop.f32.mrf.mxu0
      %4474 = vmatprep.mubr.bf16.mxu0 0
      %4475 = vmatmul.mubr.bf16.gmra.mxu0 %v4383
      %v4476 = vpop.f32.mrf.mxu0
      %v4477 = vadd.f32 0.0, %v4476
      %v4478 = vpop.f32.mrf.mxu0
      %v4479 = vpop.f32.mrf.mxu0
      %v4480 = vadd.f32 0.0, %v4479
      %v4481 = vpop.f32.mrf.mxu0
      %4482 = vmatprep.mubr.bf16.mxu0 0
      %4483 = vmatmul.mubr.bf16.gmra.mxu0 %v4384
      %v4484 = vpop.f32.mrf.mxu0
      %v4485 = vadd.f32 0.0, %v4484
      %v4486 = vpop.f32.mrf.mxu0
      %v4487 = vpop.f32.mrf.mxu0
      %v4488 = vadd.f32 0.0, %v4487
      %v4489 = vpop.f32.mrf.mxu0
      %4490 = vmatprep.mubr.bf16.mxu0 0
      %4491 = vmatmul.mubr.bf16.gmra.mxu0 %v4385
      %v4492 = vpop.f32.mrf.mxu0
      %v4493 = vadd.f32 0.0, %v4492
      %v4494 = vpop.f32.mrf.mxu0
      %v4495 = vpop.f32.mrf.mxu0
      %v4496 = vadd.f32 0.0, %v4495
      %v4497 = vpop.f32.mrf.mxu0
      %4498 = vdwg.mxu0
      %v4499 = vadd.f32 %v4352, %v4469
      %v4500 = vadd.f32 %v4355, %v4472
      %v4501 = vadd.f32 %v4360, %v4477
      %v4502 = vadd.f32 %v4363, %v4480
      %v4503 = vadd.f32 %v4368, %v4485
      %v4504 = vadd.f32 %v4371, %v4488
      %v4505 = vadd.f32 %v4376, %v4493
      %v4506 = vadd.f32 %v4379, %v4496
      %v4507 = vpack.c.bf16 %v4141, %v4140
      %v4508 = vpack.c.bf16 %v4143, %v4142
      %v4509 = vpack.c.bf16 %v4145, %v4144
      %v4510 = vpack.c.bf16 %v4147, %v4146
      %v4527 = vunpack.c.l.b16 %v4090
      %v4528 = vunpack.c.l.b16 %v4091
      %v4529 = vunpack.c.l.b16 %v4092
      %v4530 = vunpack.c.l.b16 %v4093
      %v4531 = vunpack.c.l.b16 %v4094
      %v4532 = vunpack.c.l.b16 %v4095
      %v4533 = vunpack.c.l.b16 %v4096
      %v4534 = vunpack.c.l.b16 %v4097
      %v4535 = vunpack.c.l.b16 %v4098
      %v4536 = vunpack.c.l.b16 %v4099
      %v4537 = vunpack.c.l.b16 %v4100
      %v4538 = vunpack.c.l.b16 %v4101
      %v4539 = vunpack.c.l.b16 %v4102
      %v4540 = vunpack.c.l.b16 %v4103
      %v4541 = vunpack.c.l.b16 %v4104
      %v4542 = vunpack.c.l.b16 %v4105
      %v4543 = vpack.c.b16 %v4528, %v4527
      %v4544 = vpack.c.b16 %v4530, %v4529
      %v4545 = vpack.c.b16 %v4532, %v4531
      %v4546 = vpack.c.b16 %v4534, %v4533
      %v4547 = vpack.c.b16 %v4536, %v4535
      %v4548 = vpack.c.b16 %v4538, %v4537
      %v4549 = vpack.c.b16 %v4540, %v4539
      %v4550 = vpack.c.b16 %v4542, %v4541
      %4559 = vmatprep.subr.bf16.mxu0 0
      %4560 = vmatpush1.bf16.msra.mxu0 %v4550
      %4561 = vmatprep.subr.bf16.mxu0 0
      %4562 = vmatpush1.bf16.msra.mxu0 %v4549
      %4563 = vmatprep.subr.bf16.mxu0 0
      %4564 = vmatpush1.bf16.msra.mxu0 %v4548
      %4565 = vmatprep.subr.bf16.mxu0 0
      %4566 = vmatpush1.bf16.msra.mxu0 %v4547
      %4567 = vmatprep.subr.bf16.mxu0 0
      %4568 = vmatpush1.bf16.msra.mxu0 %v4546
      %4569 = vmatprep.subr.bf16.mxu0 0
      %4570 = vmatpush1.bf16.msra.mxu0 %v4545
      %4571 = vmatprep.subr.bf16.mxu0 0
      %4572 = vmatpush1.bf16.msra.mxu0 %v4544
      %4573 = vmatprep.subr.bf16.mxu0 0
      %4574 = vmatpush1.bf16.msra.mxu0 %v4543
      %4575 = vmatprep.subr.bf16.mxu0 0
      %4576 = vmatpush2.bf16.msra.mxu0 0
      %4577 = vmatprep.subr.bf16.mxu0 0
      %4578 = vmatpush2.bf16.msra.mxu0 0
      %4579 = vmatprep.subr.bf16.mxu0 0
      %4580 = vmatpush2.bf16.msra.mxu0 0
      %4581 = vmatprep.subr.bf16.mxu0 0
      %4582 = vmatpush2.bf16.msra.mxu0 0
      %4583 = vmatprep.subr.bf16.mxu0 0
      %4584 = vmatpush2.bf16.msra.mxu0 0
      %4585 = vmatprep.subr.bf16.mxu0 0
      %4586 = vmatpush2.bf16.msra.mxu0 0
      %4587 = vmatprep.subr.bf16.mxu0 0
      %4588 = vmatpush2.bf16.msra.mxu0 0
      %4589 = vmatprep.subr.bf16.mxu0 0
      %4590 = vmatpush2.bf16.msra.mxu0 0
      %4591 = vmatprep.mubr.bf16.mxu0 0
      %4592 = vmatmul.mubr.bf16.gmra.mxu0 %v4507
      %v4593 = vpop.f32.mrf.mxu0
      %v4594 = vadd.f32 0.0, %v4593
      %v4595 = vpop.f32.mrf.mxu0
      %v4596 = vpop.f32.mrf.mxu0
      %v4597 = vadd.f32 0.0, %v4596
      %v4598 = vpop.f32.mrf.mxu0
      %4599 = vmatprep.mubr.bf16.mxu0 0
      %4600 = vmatmul.mubr.bf16.gmra.mxu0 %v4508
      %v4601 = vpop.f32.mrf.mxu0
      %v4602 = vadd.f32 0.0, %v4601
      %v4603 = vpop.f32.mrf.mxu0
      %v4604 = vpop.f32.mrf.mxu0
      %v4605 = vadd.f32 0.0, %v4604
      %v4606 = vpop.f32.mrf.mxu0
      %4607 = vmatprep.mubr.bf16.mxu0 0
      %4608 = vmatmul.mubr.bf16.gmra.mxu0 %v4509
      %v4609 = vpop.f32.mrf.mxu0
      %v4610 = vadd.f32 0.0, %v4609
      %v4611 = vpop.f32.mrf.mxu0
      %v4612 = vpop.f32.mrf.mxu0
      %v4613 = vadd.f32 0.0, %v4612
      %v4614 = vpop.f32.mrf.mxu0
      %4615 = vmatprep.mubr.bf16.mxu0 0
      %4616 = vmatmul.mubr.bf16.gmra.mxu0 %v4510
      %v4617 = vpop.f32.mrf.mxu0
      %v4618 = vadd.f32 0.0, %v4617
      %v4619 = vpop.f32.mrf.mxu0
      %v4620 = vpop.f32.mrf.mxu0
      %v4621 = vadd.f32 0.0, %v4620
      %v4622 = vpop.f32.mrf.mxu0
      %4623 = vdwg.mxu0
      %v4624 = vadd.f32 %v4499, %v4594
      %v4625 = vadd.f32 %v4500, %v4597
      %v4626 = vadd.f32 %v4501, %v4602
      %v4627 = vadd.f32 %v4502, %v4605
      %v4628 = vadd.f32 %v4503, %v4610
      %v4629 = vadd.f32 %v4504, %v4613
      %v4630 = vadd.f32 %v4505, %v4618
      %v4631 = vadd.f32 %v4506, %v4621
      %v4633 = vlaneseq
      %v4634 = vshrl.u32 %v4633, 7
      %v4635 = vsub.s32 0, %v4634
      %v4636 = vrot.slane %v4106, %v4635
      %v4638 = vadd.f32 %v4624, %v4636
      %v4639 = vadd.f32 %v4625, %v4636
      %v4640 = vadd.f32 %v4626, %v4636
      %v4641 = vadd.f32 %v4627, %v4636
      %v4642 = vadd.f32 %v4628, %v4636
      %v4643 = vadd.f32 %v4629, %v4636
      %v4644 = vadd.f32 %v4630, %v4636
      %v4645 = vadd.f32 %v4631, %v4636
      %v4646 = vtanh.pop %v4638
      %v4647 = vtanh.pop %v4639
      %v4648 = vtanh.pop %v4640
      %v4649 = vtanh.pop %v4641
      %v4650 = vtanh.pop %v4642
      %v4651 = vtanh.pop %v4643
      %v4652 = vtanh.pop %v4644
      %v4653 = vtanh.pop %v4645
      %v4654 = vpack.c.bf16 %v4647, %v4646
      %v4655 = vpack.c.bf16 %v4649, %v4648
      %v4656 = vpack.c.bf16 %v4651, %v4650
      %v4657 = vpack.c.bf16 %v4653, %v4652
      %v4659 = vlaneseq
      %v4660 = vshrl.u32 %v4659, 7
      %v4661 = vsub.s32 0, %v4660
      %v4662 = vrot.slane %v4123, %v4661
      %v4680 = vunpack.c.l.b16 %v4107
      %v4681 = vunpack.c.l.b16 %v4108
      %v4682 = vunpack.c.l.b16 %v4109
      %v4683 = vunpack.c.l.b16 %v4110
      %v4684 = vunpack.c.l.b16 %v4111
      %v4685 = vunpack.c.l.b16 %v4112
      %v4686 = vunpack.c.l.b16 %v4113
      %v4687 = vunpack.c.l.b16 %v4114
      %v4688 = vunpack.c.l.b16 %v4115
      %v4689 = vunpack.c.l.b16 %v4116
      %v4690 = vunpack.c.l.b16 %v4117
      %v4691 = vunpack.c.l.b16 %v4118
      %v4692 = vunpack.c.l.b16 %v4119
      %v4693 = vunpack.c.l.b16 %v4120
      %v4694 = vunpack.c.l.b16 %v4121
      %v4695 = vunpack.c.l.b16 %v4122
      %v4696 = vpack.c.b16 %v4681, %v4680
      %v4697 = vpack.c.b16 %v4683, %v4682
      %v4698 = vpack.c.b16 %v4685, %v4684
      %v4699 = vpack.c.b16 %v4687, %v4686
      %v4700 = vpack.c.b16 %v4689, %v4688
      %v4701 = vpack.c.b16 %v4691, %v4690
      %v4702 = vpack.c.b16 %v4693, %v4692
      %v4703 = vpack.c.b16 %v4695, %v4694
      %4712 = vmatprep.subr.bf16.mxu0 0
      %4713 = vmatpush1.bf16.msra.mxu0 %v4703
      %4714 = vmatprep.subr.bf16.mxu0 0
      %4715 = vmatpush1.bf16.msra.mxu0 %v4702
      %4716 = vmatprep.subr.bf16.mxu0 0
      %4717 = vmatpush1.bf16.msra.mxu0 %v4701
      %4718 = vmatprep.subr.bf16.mxu0 0
      %4719 = vmatpush1.bf16.msra.mxu0 %v4700
      %4720 = vmatprep.subr.bf16.mxu0 0
      %4721 = vmatpush1.bf16.msra.mxu0 %v4699
      %4722 = vmatprep.subr.bf16.mxu0 0
      %4723 = vmatpush1.bf16.msra.mxu0 %v4698
      %4724 = vmatprep.subr.bf16.mxu0 0
      %4725 = vmatpush1.bf16.msra.mxu0 %v4697
      %4726 = vmatprep.subr.bf16.mxu0 0
      %4727 = vmatpush1.bf16.msra.mxu0 %v4696
      %4728 = vmatprep.subr.bf16.mxu0 0
      %4729 = vmatpush2.bf16.msra.mxu0 0
      %4730 = vmatprep.subr.bf16.mxu0 0
      %4731 = vmatpush2.bf16.msra.mxu0 0
      %4732 = vmatprep.subr.bf16.mxu0 0
      %4733 = vmatpush2.bf16.msra.mxu0 0
      %4734 = vmatprep.subr.bf16.mxu0 0
      %4735 = vmatpush2.bf16.msra.mxu0 0
      %4736 = vmatprep.subr.bf16.mxu0 0
      %4737 = vmatpush2.bf16.msra.mxu0 0
      %4738 = vmatprep.subr.bf16.mxu0 0
      %4739 = vmatpush2.bf16.msra.mxu0 0
      %4740 = vmatprep.subr.bf16.mxu0 0
      %4741 = vmatpush2.bf16.msra.mxu0 0
      %4742 = vmatprep.subr.bf16.mxu0 0
      %4743 = vmatpush2.bf16.msra.mxu0 0
      %4744 = vmatprep.mubr.bf16.mxu0 0
      %4745 = vmatmul.mubr.bf16.gmra.mxu0 %v4654
      %v4746 = vpop.f32.mrf.mxu0
      %v4747 = vadd.f32 %v4662, %v4746
      %v4748 = vpop.f32.mrf.mxu0
      %v4749 = vpop.f32.mrf.mxu0
      %v4750 = vadd.f32 %v4662, %v4749
      %v4751 = vpop.f32.mrf.mxu0
      %4752 = vmatprep.mubr.bf16.mxu0 0
      %4753 = vmatmul.mubr.bf16.gmra.mxu0 %v4655
      %v4754 = vpop.f32.mrf.mxu0
      %v4755 = vadd.f32 %v4662, %v4754
      %v4756 = vpop.f32.mrf.mxu0
      %v4757 = vpop.f32.mrf.mxu0
      %v4758 = vadd.f32 %v4662, %v4757
      %v4759 = vpop.f32.mrf.mxu0
      %4760 = vmatprep.mubr.bf16.mxu0 0
      %4761 = vmatmul.mubr.bf16.gmra.mxu0 %v4656
      %v4762 = vpop.f32.mrf.mxu0
      %v4763 = vadd.f32 %v4662, %v4762
      %v4764 = vpop.f32.mrf.mxu0
      %v4765 = vpop.f32.mrf.mxu0
      %v4766 = vadd.f32 %v4662, %v4765
      %v4767 = vpop.f32.mrf.mxu0
      %4768 = vmatprep.mubr.bf16.mxu0 0
      %4769 = vmatmul.mubr.bf16.gmra.mxu0 %v4657
      %v4770 = vpop.f32.mrf.mxu0
      %v4771 = vadd.f32 %v4662, %v4770
      %v4772 = vpop.f32.mrf.mxu0
      %v4773 = vpop.f32.mrf.mxu0
      %v4774 = vadd.f32 %v4662, %v4773
      %v4775 = vpop.f32.mrf.mxu0
      %4776 = vdwg.mxu0
      %v4777 = vlaneseq
      %v4778 = vand.u32 %v4777, 127
      %vm4779 = vcmp.lt.s32.totalorder %v4778, 3
      %v4780 = vsel %vm4779, %v4747, -1e+30
      %v4781 = vsel %vm4779, %v4750, -1e+30
      %v4782 = vsel %vm4779, %v4755, -1e+30
      %v4783 = vsel %vm4779, %v4758, -1e+30
      %v4784 = vsel %vm4779, %v4763, -1e+30
      %v4785 = vsel %vm4779, %v4766, -1e+30
      %v4786 = vsel %vm4779, %v4771, -1e+30
      %v4787 = vsel %vm4779, %v4774, -1e+30
      %v4788 = vld [vmem:[%s517] sm:$0xff]
      %v4789 = vld [vmem:[%s517 + $0x8] sm:$0xff]
      %v4790 = vld [vmem:[%s517 + $0x10] sm:$0xff]
      %v4791 = vld [vmem:[%s517 + $0x18] sm:$0xff]
      %v4792 = vld [vmem:[%s517 + $0x20] sm:$0xff]
      %v4793 = vld [vmem:[%s517 + $0x28] sm:$0xff]
      %v4794 = vld [vmem:[%s517 + $0x30] sm:$0xff]
      %v4795 = vld [vmem:[%s517 + $0x38] sm:$0xff]
      %4796 = vmax.xlane.f32.xlu0 %v4780
      %v4797 = vpop.xlane.xlu0 %4796
      %4798 = vmax.xlane.f32.xlu0 %v4781
      %v4799 = vpop.xlane.xlu0 %4798
      %4800 = vmax.xlane.f32.xlu0 %v4782
      %v4801 = vpop.xlane.xlu0 %4800
      %4802 = vmax.xlane.f32.xlu0 %v4783
      %v4803 = vpop.xlane.xlu0 %4802
      %4804 = vmax.xlane.f32.xlu0 %v4784
      %v4805 = vpop.xlane.xlu0 %4804
      %4806 = vmax.xlane.f32.xlu0 %v4785
      %v4807 = vpop.xlane.xlu0 %4806
      %4808 = vmax.xlane.f32.xlu0 %v4786
      %v4809 = vpop.xlane.xlu0 %4808
      %4810 = vmax.xlane.f32.xlu0 %v4787
      %v4811 = vpop.xlane.xlu0 %4810
      %v4812 = vsub.f32 %v4780, %v4797
      %v4813 = vsub.f32 %v4781, %v4799
      %v4814 = vsub.f32 %v4782, %v4801
      %v4815 = vsub.f32 %v4783, %v4803
      %v4816 = vsub.f32 %v4784, %v4805
      %v4817 = vsub.f32 %v4785, %v4807
      %v4818 = vsub.f32 %v4786, %v4809
      %v4819 = vsub.f32 %v4787, %v4811
      %v4820 = vmul.f32 %v4812, 1.442695
      %v4821 = vpow.pop %v4820
      %v4822 = vmul.f32 %v4813, 1.442695
      %v4823 = vpow.pop %v4822
      %v4824 = vmul.f32 %v4814, 1.442695
      %v4825 = vpow.pop %v4824
      %v4826 = vmul.f32 %v4815, 1.442695
      %v4827 = vpow.pop %v4826
      %v4828 = vmul.f32 %v4816, 1.442695
      %v4829 = vpow.pop %v4828
      %v4830 = vmul.f32 %v4817, 1.442695
      %v4831 = vpow.pop %v4830
      %v4832 = vmul.f32 %v4818, 1.442695
      %v4833 = vpow.pop %v4832
      %v4834 = vmul.f32 %v4819, 1.442695
      %v4835 = vpow.pop %v4834
      %v4836 = vsel %vm4779, %v4821, 0.0
      %v4837 = vsel %vm4779, %v4823, 0.0
      %v4838 = vsel %vm4779, %v4825, 0.0
      %v4839 = vsel %vm4779, %v4827, 0.0
      %v4840 = vsel %vm4779, %v4829, 0.0
      %v4841 = vsel %vm4779, %v4831, 0.0
      %v4842 = vsel %vm4779, %v4833, 0.0
      %v4843 = vsel %vm4779, %v4835, 0.0
      %4844 = vadd.xlane.f32.xlu0 %v4836
      %v4845 = vpop.xlane.xlu0 %4844
      %4846 = vadd.xlane.f32.xlu0 %v4837
      %v4847 = vpop.xlane.xlu0 %4846
      %4848 = vadd.xlane.f32.xlu0 %v4838
      %v4849 = vpop.xlane.xlu0 %4848
      %4850 = vadd.xlane.f32.xlu0 %v4839
      %v4851 = vpop.xlane.xlu0 %4850
      %4852 = vadd.xlane.f32.xlu0 %v4840
      %v4853 = vpop.xlane.xlu0 %4852
      %4854 = vadd.xlane.f32.xlu0 %v4841
      %v4855 = vpop.xlane.xlu0 %4854
      %4856 = vadd.xlane.f32.xlu0 %v4842
      %v4857 = vpop.xlane.xlu0 %4856
      %4858 = vadd.xlane.f32.xlu0 %v4843
      %v4859 = vpop.xlane.xlu0 %4858
      %v4860 = vrcp.pop %v4845
      %v4861 = vrcp.pop %v4847
      %v4862 = vrcp.pop %v4849
      %v4863 = vrcp.pop %v4851
      %v4864 = vrcp.pop %v4853
      %v4865 = vrcp.pop %v4855
      %v4866 = vrcp.pop %v4857
      %v4867 = vrcp.pop %v4859
      %v4868 = vmul.f32 %v4836, %v4860
      %v4869 = vmul.f32 %v4837, %v4861
      %v4870 = vmul.f32 %v4838, %v4862
      %v4871 = vmul.f32 %v4839, %v4863
      %v4872 = vmul.f32 %v4840, %v4864
      %v4873 = vmul.f32 %v4841, %v4865
      %v4874 = vmul.f32 %v4842, %v4866
      %v4875 = vmul.f32 %v4843, %v4867
      %v4876 = vlog2.pop %v4845
      %v4877 = vmul.f32 %v4876, 0.6931472
      %v4878 = vlog2.pop %v4847
      %v4879 = vmul.f32 %v4878, 0.6931472
      %v4880 = vlog2.pop %v4849
      %v4881 = vmul.f32 %v4880, 0.6931472
      %v4882 = vlog2.pop %v4851
      %v4883 = vmul.f32 %v4882, 0.6931472
      %v4884 = vlog2.pop %v4853
      %v4885 = vmul.f32 %v4884, 0.6931472
      %v4886 = vlog2.pop %v4855
      %v4887 = vmul.f32 %v4886, 0.6931472
      %v4888 = vlog2.pop %v4857
      %v4889 = vmul.f32 %v4888, 0.6931472
      %v4890 = vlog2.pop %v4859
      %v4891 = vmul.f32 %v4890, 0.6931472
      %v4892 = vadd.f32 %v4797, %v4877
      %v4893 = vadd.f32 %v4799, %v4879
      %v4894 = vadd.f32 %v4801, %v4881
      %v4895 = vadd.f32 %v4803, %v4883
      %v4896 = vadd.f32 %v4805, %v4885
      %v4897 = vadd.f32 %v4807, %v4887
      %v4898 = vadd.f32 %v4809, %v4889
      %v4899 = vadd.f32 %v4811, %v4891
      %4900 = vset.pattern.permute.xlu0 0
      %4901 = vperm.xlu0 %4900, %v4788
      %v4902 = vpop.permute.xlu0 %4901
      %4903 = vset.pattern.permute.xlu0 0
      %4904 = vperm.xlu0 %4903, %v4789
      %v4905 = vpop.permute.xlu0 %4904
      %4906 = vset.pattern.permute.xlu0 0
      %4907 = vperm.xlu0 %4906, %v4790
      %v4908 = vpop.permute.xlu0 %4907
      %4909 = vset.pattern.permute.xlu0 0
      %4910 = vperm.xlu0 %4909, %v4791
      %v4911 = vpop.permute.xlu0 %4910
      %4912 = vset.pattern.permute.xlu0 0
      %4913 = vperm.xlu0 %4912, %v4792
      %v4914 = vpop.permute.xlu0 %4913
      %4915 = vset.pattern.permute.xlu0 0
      %4916 = vperm.xlu0 %4915, %v4793
      %v4917 = vpop.permute.xlu0 %4916
      %4918 = vset.pattern.permute.xlu0 0
      %4919 = vperm.xlu0 %4918, %v4794
      %v4920 = vpop.permute.xlu0 %4919
      %4921 = vset.pattern.permute.xlu0 0
      %4922 = vperm.xlu0 %4921, %v4795
      %v4923 = vpop.permute.xlu0 %4922
      %vm4924 = vcmp.eq.s32.totalorder %v4778, %v4902
      %vm4925 = vcmp.eq.s32.totalorder %v4778, %v4905
      %vm4926 = vcmp.eq.s32.totalorder %v4778, %v4908
      %vm4927 = vcmp.eq.s32.totalorder %v4778, %v4911
      %vm4928 = vcmp.eq.s32.totalorder %v4778, %v4914
      %vm4929 = vcmp.eq.s32.totalorder %v4778, %v4917
      %vm4930 = vcmp.eq.s32.totalorder %v4778, %v4920
      %vm4931 = vcmp.eq.s32.totalorder %v4778, %v4923
      %v4932 = vsel %vm4924, 1, 0
      %v4933 = vsel %vm4925, 1, 0
      %v4934 = vsel %vm4926, 1, 0
      %v4935 = vsel %vm4927, 1, 0
      %v4936 = vsel %vm4928, 1, 0
      %v4937 = vsel %vm4929, 1, 0
      %v4938 = vsel %vm4930, 1, 0
      %v4939 = vsel %vm4931, 1, 0
      %v4940 = vcvt.s32.f32 %v4932
      %v4941 = vcvt.s32.f32 %v4933
      %v4942 = vcvt.s32.f32 %v4934
      %v4943 = vcvt.s32.f32 %v4935
      %v4944 = vcvt.s32.f32 %v4936
      %v4945 = vcvt.s32.f32 %v4937
      %v4946 = vcvt.s32.f32 %v4938
      %v4947 = vcvt.s32.f32 %v4939
      %v4948 = vmul.f32 %v4780, %v4940
      %v4949 = vmul.f32 %v4781, %v4941
      %v4950 = vmul.f32 %v4782, %v4942
      %v4951 = vmul.f32 %v4783, %v4943
      %v4952 = vmul.f32 %v4784, %v4944
      %v4953 = vmul.f32 %v4785, %v4945
      %v4954 = vmul.f32 %v4786, %v4946
      %v4955 = vmul.f32 %v4787, %v4947
      %4956 = vadd.xlane.f32.xlu0 %v4948
      %v4957 = vpop.xlane.xlu0 %4956
      %4958 = vadd.xlane.f32.xlu0 %v4949
      %v4959 = vpop.xlane.xlu0 %4958
      %4960 = vadd.xlane.f32.xlu0 %v4950
      %v4961 = vpop.xlane.xlu0 %4960
      %4962 = vadd.xlane.f32.xlu0 %v4951
      %v4963 = vpop.xlane.xlu0 %4962
      %4964 = vadd.xlane.f32.xlu0 %v4952
      %v4965 = vpop.xlane.xlu0 %4964
      %4966 = vadd.xlane.f32.xlu0 %v4953
      %v4967 = vpop.xlane.xlu0 %4966
      %4968 = vadd.xlane.f32.xlu0 %v4954
      %v4969 = vpop.xlane.xlu0 %4968
      %4970 = vadd.xlane.f32.xlu0 %v4955
      %v4971 = vpop.xlane.xlu0 %4970
      %v4972 = vsub.f32 %v4892, %v4957
      %v4973 = vsub.f32 %v4893, %v4959
      %v4974 = vsub.f32 %v4894, %v4961
      %v4975 = vsub.f32 %v4895, %v4963
      %v4976 = vsub.f32 %v4896, %v4965
      %v4977 = vsub.f32 %v4897, %v4967
      %v4978 = vsub.f32 %v4898, %v4969
      %v4979 = vsub.f32 %v4899, %v4971
      %vm4980 = vcmp.eq.f32.partialorder %v4780, %v4797
      %vm4981 = vcmp.eq.f32.partialorder %v4781, %v4799
      %vm4982 = vcmp.eq.f32.partialorder %v4782, %v4801
      %vm4983 = vcmp.eq.f32.partialorder %v4783, %v4803
      %vm4984 = vcmp.eq.f32.partialorder %v4784, %v4805
      %vm4985 = vcmp.eq.f32.partialorder %v4785, %v4807
      %vm4986 = vcmp.eq.f32.partialorder %v4786, %v4809
      %vm4987 = vcmp.eq.f32.partialorder %v4787, %v4811
      %v4988 = vsel %vm4980, %v4778, 128
      %v4989 = vsel %vm4981, %v4778, 128
      %v4990 = vsel %vm4982, %v4778, 128
      %v4991 = vsel %vm4983, %v4778, 128
      %v4992 = vsel %vm4984, %v4778, 128
      %v4993 = vsel %vm4985, %v4778, 128
      %v4994 = vsel %vm4986, %v4778, 128
      %v4995 = vsel %vm4987, %v4778, 128
      %v4996 = vand.u32 %v4988, 65535
      %v4997 = vshra.s32 %v4988, 16
      %v4998 = vcvt.s32.f32 %v4996
      %v4999 = vcvt.s32.f32 %v4997
      %5000 = vmin.xlane.f32.xlu0 %v4999
      %v5001 = vpop.xlane.xlu0 %5000
      %vm5002 = vcmp.eq.f32.partialorder %v4999, %v5001
      %v5003 = vsel %vm5002, %v4998, inf
      %5004 = vmin.xlane.f32.xlu0 %v5003
      %v5005 = vpop.xlane.xlu0 %5004
      %v5006 = vcvt.f32.s32 %v5005
      %v5007 = vcvt.f32.s32 %v5001
      %v5008 = vshll.u32 %v5007, 16
      %v5009 = vadd.s32 %v5008, %v5006
      %v5010 = vand.u32 %v4989, 65535
      %v5011 = vshra.s32 %v4989, 16
      %v5012 = vcvt.s32.f32 %v5010
      %v5013 = vcvt.s32.f32 %v5011
      %5014 = vmin.xlane.f32.xlu0 %v5013
      %v5015 = vpop.xlane.xlu0 %5014
      %vm5016 = vcmp.eq.f32.partialorder %v5013, %v5015
      %v5017 = vsel %vm5016, %v5012, inf
      %5018 = vmin.xlane.f32.xlu0 %v5017
      %v5019 = vpop.xlane.xlu0 %5018
      %v5020 = vcvt.f32.s32 %v5019
      %v5021 = vcvt.f32.s32 %v5015
      %v5022 = vshll.u32 %v5021, 16
      %v5023 = vadd.s32 %v5022, %v5020
      %v5024 = vand.u32 %v4990, 65535
      %v5025 = vshra.s32 %v4990, 16
      %v5026 = vcvt.s32.f32 %v5024
      %v5027 = vcvt.s32.f32 %v5025
      %5028 = vmin.xlane.f32.xlu0 %v5027
      %v5029 = vpop.xlane.xlu0 %5028
      %vm5030 = vcmp.eq.f32.partialorder %v5027, %v5029
      %v5031 = vsel %vm5030, %v5026, inf
      %5032 = vmin.xlane.f32.xlu0 %v5031
      %v5033 = vpop.xlane.xlu0 %5032
      %v5034 = vcvt.f32.s32 %v5033
      %v5035 = vcvt.f32.s32 %v5029
      %v5036 = vshll.u32 %v5035, 16
      %v5037 = vadd.s32 %v5036, %v5034
      %v5038 = vand.u32 %v4991, 65535
      %v5039 = vshra.s32 %v4991, 16
      %v5040 = vcvt.s32.f32 %v5038
      %v5041 = vcvt.s32.f32 %v5039
      %5042 = vmin.xlane.f32.xlu0 %v5041
      %v5043 = vpop.xlane.xlu0 %5042
      %vm5044 = vcmp.eq.f32.partialorder %v5041, %v5043
      %v5045 = vsel %vm5044, %v5040, inf
      %5046 = vmin.xlane.f32.xlu0 %v5045
      %v5047 = vpop.xlane.xlu0 %5046
      %v5048 = vcvt.f32.s32 %v5047
      %v5049 = vcvt.f32.s32 %v5043
      %v5050 = vshll.u32 %v5049, 16
      %v5051 = vadd.s32 %v5050, %v5048
      %v5052 = vand.u32 %v4992, 65535
      %v5053 = vshra.s32 %v4992, 16
      %v5054 = vcvt.s32.f32 %v5052
      %v5055 = vcvt.s32.f32 %v5053
      %5056 = vmin.xlane.f32.xlu0 %v5055
      %v5057 = vpop.xlane.xlu0 %5056
      %vm5058 = vcmp.eq.f32.partialorder %v5055, %v5057
      %v5059 = vsel %vm5058, %v5054, inf
      %5060 = vmin.xlane.f32.xlu0 %v5059
      %v5061 = vpop.xlane.xlu0 %5060
      %v5062 = vcvt.f32.s32 %v5061
      %v5063 = vcvt.f32.s32 %v5057
      %v5064 = vshll.u32 %v5063, 16
      %v5065 = vadd.s32 %v5064, %v5062
      %v5066 = vand.u32 %v4993, 65535
      %v5067 = vshra.s32 %v4993, 16
      %v5068 = vcvt.s32.f32 %v5066
      %v5069 = vcvt.s32.f32 %v5067
      %5070 = vmin.xlane.f32.xlu0 %v5069
      %v5071 = vpop.xlane.xlu0 %5070
      %vm5072 = vcmp.eq.f32.partialorder %v5069, %v5071
      %v5073 = vsel %vm5072, %v5068, inf
      %5074 = vmin.xlane.f32.xlu0 %v5073
      %v5075 = vpop.xlane.xlu0 %5074
      %v5076 = vcvt.f32.s32 %v5075
      %v5077 = vcvt.f32.s32 %v5071
      %v5078 = vshll.u32 %v5077, 16
      %v5079 = vadd.s32 %v5078, %v5076
      %v5080 = vand.u32 %v4994, 65535
      %v5081 = vshra.s32 %v4994, 16
      %v5082 = vcvt.s32.f32 %v5080
      %v5083 = vcvt.s32.f32 %v5081
      %5084 = vmin.xlane.f32.xlu0 %v5083
      %v5085 = vpop.xlane.xlu0 %5084
      %vm5086 = vcmp.eq.f32.partialorder %v5083, %v5085
      %v5087 = vsel %vm5086, %v5082, inf
      %5088 = vmin.xlane.f32.xlu0 %v5087
      %v5089 = vpop.xlane.xlu0 %5088
      %v5090 = vcvt.f32.s32 %v5089
      %v5091 = vcvt.f32.s32 %v5085
      %v5092 = vshll.u32 %v5091, 16
      %v5093 = vadd.s32 %v5092, %v5090
      %v5094 = vand.u32 %v4995, 65535
      %v5095 = vshra.s32 %v4995, 16
      %v5096 = vcvt.s32.f32 %v5094
      %v5097 = vcvt.s32.f32 %v5095
      %5098 = vmin.xlane.f32.xlu0 %v5097
      %v5099 = vpop.xlane.xlu0 %5098
      %vm5100 = vcmp.eq.f32.partialorder %v5097, %v5099
      %v5101 = vsel %vm5100, %v5096, inf
      %5102 = vmin.xlane.f32.xlu0 %v5101
      %v5103 = vpop.xlane.xlu0 %5102
      %v5104 = vcvt.f32.s32 %v5103
      %v5105 = vcvt.f32.s32 %v5099
      %v5106 = vshll.u32 %v5105, 16
      %v5107 = vadd.s32 %v5106, %v5104
      %v5108 = vld [vmem:[%s522] sm:$0xff]
      %v5109 = vld [vmem:[%s522 + $0x8] sm:$0xff]
      %v5110 = vld [vmem:[%s522 + $0x10] sm:$0xff]
      %v5111 = vld [vmem:[%s522 + $0x18] sm:$0xff]
      %v5112 = vld [vmem:[%s522 + $0x20] sm:$0xff]
      %v5113 = vld [vmem:[%s522 + $0x28] sm:$0xff]
      %v5114 = vld [vmem:[%s522 + $0x30] sm:$0xff]
      %v5115 = vld [vmem:[%s522 + $0x38] sm:$0xff]
      %v5116 = vxor.u32 %v5108, 2147483648
      %v5117 = vxor.u32 %v5109, 2147483648
      %v5118 = vxor.u32 %v5110, 2147483648
      %v5119 = vxor.u32 %v5111, 2147483648
      %v5120 = vxor.u32 %v5112, 2147483648
      %v5121 = vxor.u32 %v5113, 2147483648
      %v5122 = vxor.u32 %v5114, 2147483648
      %v5123 = vxor.u32 %v5115, 2147483648
      %v5124 = vmul.f32 %v5116, 1.442695
      %v5125 = vpow.pop %v5124
      %v5126 = vmul.f32 %v5117, 1.442695
      %v5127 = vpow.pop %v5126
      %v5128 = vmul.f32 %v5118, 1.442695
      %v5129 = vpow.pop %v5128
      %v5130 = vmul.f32 %v5119, 1.442695
      %v5131 = vpow.pop %v5130
      %v5132 = vmul.f32 %v5120, 1.442695
      %v5133 = vpow.pop %v5132
      %v5134 = vmul.f32 %v5121, 1.442695
      %v5135 = vpow.pop %v5134
      %v5136 = vmul.f32 %v5122, 1.442695
      %v5137 = vpow.pop %v5136
      %v5138 = vmul.f32 %v5123, 1.442695
      %v5139 = vpow.pop %v5138
      %v5140 = vadd.f32 %v5125, 1.0
      %v5141 = vadd.f32 %v5127, 1.0
      %v5142 = vadd.f32 %v5129, 1.0
      %v5143 = vadd.f32 %v5131, 1.0
      %v5144 = vadd.f32 %v5133, 1.0
      %v5145 = vadd.f32 %v5135, 1.0
      %v5146 = vadd.f32 %v5137, 1.0
      %v5147 = vadd.f32 %v5139, 1.0
      %v5148 = vrcp.pop %v5140
      %v5149 = vmul.f32 1.0, %v5148
      %v5150 = vrcp.pop %v5141
      %v5151 = vmul.f32 1.0, %v5150
      %v5152 = vrcp.pop %v5142
      %v5153 = vmul.f32 1.0, %v5152
      %v5154 = vrcp.pop %v5143
      %v5155 = vmul.f32 1.0, %v5154
      %v5156 = vrcp.pop %v5144
      %v5157 = vmul.f32 1.0, %v5156
      %v5158 = vrcp.pop %v5145
      %v5159 = vmul.f32 1.0, %v5158
      %v5160 = vrcp.pop %v5146
      %v5161 = vmul.f32 1.0, %v5160
      %v5162 = vrcp.pop %v5147
      %v5163 = vmul.f32 1.0, %v5162
      %v5164 = vmul.f32 %v5149, %v4972
      %v5165 = vmul.f32 %v5151, %v4973
      %v5166 = vmul.f32 %v5153, %v4974
      %v5167 = vmul.f32 %v5155, %v4975
      %v5168 = vmul.f32 %v5157, %v4976
      %v5169 = vmul.f32 %v5159, %v4977
      %v5170 = vmul.f32 %v5161, %v4978
      %v5171 = vmul.f32 %v5163, %v4979
      %vm5172 = vcmp.eq.s32.totalorder %v5009, %v4788
      %vm5173 = vcmp.eq.s32.totalorder %v5023, %v4789
      %vm5174 = vcmp.eq.s32.totalorder %v5037, %v4790
      %vm5175 = vcmp.eq.s32.totalorder %v5051, %v4791
      %vm5176 = vcmp.eq.s32.totalorder %v5065, %v4792
      %vm5177 = vcmp.eq.s32.totalorder %v5079, %v4793
      %vm5178 = vcmp.eq.s32.totalorder %v5093, %v4794
      %vm5179 = vcmp.eq.s32.totalorder %v5107, %v4795
      %v5180 = vsel %vm5172, 1, 0
      %v5181 = vsel %vm5173, 1, 0
      %v5182 = vsel %vm5174, 1, 0
      %v5183 = vsel %vm5175, 1, 0
      %v5184 = vsel %vm5176, 1, 0
      %v5185 = vsel %vm5177, 1, 0
      %v5186 = vsel %vm5178, 1, 0
      %v5187 = vsel %vm5179, 1, 0
      %v5188 = vcvt.s32.f32 %v5180
      %v5189 = vcvt.s32.f32 %v5181
      %v5190 = vcvt.s32.f32 %v5182
      %v5191 = vcvt.s32.f32 %v5183
      %v5192 = vcvt.s32.f32 %v5184
      %v5193 = vcvt.s32.f32 %v5185
      %v5194 = vcvt.s32.f32 %v5186
      %v5195 = vcvt.s32.f32 %v5187
      %vm5196 = vcmp.eq.s32.totalorder %v4778, 3
      %v5197 = vcvt.s32.f32 %v5009
      %v5198 = vcvt.s32.f32 %v5023
      %v5199 = vcvt.s32.f32 %v5037
      %v5200 = vcvt.s32.f32 %v5051
      %v5201 = vcvt.s32.f32 %v5065
      %v5202 = vcvt.s32.f32 %v5079
      %v5203 = vcvt.s32.f32 %v5093
      %v5204 = vcvt.s32.f32 %v5107
      %v5205 = vsel %vm5196, %v5197, %v4868
      %v5206 = vsel %vm5196, %v5198, %v4869
      %v5207 = vsel %vm5196, %v5199, %v4870
      %v5208 = vsel %vm5196, %v5200, %v4871
      %v5209 = vsel %vm5196, %v5201, %v4872
      %v5210 = vsel %vm5196, %v5202, %v4873
      %v5211 = vsel %vm5196, %v5203, %v4874
      %v5212 = vsel %vm5196, %v5204, %v4875
      %vm5213 = vcmp.eq.s32.totalorder %v4778, 4
      %5215 = vset.pattern.permute.xlu0 0
      %5216 = vperm.xlu0 %5215, %v5164
      %v5217 = vpop.permute.xlu0 %5216
      %5220 = vset.pattern.permute.xlu0 0
      %5221 = vperm.xlu0 %5220, %v5165
      %v5222 = vpop.permute.xlu0 %5221
      %5225 = vset.pattern.permute.xlu0 0
      %5226 = vperm.xlu0 %5225, %v5166
      %v5227 = vpop.permute.xlu0 %5226
      %5230 = vset.pattern.permute.xlu0 0
      %5231 = vperm.xlu0 %5230, %v5167
      %v5232 = vpop.permute.xlu0 %5231
      %5235 = vset.pattern.permute.xlu0 0
      %5236 = vperm.xlu0 %5235, %v5168
      %v5237 = vpop.permute.xlu0 %5236
      %5240 = vset.pattern.permute.xlu0 0
      %5241 = vperm.xlu0 %5240, %v5169
      %v5242 = vpop.permute.xlu0 %5241
      %5245 = vset.pattern.permute.xlu0 0
      %5246 = vperm.xlu0 %5245, %v5170
      %v5247 = vpop.permute.xlu0 %5246
      %5250 = vset.pattern.permute.xlu0 0
      %5251 = vperm.xlu0 %5250, %v5171
      %v5252 = vpop.permute.xlu0 %5251
      %v5254 = vsel %vm5213, %v5217, %v5205
      %v5255 = vsel %vm5213, %v5222, %v5206
      %v5256 = vsel %vm5213, %v5227, %v5207
      %v5257 = vsel %vm5213, %v5232, %v5208
      %v5258 = vsel %vm5213, %v5237, %v5209
      %v5259 = vsel %vm5213, %v5242, %v5210
      %v5260 = vsel %vm5213, %v5247, %v5211
      %v5261 = vsel %vm5213, %v5252, %v5212
      %vm5262 = vcmp.eq.s32.totalorder %v4778, 5
      %5264 = vset.pattern.permute.xlu0 0
      %5265 = vperm.xlu0 %5264, %v5188
      %v5266 = vpop.permute.xlu0 %5265
      %5269 = vset.pattern.permute.xlu0 0
      %5270 = vperm.xlu0 %5269, %v5189
      %v5271 = vpop.permute.xlu0 %5270
      %5274 = vset.pattern.permute.xlu0 0
      %5275 = vperm.xlu0 %5274, %v5190
      %v5276 = vpop.permute.xlu0 %5275
      %5279 = vset.pattern.permute.xlu0 0
      %5280 = vperm.xlu0 %5279, %v5191
      %v5281 = vpop.permute.xlu0 %5280
      %5284 = vset.pattern.permute.xlu0 0
      %5285 = vperm.xlu0 %5284, %v5192
      %v5286 = vpop.permute.xlu0 %5285
      %5289 = vset.pattern.permute.xlu0 0
      %5290 = vperm.xlu0 %5289, %v5193
      %v5291 = vpop.permute.xlu0 %5290
      %5294 = vset.pattern.permute.xlu0 0
      %5295 = vperm.xlu0 %5294, %v5194
      %v5296 = vpop.permute.xlu0 %5295
      %5299 = vset.pattern.permute.xlu0 0
      %5300 = vperm.xlu0 %5299, %v5195
      %v5301 = vpop.permute.xlu0 %5300
      %v5303 = vsel %vm5262, %v5266, %v5254
      %v5304 = vsel %vm5262, %v5271, %v5255
      %v5305 = vsel %vm5262, %v5276, %v5256
      %v5306 = vsel %vm5262, %v5281, %v5257
      %v5307 = vsel %vm5262, %v5286, %v5258
      %v5308 = vsel %vm5262, %v5291, %v5259
      %v5309 = vsel %vm5262, %v5296, %v5260
      %v5310 = vsel %vm5262, %v5301, %v5261
      %5311 = vst [vmem:[%s527] sm:$0xff] %v5303
      %5312 = vst [vmem:[%s527 + $0x8] sm:$0xff] %v5304
      %5313 = vst [vmem:[%s527 + $0x10] sm:$0xff] %v5305
      %5314 = vst [vmem:[%s527 + $0x18] sm:$0xff] %v5306
      %5315 = vst [vmem:[%s527 + $0x20] sm:$0xff] %v5307
      %5316 = vst [vmem:[%s527 + $0x28] sm:$0xff] %v5308
      %5317 = vst [vmem:[%s527 + $0x30] sm:$0xff] %v5309
      %5318 = vst [vmem:[%s527 + $0x38] sm:$0xff] %v5310
      %p5319 = scmp.lt.s32.totalorder %s25, 3
      %s5320 = scalar_select %p5319, %s25, 3
      %s5321 = smul.addr %s5320, 8
      %s5322 = smul.addr %s5321, 8
      %s5323 = scalar_lea.vmem %s14, %s5322
      // Predicated region
      $region77: #{learner_forward.1} parent=75 // pred_check
        %p5324 = pneg %p357
      $region78: #{learner_forward.1} parent=75 // pred_check_branch
        %5326 = sbr.rel (%p5324) target = $region80
      $region79: #{learner_forward.1} parent=75 // pred_region
        _
      $region80: #{learner_forward.1} parent=75 // pred_fallthru
        _
    $region76: #{learner_forward.1} parent=5 // pred_fallthru
      _
    %p5327 = scmp.le.s32.totalorder 2, %s20
    // Predicated region
    $region81: #{learner_forward.1} parent=5 // pred_check
      %p5328 = pneg %p5327
    $region82: #{learner_forward.1} parent=5 // pred_check_branch
      %5330 = sbr.rel (%p5328) target = $region84
    $region83: #{learner_forward.1} parent=5 // pred_region
      %s5331 = ssub.s32 %s20, 2
      // Predicated region
      $region85: #{learner_forward.1} parent=83 // pred_check
        %p5332 = pneg %p363
      $region86: #{learner_forward.1} parent=83 // pred_check_branch
        %5334 = sbr.rel (%p5332) target = $region88
      $region87: #{learner_forward.1} parent=83 // pred_region
        %p5335 = scmp.lt.s32.totalorder %s26, 3
        %s5336 = scalar_select %p5335, %s26, 3
        %s5337 = smul.addr %s5336, 8
        %s5338 = smul.addr %s5337, 8
        %s5339 = scalar_lea.vmem %s14, %s5338
      $region88: #{learner_forward.1} parent=83 // pred_fallthru
        _
    $region84: #{learner_forward.1} parent=5 // pred_fallthru
      _
  $region6: #{learner_forward.1} parent=0 // loop_footer
    %s24 = sadd.s32 1, %s20
  $region7: #{learner_forward.1} parent=0 // loop_footer_branch
    %19 = sbr.rel target = $region3
  $region8: #{learner_forward.1} parent=0 // loop_exit
    _

</llo_original>
